<compile_context>
chip_gen: v7x
topology: tpu7x:2x2x1
jax: 0.10.0
libtpu: 0.0.40
codegen_flags: <defaults>
</compile_context>

<pallas_src>
import functools
import math

import jax
import jax.numpy as jnp
from jax import lax
from jax.experimental import pallas as pl
from jax.experimental.pallas import tpu as pltpu


_CONV0_OFFSETS = tuple(k - 2 for k in range(5))       # (1,5) dw, pad 2, dil 1
_CONV1_OFFSETS = tuple(3 * k - 9 for k in range(7))   # (1,7) dw, pad 9, dil 3


def _attention_kernel(x_ref,
                      wp1_ref, bp1_ref,
                      mult0_ref, bdw0_ref,
                      wf_ref, bf_ref,
                      cmask_ref,
                      wp2_ref, bp2_ref,
                      o_ref,
                      xpad_ref, stack_ref,
                      *, S, S_pad, C, bblk):
    f32 = jnp.float32
    hi = jax.lax.Precision.HIGHEST

    # Zero the lane-padded staging scratch once per grid step.  Lanes [S, S_pad)
    # stay zero for every batch element, so all downstream values are finite
    # and the precomputed mask*weight multipliers are safe (no NaN from 0*garbage).
    xpad_ref[...] = jnp.zeros_like(xpad_ref)

    def one_batch(b, carry):
        # Stage this batch element into the lane-padded (C, S_pad) scratch.
        xpad_ref[:, :S] = x_ref[b]
        xp = xpad_ref[...]                              # (C, S_pad)

        # proj_1 (1x1 conv) + exact (erf) GELU, matching nn.GELU() default.
        h = jnp.dot(wp1_ref[...], xp,
                    preferred_element_type=f32, precision=hi) + bp1_ref[...]
        h = 0.5 * h * (1.0 + lax.erf(h * (1.0 / math.sqrt(2.0))))

        # LKA conv0: depthwise (1, 5), padding 2.  Each tap = XLU lane roll +
        # one VPU multiply-add against a precomputed (mask * weight) table.
        a = None
        for k, off in enumerate(_CONV0_OFFSETS):
            src = h if off == 0 else pltpu.roll(h, shift=(-off) % S_pad, axis=1)
            term = mult0_ref[k] * src
            a = term if a is None else a + term
        a = a + bdw0_ref[...]

        # LKA conv_spatial (1, 7, dilation 3) fused with conv1 (1x1):
        # stack the 7 masked shifted copies of `a` on the sublane axis and do
        # a single (C, 7C) @ (7C, S_pad) MXU matmul (224-deep contraction).
        for k, off in enumerate(_CONV1_OFFSETS):
            if off == 0:
                stack_ref[pl.ds(k * C, C), :] = a
            else:
                rolled = pltpu.roll(a, shift=(-off) % S_pad, axis=1)
                stack_ref[pl.ds(k * C, C), :] = cmask_ref[k] * rolled
        attn = jnp.dot(wf_ref[...], stack_ref[...],
                       preferred_element_type=f32, precision=hi) + bf_ref[...]

        # Gate (u * attn, u = post-GELU h), proj_2 (1x1 conv), residual.
        g = h * attn
        y = jnp.dot(wp2_ref[...], g,
                    preferred_element_type=f32, precision=hi) + bp2_ref[...]
        # Store only the S valid lanes (output block is unpadded).
        o_ref[b] = (y[:, :S] + x_ref[b]).astype(o_ref.dtype)
        return carry

    lax.fori_loop(0, bblk, one_batch, 0, unroll=True)


def attention_forward(x_nchw, params, *, block_batch=None):
    N, C, H, W = x_nchw.shape
    S = H * W
    S_pad = ((S + 127) // 128) * 128
    f32 = jnp.float32

    # NCHW -> (N, C, H*W): pure reshape of trailing dims, no HBM transpose,
    # no HBM pad pass (padding happens only inside VMEM).
    x2 = x_nchw.reshape(N, C, S).astype(f32)

    # 1x1 conv weights (C_out, C_in), used as left-matmuls W @ x.
    wp1 = params["wp1"].astype(f32)
    bp1 = params["bp1"].astype(f32).reshape(C, 1)
    wp2 = params["wp2"].astype(f32)
    bp2 = params["bp2"].astype(f32).reshape(C, 1)
    bdw0 = params["bdw0"].astype(f32).reshape(C, 1)

    # Row-boundary masks per tap offset, precomputed host-side on the padded
    # lane axis so the kernel does no compares/selects for the shifts.
    pos = jnp.arange(S_pad, dtype=jnp.int32) % W

    def mask(off):
        return jnp.logical_and(pos + off >= 0, pos + off < W).astype(f32)

    # conv0: fold (mask_k * dw0[:, k]) into one (5, C, S_pad) multiplier table.
    mult0 = jnp.stack([
        params["dw0"][:, k].astype(f32)[:, None] * mask(off)[None, :]
        for k, off in enumerate(_CONV0_OFFSETS)])                  # (5, C, S_pad)

    # conv_spatial (depthwise 1x7, dil 3) folded into conv1 (1x1):
    #   wf_flat[:, k*C:(k+1)*C][i, j] = wpw[i, j] * dw1[j, k]
    #   bf = wpw @ bdw1 + bpw
    wf_flat = jnp.concatenate([
        params["wpw"].astype(f32) * params["dw1"][:, k].astype(f32)[None, :]
        for k in range(7)], axis=1)                                # (C, 7*C)
    bf = (params["wpw"].astype(f32) @ params["bdw1"].astype(f32)
          + params["bpw"].astype(f32)).reshape(C, 1)
    cmask = jnp.stack([mask(off)[None, :] for off in _CONV1_OFFSETS])  # (7,1,S_pad)

    # Batch-block size: large blocks for HBM roofline, but keep >= 2 grid
    # steps when N >= 2 so both v7x TensorCores get work.  (Rows are
    # independent along W, so an additional H-tiling grid axis could expose
    # even more parallelism for tiny N if ever needed.)
    if block_batch is None:
        bytes_per_batch = max(1, C * S * 4)
        cap = max(1, (2 * 1024 * 1024) // bytes_per_batch)
        cap = min(cap, max(1, N // 2)) if N >= 2 else cap
        bblk = 1
        for d in range(1, N + 1):
            if N % d == 0 and d <= cap:
                bblk = d
    else:
        bblk = block_batch
    grid = (N // bblk,)

    kernel = functools.partial(_attention_kernel, S=S, S_pad=S_pad, C=C, bblk=bblk)

    def const(shape):
        return pl.BlockSpec(shape, lambda n, _r=len(shape): (0,) * _r)

    # Advisory cost estimate: 2 pointwise matmuls + one fused 7-tap matmul
    # (~18*C^2*S flops) + depthwise/gate VPU work, erf per element.
    flops = int(2 * N * S_pad * C * (9 * C + 8))
    transcendentals = int(N * C * S_pad)
    bytes_accessed = int(4 * (2 * N * C * S + 11 * C * C + 5 * C * S_pad
                              + 7 * S_pad + 5 * C))

    out = pl.pallas_call(
        kernel,
        out_shape=jax.ShapeDtypeStruct((N, C, S), x2.dtype),
        grid_spec=pltpu.PrefetchScalarGridSpec(
            num_scalar_prefetch=0,
            grid=grid,
            in_specs=[
                # Unpadded (bblk, C, S) batch block; last two dims equal the
                # full array dims so no HBM padding / slicing passes exist.
                pl.BlockSpec((bblk, C, S), lambda n: (n, 0, 0)),
                const((C, C)), const((C, 1)),          # proj_1
                const((5, C, S_pad)), const((C, 1)),   # conv0 multipliers+bias
                const((C, 7 * C)), const((C, 1)),      # fused conv_spatial+conv1
                const((7, 1, S_pad)),                  # conv1 tap lane masks
                const((C, C)), const((C, 1)),          # proj_2
            ],
            out_specs=pl.BlockSpec((bblk, C, S), lambda n: (n, 0, 0)),
            scratch_shapes=[
                pltpu.VMEM((C, S_pad), f32),           # lane-padded staging
                pltpu.VMEM((7 * C, S_pad), f32),       # stacked 7-tap operand
            ]),
        compiler_params=pltpu.CompilerParams(
            dimension_semantics=("parallel",),
            # Working set per step: double-buffered in/out blocks + small
            # weight tables + ~8*C*S_pad scratch; 48 MiB leaves headroom even
            # on v7x's 64 MiB physical VMEM.
            vmem_limit_bytes=48 * 1024 * 1024),
        cost_estimate=pl.CostEstimate(flops=flops,
                                      transcendentals=transcendentals,
                                      bytes_accessed=bytes_accessed),
    )(x2, wp1, bp1, mult0, bdw0, wf_flat, bf, cmask, wp2, bp2)

    return out.reshape(N, C, H, W)


def attention_reference(x_nchw, params):
    """Pure-JAX reference matching the PyTorch module semantics."""
    N, C, H, W = x_nchw.shape
    with jax.default_matmul_precision("highest"):
        x = jnp.transpose(x_nchw, (0, 2, 3, 1)).reshape(N * H, W, C)

        def pw(v, w, b):
            return v @ w.T + b

        def dw(v, w, b, dil, pad):
            K = w.shape[1]
            vp = jnp.pad(v, ((0, 0), (pad, pad), (0, 0)))
            out = jnp.zeros_like(v)
            for k in range(K):
                out = out + vp[:, k * dil:k * dil + v.shape[1], :] * w[:, k]
            return out + b

        h = pw(x, params["wp1"], params["bp1"])
        h = 0.5 * h * (1.0 + jax.scipy.special.erf(h / jnp.sqrt(2.0)))
        a = dw(h, params["dw0"], params["bdw0"], 1, 2)
        a = dw(a, params["dw1"], params["bdw1"], 3, 9)
        a = pw(a, params["wpw"], params["bpw"])
        g = h * a
        y = pw(g, params["wp2"], params["bp2"]) + x
        return jnp.transpose(y.reshape(N, H, W, C), (0, 3, 1, 2))


if __name__ == "__main__":
    N, C, H, W = 2, 32, 12, 16     # x: Tensor shape (d_model, 12, l) per batch
    key = jax.random.PRNGKey(0)
    ks = jax.random.split(key, 11)

    def nrm(k, shape, scale=0.1):
        return scale * jax.random.normal(k, shape, dtype=jnp.float32)

    params = {
        "wp1": nrm(ks[0], (C, C)), "bp1": nrm(ks[1], (C,)),
        "dw0": nrm(ks[2], (C, 5)), "bdw0": nrm(ks[3], (C,)),
        "dw1": nrm(ks[4], (C, 7)), "bdw1": nrm(ks[5], (C,)),
        "wpw": nrm(ks[6], (C, C)), "bpw": nrm(ks[7], (C,)),
        "wp2": nrm(ks[8], (C, C)), "bp2": nrm(ks[9], (C,)),
    }
    x = jax.random.normal(ks[10], (N, C, H, W), dtype=jnp.float32)

    out = attention_forward(x, params)
    out = jax.block_until_ready(out)

    ref = attention_reference(x, params)
    assert out.shape == (N, C, H, W)
    # Tolerance covers MXU fp32 summation-order differences of the fused /
    # stacked tap matmuls vs. the reference's depthwise-then-1x1 ordering.
    max_err = float(jnp.max(jnp.abs(out - ref)))
    assert jnp.allclose(out, ref, atol=2e-3, rtol=2e-3), (
        f"mismatch vs reference (max abs err {max_err})")

    print("KERNEL_OK")
</pallas_src>

<mosaic_0001>
module attributes {stable_mosaic.version = 11 : i64} {
  func.func @_attention_kernel(%arg0: i32, %arg1: memref<1x32x192xf32, #tpu.memory_space<vmem>>, %arg2: memref<32x32xf32, #tpu.memory_space<vmem>>, %arg3: memref<32x1xf32, #tpu.memory_space<vmem>>, %arg4: memref<5x32x256xf32, #tpu.memory_space<vmem>>, %arg5: memref<32x1xf32, #tpu.memory_space<vmem>>, %arg6: memref<32x224xf32, #tpu.memory_space<vmem>>, %arg7: memref<32x1xf32, #tpu.memory_space<vmem>>, %arg8: memref<7x1x256xf32, #tpu.memory_space<vmem>>, %arg9: memref<32x32xf32, #tpu.memory_space<vmem>>, %arg10: memref<32x1xf32, #tpu.memory_space<vmem>>, %arg11: memref<1x32x192xf32, #tpu.memory_space<vmem>>, %arg12: memref<32x256xf32, #tpu.memory_space<vmem>>, %arg13: memref<224x256xf32, #tpu.memory_space<vmem>>) attributes {dimension_semantics = [#tpu.dimension_semantics<parallel>], iteration_bounds = array<i64: 2>, scalar_prefetch = 0 : i64, scratch_operands = 2 : i64, tpu.core_type = #tpu.core_type<tc>, window_params = [{transform_indices = @transform_0, window_bounds = array<i64: 1, 32, 192>}, {pipeline_mode = #tpu.pipeline_mode<synchronous>, transform_indices = @transform_1, window_bounds = array<i64: 32, 32>}, {pipeline_mode = #tpu.pipeline_mode<synchronous>, transform_indices = @transform_2, window_bounds = array<i64: 32, 1>}, {pipeline_mode = #tpu.pipeline_mode<synchronous>, transform_indices = @transform_3, window_bounds = array<i64: 5, 32, 256>}, {pipeline_mode = #tpu.pipeline_mode<synchronous>, transform_indices = @transform_4, window_bounds = array<i64: 32, 1>}, {pipeline_mode = #tpu.pipeline_mode<synchronous>, transform_indices = @transform_5, window_bounds = array<i64: 32, 224>}, {pipeline_mode = #tpu.pipeline_mode<synchronous>, transform_indices = @transform_6, window_bounds = array<i64: 32, 1>}, {pipeline_mode = #tpu.pipeline_mode<synchronous>, transform_indices = @transform_7, window_bounds = array<i64: 7, 1, 256>}, {pipeline_mode = #tpu.pipeline_mode<synchronous>, transform_indices = @transform_8, window_bounds = array<i64: 32, 32>}, {pipeline_mode = #tpu.pipeline_mode<synchronous>, transform_indices = @transform_9, window_bounds = array<i64: 32, 1>}, {transform_indices = @transform_10, window_bounds = array<i64: 1, 32, 192>}]} {
    %cst = arith.constant 0.000000e+00 : f32
    %0 = vector.broadcast %cst : f32 to vector<32x256xf32>
    %c0 = arith.constant 0 : index
    %c0_0 = arith.constant 0 : index
    %1 = vector.load %arg12[%c0, %c0_0] : memref<32x256xf32, #tpu.memory_space<vmem>>, vector<32x256xf32>
    tpu.vector_store %arg12[%c0, %c0_0], %0 {strides = array<i32>} : memref<32x256xf32, #tpu.memory_space<vmem>>, vector<32x256xf32>,
    %c0_i32 = arith.constant 0 : i32
    %2 = arith.index_cast %c0_i32 : i32 to index
    %c0_1 = arith.constant 0 : index
    %c0_2 = arith.constant 0 : index
    %3 = vector.load %arg1[%2, %c0_1, %c0_2] : memref<1x32x192xf32, #tpu.memory_space<vmem>>, vector<1x32x192xf32>
    %4 = vector.shape_cast %3 : vector<1x32x192xf32> to vector<32x192xf32>
    %c0_3 = arith.constant 0 : index
    %c0_4 = arith.constant 0 : index
    %5 = vector.load %arg12[%c0_3, %c0_4] : memref<32x256xf32, #tpu.memory_space<vmem>>, vector<32x192xf32>
    tpu.vector_store %arg12[%c0_3, %c0_4], %4 {strides = array<i32>} : memref<32x256xf32, #tpu.memory_space<vmem>>, vector<32x192xf32>,
    %c0_5 = arith.constant 0 : index
    %c0_6 = arith.constant 0 : index
    %6 = vector.load %arg12[%c0_5, %c0_6] : memref<32x256xf32, #tpu.memory_space<vmem>>, vector<32x256xf32>
    %c0_7 = arith.constant 0 : index
    %c0_8 = arith.constant 0 : index
    %7 = vector.load %arg2[%c0_7, %c0_8] : memref<32x32xf32, #tpu.memory_space<vmem>>, vector<32x32xf32>
    %cst_9 = arith.constant dense<0.000000e+00> : vector<32x256xf32>
    %8 = tpu.matmul %7, %6, %cst_9 {dimension_numbers = #tpu.dot_dimension_numbers<[1], [0], [0], [1], [0, 0, 1, 1], [], []>, precision = #tpu.contract_precision<fp32>} : vector<32x32xf32>, vector<32x256xf32>, vector<32x256xf32> -> vector<32x256xf32>
    %c0_10 = arith.constant 0 : index
    %c0_11 = arith.constant 0 : index
    %9 = vector.load %arg3[%c0_10, %c0_11] : memref<32x1xf32, #tpu.memory_space<vmem>>, vector<32x1xf32>
    %10 = vector.broadcast %9 : vector<32x1xf32> to vector<32x256xf32>
    %11 = arith.addf %8, %10 : vector<32x256xf32>
    %cst_12 = arith.constant 5.000000e-01 : f32
    %12 = vector.broadcast %cst_12 : f32 to vector<32x256xf32>
    %13 = arith.mulf %12, %11 : vector<32x256xf32>
    %cst_13 = arith.constant 0.707106769 : f32
    %14 = vector.broadcast %cst_13 : f32 to vector<32x256xf32>
    %15 = arith.mulf %11, %14 : vector<32x256xf32>
    %16 = math.erf %15 : vector<32x256xf32>
    %cst_14 = arith.constant 1.000000e+00 : f32
    %17 = vector.broadcast %cst_14 : f32 to vector<32x256xf32>
    %18 = arith.addf %17, %16 : vector<32x256xf32>
    %19 = arith.mulf %13, %18 : vector<32x256xf32>
    %c2_i32 = arith.constant 2 : i32
    %20 = tpu.dynamic_rotate %19 by %c2_i32 dim 1 : vector<32x256xf32>, i32 -> vector<32x256xf32>
    %c0_15 = arith.constant 0 : index
    %c0_16 = arith.constant 0 : index
    %c0_17 = arith.constant 0 : index
    %21 = vector.load %arg4[%c0_15, %c0_16, %c0_17] : memref<5x32x256xf32, #tpu.memory_space<vmem>>, vector<1x32x256xf32>
    %22 = vector.shape_cast %21 : vector<1x32x256xf32> to vector<32x256xf32>
    %23 = arith.mulf %22, %20 : vector<32x256xf32>
    %c1_i32 = arith.constant 1 : i32
    %24 = tpu.dynamic_rotate %19 by %c1_i32 dim 1 : vector<32x256xf32>, i32 -> vector<32x256xf32>
    %c1 = arith.constant 1 : index
    %c0_18 = arith.constant 0 : index
    %c0_19 = arith.constant 0 : index
    %25 = vector.load %arg4[%c1, %c0_18, %c0_19] : memref<5x32x256xf32, #tpu.memory_space<vmem>>, vector<1x32x256xf32>
    %26 = vector.shape_cast %25 : vector<1x32x256xf32> to vector<32x256xf32>
    %27 = arith.mulf %26, %24 : vector<32x256xf32>
    %28 = arith.addf %23, %27 : vector<32x256xf32>
    %c2 = arith.constant 2 : index
    %c0_20 = arith.constant 0 : index
    %c0_21 = arith.constant 0 : index
    %29 = vector.load %arg4[%c2, %c0_20, %c0_21] : memref<5x32x256xf32, #tpu.memory_space<vmem>>, vector<1x32x256xf32>
    %30 = vector.shape_cast %29 : vector<1x32x256xf32> to vector<32x256xf32>
    %31 = arith.mulf %30, %19 : vector<32x256xf32>
    %32 = arith.addf %28, %31 : vector<32x256xf32>
    %c255_i32 = arith.constant 255 : i32
    %33 = tpu.dynamic_rotate %19 by %c255_i32 dim 1 : vector<32x256xf32>, i32 -> vector<32x256xf32>
    %c3 = arith.constant 3 : index
    %c0_22 = arith.constant 0 : index
    %c0_23 = arith.constant 0 : index
    %34 = vector.load %arg4[%c3, %c0_22, %c0_23] : memref<5x32x256xf32, #tpu.memory_space<vmem>>, vector<1x32x256xf32>
    %35 = vector.shape_cast %34 : vector<1x32x256xf32> to vector<32x256xf32>
    %36 = arith.mulf %35, %33 : vector<32x256xf32>
    %37 = arith.addf %32, %36 : vector<32x256xf32>
    %c254_i32 = arith.constant 254 : i32
    %38 = tpu.dynamic_rotate %19 by %c254_i32 dim 1 : vector<32x256xf32>, i32 -> vector<32x256xf32>
    %c4 = arith.constant 4 : index
    %c0_24 = arith.constant 0 : index
    %c0_25 = arith.constant 0 : index
    %39 = vector.load %arg4[%c4, %c0_24, %c0_25] : memref<5x32x256xf32, #tpu.memory_space<vmem>>, vector<1x32x256xf32>
    %40 = vector.shape_cast %39 : vector<1x32x256xf32> to vector<32x256xf32>
    %41 = arith.mulf %40, %38 : vector<32x256xf32>
    %42 = arith.addf %37, %41 : vector<32x256xf32>
    %c0_26 = arith.constant 0 : index
    %c0_27 = arith.constant 0 : index
    %43 = vector.load %arg5[%c0_26, %c0_27] : memref<32x1xf32, #tpu.memory_space<vmem>>, vector<32x1xf32>
    %44 = vector.broadcast %43 : vector<32x1xf32> to vector<32x256xf32>
    %45 = arith.addf %42, %44 : vector<32x256xf32>
    %c9_i32 = arith.constant 9 : i32
    %46 = tpu.dynamic_rotate %45 by %c9_i32 dim 1 : vector<32x256xf32>, i32 -> vector<32x256xf32>
    %c0_28 = arith.constant 0 : index
    %c0_29 = arith.constant 0 : index
    %c0_30 = arith.constant 0 : index
    %47 = vector.load %arg8[%c0_28, %c0_29, %c0_30] : memref<7x1x256xf32, #tpu.memory_space<vmem>>, vector<1x1x256xf32>
    %48 = vector.shape_cast %47 : vector<1x1x256xf32> to vector<1x256xf32>
    %49 = vector.broadcast %48 : vector<1x256xf32> to vector<32x256xf32>
    %50 = arith.mulf %49, %46 : vector<32x256xf32>
    %c0_31 = arith.constant 0 : index
    %c0_32 = arith.constant 0 : index
    %51 = vector.load %arg13[%c0_31, %c0_32] : memref<224x256xf32, #tpu.memory_space<vmem>>, vector<32x256xf32>
    tpu.vector_store %arg13[%c0_31, %c0_32], %50 {strides = array<i32>} : memref<224x256xf32, #tpu.memory_space<vmem>>, vector<32x256xf32>,
    %c6_i32 = arith.constant 6 : i32
    %52 = tpu.dynamic_rotate %45 by %c6_i32 dim 1 : vector<32x256xf32>, i32 -> vector<32x256xf32>
    %c1_33 = arith.constant 1 : index
    %c0_34 = arith.constant 0 : index
    %c0_35 = arith.constant 0 : index
    %53 = vector.load %arg8[%c1_33, %c0_34, %c0_35] : memref<7x1x256xf32, #tpu.memory_space<vmem>>, vector<1x1x256xf32>
    %54 = vector.shape_cast %53 : vector<1x1x256xf32> to vector<1x256xf32>
    %55 = vector.broadcast %54 : vector<1x256xf32> to vector<32x256xf32>
    %56 = arith.mulf %55, %52 : vector<32x256xf32>
    %c32 = arith.constant 32 : index
    %c0_36 = arith.constant 0 : index
    %57 = vector.load %arg13[%c32, %c0_36] : memref<224x256xf32, #tpu.memory_space<vmem>>, vector<32x256xf32>
    tpu.vector_store %arg13[%c32, %c0_36], %56 {strides = array<i32>} : memref<224x256xf32, #tpu.memory_space<vmem>>, vector<32x256xf32>,
    %c3_i32 = arith.constant 3 : i32
    %58 = tpu.dynamic_rotate %45 by %c3_i32 dim 1 : vector<32x256xf32>, i32 -> vector<32x256xf32>
    %c2_37 = arith.constant 2 : index
    %c0_38 = arith.constant 0 : index
    %c0_39 = arith.constant 0 : index
    %59 = vector.load %arg8[%c2_37, %c0_38, %c0_39] : memref<7x1x256xf32, #tpu.memory_space<vmem>>, vector<1x1x256xf32>
    %60 = vector.shape_cast %59 : vector<1x1x256xf32> to vector<1x256xf32>
    %61 = vector.broadcast %60 : vector<1x256xf32> to vector<32x256xf32>
    %62 = arith.mulf %61, %58 : vector<32x256xf32>
    %c64 = arith.constant 64 : index
    %c0_40 = arith.constant 0 : index
    %63 = vector.load %arg13[%c64, %c0_40] : memref<224x256xf32, #tpu.memory_space<vmem>>, vector<32x256xf32>
    tpu.vector_store %arg13[%c64, %c0_40], %62 {strides = array<i32>} : memref<224x256xf32, #tpu.memory_space<vmem>>, vector<32x256xf32>,
    %c96 = arith.constant 96 : index
    %c0_41 = arith.constant 0 : index
    %64 = vector.load %arg13[%c96, %c0_41] : memref<224x256xf32, #tpu.memory_space<vmem>>, vector<32x256xf32>
    tpu.vector_store %arg13[%c96, %c0_41], %45 {strides = array<i32>} : memref<224x256xf32, #tpu.memory_space<vmem>>, vector<32x256xf32>,
    %c253_i32 = arith.constant 253 : i32
    %65 = tpu.dynamic_rotate %45 by %c253_i32 dim 1 : vector<32x256xf32>, i32 -> vector<32x256xf32>
    %c4_42 = arith.constant 4 : index
    %c0_43 = arith.constant 0 : index
    %c0_44 = arith.constant 0 : index
    %66 = vector.load %arg8[%c4_42, %c0_43, %c0_44] : memref<7x1x256xf32, #tpu.memory_space<vmem>>, vector<1x1x256xf32>
    %67 = vector.shape_cast %66 : vector<1x1x256xf32> to vector<1x256xf32>
    %68 = vector.broadcast %67 : vector<1x256xf32> to vector<32x256xf32>
    %69 = arith.mulf %68, %65 : vector<32x256xf32>
    %c128 = arith.constant 128 : index
    %c0_45 = arith.constant 0 : index
    %70 = vector.load %arg13[%c128, %c0_45] : memref<224x256xf32, #tpu.memory_space<vmem>>, vector<32x256xf32>
    tpu.vector_store %arg13[%c128, %c0_45], %69 {strides = array<i32>} : memref<224x256xf32, #tpu.memory_space<vmem>>, vector<32x256xf32>,
    %c250_i32 = arith.constant 250 : i32
    %71 = tpu.dynamic_rotate %45 by %c250_i32 dim 1 : vector<32x256xf32>, i32 -> vector<32x256xf32>
    %c5 = arith.constant 5 : index
    %c0_46 = arith.constant 0 : index
    %c0_47 = arith.constant 0 : index
    %72 = vector.load %arg8[%c5, %c0_46, %c0_47] : memref<7x1x256xf32, #tpu.memory_space<vmem>>, vector<1x1x256xf32>
    %73 = vector.shape_cast %72 : vector<1x1x256xf32> to vector<1x256xf32>
    %74 = vector.broadcast %73 : vector<1x256xf32> to vector<32x256xf32>
    %75 = arith.mulf %74, %71 : vector<32x256xf32>
    %c160 = arith.constant 160 : index
    %c0_48 = arith.constant 0 : index
    %76 = vector.load %arg13[%c160, %c0_48] : memref<224x256xf32, #tpu.memory_space<vmem>>, vector<32x256xf32>
    tpu.vector_store %arg13[%c160, %c0_48], %75 {strides = array<i32>} : memref<224x256xf32, #tpu.memory_space<vmem>>, vector<32x256xf32>,
    %c247_i32 = arith.constant 247 : i32
    %77 = tpu.dynamic_rotate %45 by %c247_i32 dim 1 : vector<32x256xf32>, i32 -> vector<32x256xf32>
    %c6 = arith.constant 6 : index
    %c0_49 = arith.constant 0 : index
    %c0_50 = arith.constant 0 : index
    %78 = vector.load %arg8[%c6, %c0_49, %c0_50] : memref<7x1x256xf32, #tpu.memory_space<vmem>>, vector<1x1x256xf32>
    %79 = vector.shape_cast %78 : vector<1x1x256xf32> to vector<1x256xf32>
    %80 = vector.broadcast %79 : vector<1x256xf32> to vector<32x256xf32>
    %81 = arith.mulf %80, %77 : vector<32x256xf32>
    %c192 = arith.constant 192 : index
    %c0_51 = arith.constant 0 : index
    %82 = vector.load %arg13[%c192, %c0_51] : memref<224x256xf32, #tpu.memory_space<vmem>>, vector<32x256xf32>
    tpu.vector_store %arg13[%c192, %c0_51], %81 {strides = array<i32>} : memref<224x256xf32, #tpu.memory_space<vmem>>, vector<32x256xf32>,
    %c0_52 = arith.constant 0 : index
    %c0_53 = arith.constant 0 : index
    %83 = vector.load %arg6[%c0_52, %c0_53] : memref<32x224xf32, #tpu.memory_space<vmem>>, vector<32x224xf32>
    %c0_54 = arith.constant 0 : index
    %c0_55 = arith.constant 0 : index
    %84 = vector.load %arg13[%c0_54, %c0_55] : memref<224x256xf32, #tpu.memory_space<vmem>>, vector<224x256xf32>
    %cst_56 = arith.constant dense<0.000000e+00> : vector<32x256xf32>
    %85 = tpu.matmul %83, %84, %cst_56 {dimension_numbers = #tpu.dot_dimension_numbers<[1], [0], [0], [1], [0, 0, 1, 1], [], []>, precision = #tpu.contract_precision<fp32>} : vector<32x224xf32>, vector<224x256xf32>, vector<32x256xf32> -> vector<32x256xf32>
    %c0_57 = arith.constant 0 : index
    %c0_58 = arith.constant 0 : index
    %86 = vector.load %arg7[%c0_57, %c0_58] : memref<32x1xf32, #tpu.memory_space<vmem>>, vector<32x1xf32>
    %87 = vector.broadcast %86 : vector<32x1xf32> to vector<32x256xf32>
    %88 = arith.addf %85, %87 : vector<32x256xf32>
    %89 = arith.mulf %19, %88 : vector<32x256xf32>
    %c0_59 = arith.constant 0 : index
    %c0_60 = arith.constant 0 : index
    %90 = vector.load %arg9[%c0_59, %c0_60] : memref<32x32xf32, #tpu.memory_space<vmem>>, vector<32x32xf32>
    %cst_61 = arith.constant dense<0.000000e+00> : vector<32x256xf32>
    %91 = tpu.matmul %90, %89, %cst_61 {dimension_numbers = #tpu.dot_dimension_numbers<[1], [0], [0], [1], [0, 0, 1, 1], [], []>, precision = #tpu.contract_precision<fp32>} : vector<32x32xf32>, vector<32x256xf32>, vector<32x256xf32> -> vector<32x256xf32>
    %c0_62 = arith.constant 0 : index
    %c0_63 = arith.constant 0 : index
    %92 = vector.load %arg10[%c0_62, %c0_63] : memref<32x1xf32, #tpu.memory_space<vmem>>, vector<32x1xf32>
    %93 = vector.broadcast %92 : vector<32x1xf32> to vector<32x256xf32>
    %94 = arith.addf %91, %93 : vector<32x256xf32>
    %95 = vector.extract_strided_slice %94 {offsets = [0, 0], sizes = [32, 192], strides = [1, 1]} : vector<32x256xf32> to vector<32x192xf32>
    %96 = arith.index_cast %c0_i32 : i32 to index
    %c0_64 = arith.constant 0 : index
    %c0_65 = arith.constant 0 : index
    %97 = vector.load %arg1[%96, %c0_64, %c0_65] : memref<1x32x192xf32, #tpu.memory_space<vmem>>, vector<1x32x192xf32>
    %98 = vector.shape_cast %97 : vector<1x32x192xf32> to vector<32x192xf32>
    %99 = arith.addf %95, %98 : vector<32x192xf32>
    %100 = arith.index_cast %c0_i32 : i32 to index
    %c0_66 = arith.constant 0 : index
    %c0_67 = arith.constant 0 : index
    %101 = vector.load %arg11[%100, %c0_66, %c0_67] : memref<1x32x192xf32, #tpu.memory_space<vmem>>, vector<1x32x192xf32>
    %102 = vector.shape_cast %101 : vector<1x32x192xf32> to vector<32x192xf32>
    %103 = vector.shape_cast %99 : vector<32x192xf32> to vector<1x32x192xf32>
    tpu.vector_store %arg11[%100, %c0_66, %c0_67], %103 {strides = array<i32>} : memref<1x32x192xf32, #tpu.memory_space<vmem>>, vector<1x32x192xf32>,
    %c1_i32_68 = arith.constant 1 : i32
    return
  }
  func.func @transform_0(%arg0: i32) -> (i32, i32, i32) {
    %c0_i32 = arith.constant 0 : i32
    %c0_i32_0 = arith.constant 0 : i32
    %c0_i32_1 = arith.constant 0 : i32
    return %arg0, %c0_i32, %c0_i32_0 : i32, i32, i32
  }
  func.func @transform_1(%arg0: i32) -> (i32, i32) {
    %c0_i32 = arith.constant 0 : i32
    %c0_i32_0 = arith.constant 0 : i32
    %c0_i32_1 = arith.constant 0 : i32
    return %c0_i32, %c0_i32_0 : i32, i32
  }
  func.func @transform_2(%arg0: i32) -> (i32, i32) {
    %c0_i32 = arith.constant 0 : i32
    %c0_i32_0 = arith.constant 0 : i32
    %c0_i32_1 = arith.constant 0 : i32
    return %c0_i32, %c0_i32_0 : i32, i32
  }
  func.func @transform_3(%arg0: i32) -> (i32, i32, i32) {
    %c0_i32 = arith.constant 0 : i32
    %c0_i32_0 = arith.constant 0 : i32
    %c0_i32_1 = arith.constant 0 : i32
    %c0_i32_2 = arith.constant 0 : i32
    return %c0_i32, %c0_i32_0, %c0_i32_1 : i32, i32, i32
  }
  func.func @transform_4(%arg0: i32) -> (i32, i32) {
    %c0_i32 = arith.constant 0 : i32
    %c0_i32_0 = arith.constant 0 : i32
    %c0_i32_1 = arith.constant 0 : i32
    return %c0_i32, %c0_i32_0 : i32, i32
  }
  func.func @transform_5(%arg0: i32) -> (i32, i32) {
    %c0_i32 = arith.constant 0 : i32
    %c0_i32_0 = arith.constant 0 : i32
    %c0_i32_1 = arith.constant 0 : i32
    return %c0_i32, %c0_i32_0 : i32, i32
  }
  func.func @transform_6(%arg0: i32) -> (i32, i32) {
    %c0_i32 = arith.constant 0 : i32
    %c0_i32_0 = arith.constant 0 : i32
    %c0_i32_1 = arith.constant 0 : i32
    return %c0_i32, %c0_i32_0 : i32, i32
  }
  func.func @transform_7(%arg0: i32) -> (i32, i32, i32) {
    %c0_i32 = arith.constant 0 : i32
    %c0_i32_0 = arith.constant 0 : i32
    %c0_i32_1 = arith.constant 0 : i32
    %c0_i32_2 = arith.constant 0 : i32
    return %c0_i32, %c0_i32_0, %c0_i32_1 : i32, i32, i32
  }
  func.func @transform_8(%arg0: i32) -> (i32, i32) {
    %c0_i32 = arith.constant 0 : i32
    %c0_i32_0 = arith.constant 0 : i32
    %c0_i32_1 = arith.constant 0 : i32
    return %c0_i32, %c0_i32_0 : i32, i32
  }
  func.func @transform_9(%arg0: i32) -> (i32, i32) {
    %c0_i32 = arith.constant 0 : i32
    %c0_i32_0 = arith.constant 0 : i32
    %c0_i32_1 = arith.constant 0 : i32
    return %c0_i32, %c0_i32_0 : i32, i32
  }
  func.func @transform_10(%arg0: i32) -> (i32, i32, i32) {
    %c0_i32 = arith.constant 0 : i32
    %c0_i32_0 = arith.constant 0 : i32
    %c0_i32_1 = arith.constant 0 : i32
    return %arg0, %c0_i32, %c0_i32_0 : i32, i32, i32
  }
}

</mosaic_0001>

<llo_original>
// kernel: tpu_custom_call.1
$region0: #{tpu_custom_call.1}
  #allocation0 [shape = 'u32[]', space=smem, size = 0x4, offset = 0x4, fixed_abs, tag = 'smem constant byte address 0x4 - core index']
  #allocation1 [shape = 'u32[144,128]{1,0:T(1,128)}', space=vmem, size = 0x12000, scoped, tag = 'internal scratch']
  #allocation2 [shape = 'f32[32,256]{1,0:T(8,128)}', space=vmem, size = 0x8000, scoped, tag = 'scratch operand']
  #allocation3 [shape = 'f32[224,256]{1,0:T(8,128)}', space=vmem, size = 0x38000, scoped, tag = 'scratch operand']
  %s0 = inlined_call_operand.vmem [shape: f32[2,32,192], index: 0, kind: input, shape index: {}]
  %s1 = inlined_call_operand.hbm [shape: f32[32,32], index: 1, kind: input, shape index: {}]
  %s2 = inlined_call_operand.vmem [shape: f32[32,1], index: 2, kind: input, shape index: {}]
  %s3 = inlined_call_operand.hbm [shape: f32[5,32,256], index: 3, kind: input, shape index: {}]
  %s4 = inlined_call_operand.vmem [shape: f32[32,1], index: 4, kind: input, shape index: {}]
  %s5 = inlined_call_operand.hbm [shape: f32[32,224], index: 5, kind: input, shape index: {}]
  %s6 = inlined_call_operand.vmem [shape: f32[32,1], index: 6, kind: input, shape index: {}]
  %s7 = inlined_call_operand.hbm [shape: f32[7,1,256], index: 7, kind: input, shape index: {}]
  %s8 = inlined_call_operand.vmem [shape: f32[32,32], index: 8, kind: input, shape index: {}]
  %s9 = inlined_call_operand.vmem [shape: f32[32,1], index: 9, kind: input, shape index: {}]
  %s10 = inlined_call_operand.hbm [shape: f32[2,32,192], index: 10, kind: output, shape index: {}]
  %s11 = sld [smem:[#allocation0]]
  $region89: #{tpu_custom_call.1} parent=0
    _
  %s13 = ssub.s32 1, %s11
  %s14 = scalar_select 0, %s13, %s11
  $region1: #{tpu_custom_call.1} parent=0
    #allocation4 [shape = 'u8[16384]{0}', space=vmem, size = 0x4000, scoped, tag = 'input window, operand 1, single buffered']
    #allocation5 [shape = 's32[2]{0}', space=sflag, size = 0x8, scoped, tag = 'scoped memory for tpu_custom_call.1']
    #allocation6 [shape = 's32[2]{0}', space=sflag, size = 0x8, scoped, tag = 'scoped memory for tpu_custom_call.1']
    #allocation7 [shape = 'u8[163840]{0}', space=vmem, size = 0x28000, scoped, tag = 'input window, operand 3, single buffered']
    #allocation8 [shape = 's32[1]{0}', space=sflag, size = 0x4, scoped, tag = 'scoped memory for tpu_custom_call.1']
    #allocation9 [shape = 'u8[32768]{0}', space=vmem, size = 0x8000, scoped, tag = 'input window, operand 5, single buffered']
    #allocation10 [shape = 'u8[7168]{0}', space=vmem, size = 0x1c00, scoped, tag = 'input window, operand 7, single buffered']
    #allocation11 [shape = 's32[1]{0}', space=sflag, size = 0x4, scoped, tag = 'scoped memory for tpu_custom_call.1']
    #allocation12 [shape = 'u8[65536]{0}', space=vmem, size = 0x10000, scoped, tag = 'output window, operand 0']
    %15 = vsyncpa [#allocation5], 0
    %16 = vsyncpa [#allocation8], 0
    %17 = vsyncpa [#allocation11], 0
    %18 = vsyncpa [#allocation6], 0
    %s19 = scalar_lea.sflag [#allocation6], 1
    %20 = vsyncpa %s19, 0
    loop: start=0, step=1, limit=4
    $region2: #{tpu_custom_call.1} parent=1 // loop_pre_header
      _
    $region3: #{tpu_custom_call.1} parent=1 // loop_header
      %s22 = sphi 0, %s26
      %p23 = scmp.ge.s32.totalorder %s22, 4
      %s32 = sphi 0, %s34
      %s35 = sphi 0, %s32
      %s36 = sphi 0, %s35
      %s52 = sphi 0, %s36
      %s56 = sphi 0, %s56
      %s58 = sphi 0, %s56
      %s59 = sphi 0, %s58
      %s73 = sphi 0, %s59
      %s77 = sphi 0, %s77
      %s79 = sphi 0, %s77
      %s80 = sphi 0, %s79
      %s94 = sphi 0, %s80
      %s98 = sphi 0, %s98
      %s100 = sphi 0, %s98
      %s101 = sphi 0, %s100
      %s115 = sphi 0, %s101
      %s119 = sphi 0, %s119
      %s121 = sphi 0, %s119
      %s122 = sphi 0, %s121
      %s136 = sphi 0, %s122
      %s140 = sphi 0, %s140
      %s142 = sphi 0, %s140
      %s143 = sphi 0, %s142
      %s157 = sphi 0, %s143
      %s161 = sphi 0, %s161
      %s163 = sphi 0, %s161
      %s164 = sphi 0, %s163
      %s178 = sphi 0, %s164
      %s182 = sphi 0, %s182
      %s184 = sphi 0, %s182
      %s185 = sphi 0, %s184
      %s199 = sphi 0, %s185
      %s203 = sphi 0, %s203
      %s205 = sphi 0, %s203
      %s206 = sphi 0, %s205
      %s220 = sphi 0, %s206
      %s224 = sphi 0, %s224
      %s226 = sphi 0, %s224
      %s227 = sphi 0, %s226
      %s241 = sphi 0, %s227
      %s247 = sphi 0, %s249
      %s250 = sphi 0, %s247
      %s251 = sphi 0, %s250
      %s267 = sphi 0, %s251
    $region4: #{tpu_custom_call.1} parent=1 // loop_header_branch
      %25 = sbr.rel (%p23) target = $region8
    $region5: #{tpu_custom_call.1} parent=1 // loop_body
      %s27 = ssub.s32 %s22, 1
      %s28 = ssub.s32 %s22, 2
      %s29 = sadd.s32 %s22, 1
      %s30 = ssub.s32 %s22, %s29
      %p31 = scmp.eq.s32.totalorder %s30, 0
      %s33 = sadd.s32 %s32, 1
      %s34 = scalar_select %p31, %s32, %s33
      %p37 = pneg %p31
      %p38 = scmp.eq.s32.totalorder %s22, 1
      %p39 = por %p37, %p38
      %p40 = scmp.ne.s32.totalorder %s32, %s35
      %p41 = scmp.eq.s32.totalorder %s22, 0
      %p42 = por %p40, %p41
      %p43 = scmp.ne.s32.totalorder %s32, %s35
      %p44 = scmp.eq.s32.totalorder %s27, 1
      %p45 = por %p43, %p44
      %p46 = scmp.ne.s32.totalorder %s35, %s36
      %p47 = scmp.eq.s32.totalorder %s27, 0
      %p48 = por %p46, %p47
      %p49 = scmp.ne.s32.totalorder %s35, %s36
      %p50 = scmp.eq.s32.totalorder %s28, 1
      %p51 = por %p49, %p50
      %p53 = scmp.ne.s32.totalorder %s36, %s52
      %p54 = scmp.eq.s32.totalorder %s28, 0
      %p55 = por %p53, %p54
      %s57 = sadd.s32 %s56, 1
      %p60 = scmp.eq.s32.totalorder %s22, 1
      %p61 = scmp.ne.s32.totalorder %s56, %s58
      %p62 = scmp.eq.s32.totalorder %s22, 0
      %p63 = por %p61, %p62
      %p64 = scmp.ne.s32.totalorder %s56, %s58
      %p65 = scmp.eq.s32.totalorder %s27, 1
      %p66 = por %p64, %p65
      %p67 = scmp.ne.s32.totalorder %s58, %s59
      %p68 = scmp.eq.s32.totalorder %s27, 0
      %p69 = por %p67, %p68
      %p70 = scmp.ne.s32.totalorder %s58, %s59
      %p71 = scmp.eq.s32.totalorder %s28, 1
      %p72 = por %p70, %p71
      %p74 = scmp.ne.s32.totalorder %s59, %s73
      %p75 = scmp.eq.s32.totalorder %s28, 0
      %p76 = por %p74, %p75
      %s78 = sadd.s32 %s77, 1
      %p81 = scmp.eq.s32.totalorder %s22, 1
      %p82 = scmp.ne.s32.totalorder %s77, %s79
      %p83 = scmp.eq.s32.totalorder %s22, 0
      %p84 = por %p82, %p83
      %p85 = scmp.ne.s32.totalorder %s77, %s79
      %p86 = scmp.eq.s32.totalorder %s27, 1
      %p87 = por %p85, %p86
      %p88 = scmp.ne.s32.totalorder %s79, %s80
      %p89 = scmp.eq.s32.totalorder %s27, 0
      %p90 = por %p88, %p89
      %p91 = scmp.ne.s32.totalorder %s79, %s80
      %p92 = scmp.eq.s32.totalorder %s28, 1
      %p93 = por %p91, %p92
      %p95 = scmp.ne.s32.totalorder %s80, %s94
      %p96 = scmp.eq.s32.totalorder %s28, 0
      %p97 = por %p95, %p96
      %s99 = sadd.s32 %s98, 1
      %p102 = scmp.eq.s32.totalorder %s22, 1
      %p103 = scmp.ne.s32.totalorder %s98, %s100
      %p104 = scmp.eq.s32.totalorder %s22, 0
      %p105 = por %p103, %p104
      %p106 = scmp.ne.s32.totalorder %s98, %s100
      %p107 = scmp.eq.s32.totalorder %s27, 1
      %p108 = por %p106, %p107
      %p109 = scmp.ne.s32.totalorder %s100, %s101
      %p110 = scmp.eq.s32.totalorder %s27, 0
      %p111 = por %p109, %p110
      %p112 = scmp.ne.s32.totalorder %s100, %s101
      %p113 = scmp.eq.s32.totalorder %s28, 1
      %p114 = por %p112, %p113
      %p116 = scmp.ne.s32.totalorder %s101, %s115
      %p117 = scmp.eq.s32.totalorder %s28, 0
      %p118 = por %p116, %p117
      %s120 = sadd.s32 %s119, 1
      %p123 = scmp.eq.s32.totalorder %s22, 1
      %p124 = scmp.ne.s32.totalorder %s119, %s121
      %p125 = scmp.eq.s32.totalorder %s22, 0
      %p126 = por %p124, %p125
      %p127 = scmp.ne.s32.totalorder %s119, %s121
      %p128 = scmp.eq.s32.totalorder %s27, 1
      %p129 = por %p127, %p128
      %p130 = scmp.ne.s32.totalorder %s121, %s122
      %p131 = scmp.eq.s32.totalorder %s27, 0
      %p132 = por %p130, %p131
      %p133 = scmp.ne.s32.totalorder %s121, %s122
      %p134 = scmp.eq.s32.totalorder %s28, 1
      %p135 = por %p133, %p134
      %p137 = scmp.ne.s32.totalorder %s122, %s136
      %p138 = scmp.eq.s32.totalorder %s28, 0
      %p139 = por %p137, %p138
      %s141 = sadd.s32 %s140, 1
      %p144 = scmp.eq.s32.totalorder %s22, 1
      %p145 = scmp.ne.s32.totalorder %s140, %s142
      %p146 = scmp.eq.s32.totalorder %s22, 0
      %p147 = por %p145, %p146
      %p148 = scmp.ne.s32.totalorder %s140, %s142
      %p149 = scmp.eq.s32.totalorder %s27, 1
      %p150 = por %p148, %p149
      %p151 = scmp.ne.s32.totalorder %s142, %s143
      %p152 = scmp.eq.s32.totalorder %s27, 0
      %p153 = por %p151, %p152
      %p154 = scmp.ne.s32.totalorder %s142, %s143
      %p155 = scmp.eq.s32.totalorder %s28, 1
      %p156 = por %p154, %p155
      %p158 = scmp.ne.s32.totalorder %s143, %s157
      %p159 = scmp.eq.s32.totalorder %s28, 0
      %p160 = por %p158, %p159
      %s162 = sadd.s32 %s161, 1
      %p165 = scmp.eq.s32.totalorder %s22, 1
      %p166 = scmp.ne.s32.totalorder %s161, %s163
      %p167 = scmp.eq.s32.totalorder %s22, 0
      %p168 = por %p166, %p167
      %p169 = scmp.ne.s32.totalorder %s161, %s163
      %p170 = scmp.eq.s32.totalorder %s27, 1
      %p171 = por %p169, %p170
      %p172 = scmp.ne.s32.totalorder %s163, %s164
      %p173 = scmp.eq.s32.totalorder %s27, 0
      %p174 = por %p172, %p173
      %p175 = scmp.ne.s32.totalorder %s163, %s164
      %p176 = scmp.eq.s32.totalorder %s28, 1
      %p177 = por %p175, %p176
      %p179 = scmp.ne.s32.totalorder %s164, %s178
      %p180 = scmp.eq.s32.totalorder %s28, 0
      %p181 = por %p179, %p180
      %s183 = sadd.s32 %s182, 1
      %p186 = scmp.eq.s32.totalorder %s22, 1
      %p187 = scmp.ne.s32.totalorder %s182, %s184
      %p188 = scmp.eq.s32.totalorder %s22, 0
      %p189 = por %p187, %p188
      %p190 = scmp.ne.s32.totalorder %s182, %s184
      %p191 = scmp.eq.s32.totalorder %s27, 1
      %p192 = por %p190, %p191
      %p193 = scmp.ne.s32.totalorder %s184, %s185
      %p194 = scmp.eq.s32.totalorder %s27, 0
      %p195 = por %p193, %p194
      %p196 = scmp.ne.s32.totalorder %s184, %s185
      %p197 = scmp.eq.s32.totalorder %s28, 1
      %p198 = por %p196, %p197
      %p200 = scmp.ne.s32.totalorder %s185, %s199
      %p201 = scmp.eq.s32.totalorder %s28, 0
      %p202 = por %p200, %p201
      %s204 = sadd.s32 %s203, 1
      %p207 = scmp.eq.s32.totalorder %s22, 1
      %p208 = scmp.ne.s32.totalorder %s203, %s205
      %p209 = scmp.eq.s32.totalorder %s22, 0
      %p210 = por %p208, %p209
      %p211 = scmp.ne.s32.totalorder %s203, %s205
      %p212 = scmp.eq.s32.totalorder %s27, 1
      %p213 = por %p211, %p212
      %p214 = scmp.ne.s32.totalorder %s205, %s206
      %p215 = scmp.eq.s32.totalorder %s27, 0
      %p216 = por %p214, %p215
      %p217 = scmp.ne.s32.totalorder %s205, %s206
      %p218 = scmp.eq.s32.totalorder %s28, 1
      %p219 = por %p217, %p218
      %p221 = scmp.ne.s32.totalorder %s206, %s220
      %p222 = scmp.eq.s32.totalorder %s28, 0
      %p223 = por %p221, %p222
      %s225 = sadd.s32 %s224, 1
      %p228 = scmp.eq.s32.totalorder %s22, 1
      %p229 = scmp.ne.s32.totalorder %s224, %s226
      %p230 = scmp.eq.s32.totalorder %s22, 0
      %p231 = por %p229, %p230
      %p232 = scmp.ne.s32.totalorder %s224, %s226
      %p233 = scmp.eq.s32.totalorder %s27, 1
      %p234 = por %p232, %p233
      %p235 = scmp.ne.s32.totalorder %s226, %s227
      %p236 = scmp.eq.s32.totalorder %s27, 0
      %p237 = por %p235, %p236
      %p238 = scmp.ne.s32.totalorder %s226, %s227
      %p239 = scmp.eq.s32.totalorder %s28, 1
      %p240 = por %p238, %p239
      %p242 = scmp.ne.s32.totalorder %s227, %s241
      %p243 = scmp.eq.s32.totalorder %s28, 0
      %p244 = por %p242, %p243
      %s245 = ssub.s32 %s22, %s29
      %p246 = scmp.eq.s32.totalorder %s245, 0
      %s248 = sadd.s32 %s247, 1
      %s249 = scalar_select %p246, %s247, %s248
      %p252 = pneg %p246
      %p253 = scmp.eq.s32.totalorder %s22, 1
      %p254 = por %p252, %p253
      %p255 = scmp.ne.s32.totalorder %s247, %s250
      %p256 = scmp.eq.s32.totalorder %s22, 0
      %p257 = por %p255, %p256
      %p258 = scmp.ne.s32.totalorder %s247, %s250
      %p259 = scmp.eq.s32.totalorder %s27, 1
      %p260 = por %p258, %p259
      %p261 = scmp.ne.s32.totalorder %s250, %s251
      %p262 = scmp.eq.s32.totalorder %s27, 0
      %p263 = por %p261, %p262
      %p264 = scmp.ne.s32.totalorder %s250, %s251
      %p265 = scmp.eq.s32.totalorder %s28, 1
      %p266 = por %p264, %p265
      %p268 = scmp.ne.s32.totalorder %s251, %s267
      %p269 = scmp.eq.s32.totalorder %s28, 0
      %p270 = por %p268, %p269
      %p271 = scmp.le.s32.totalorder 1, %s22
      %p272 = scmp.lt.s32.totalorder %s22, 3
      %p273 = pnand %p271, %p272
      %p274 = pneg %p273
      // Predicated region
      $region9: #{tpu_custom_call.1} parent=5 // pred_check
        _
      $region10: #{tpu_custom_call.1} parent=5 // pred_check_branch
        %276 = sbr.rel (%p273) target = $region12
      $region11: #{tpu_custom_call.1} parent=5 // pred_region
        %s277 = ssub.s32 %s22, 1
        // Predicated region
        $region13: #{tpu_custom_call.1} parent=11 // pred_check
          %p278 = pneg %p69
        $region14: #{tpu_custom_call.1} parent=11 // pred_check_branch
          %280 = sbr.rel (%p278) target = $region16
        $region15: #{tpu_custom_call.1} parent=11 // pred_region
          %s282 = ssub.s32 512, 512
          %283 = vsyncadd [#allocation5], %s282
          %s284 = sshll.u32 [#allocation4], 4
          %s285 = int_to_ptr.vmem [resolvable:$true] %s284
          %290 = dma.hbm_to_vmem [thread:$0]  %s1, 512, %s285, [#allocation5], 128, 128, 8
        $region16: #{tpu_custom_call.1} parent=11 // pred_fallthru
          _
        // Predicated region
        $region17: #{tpu_custom_call.1} parent=11 // pred_check
          %p291 = pneg %p90
        $region18: #{tpu_custom_call.1} parent=11 // pred_check_branch
          %293 = sbr.rel (%p291) target = $region20
        $region19: #{tpu_custom_call.1} parent=11 // pred_region
          _
        $region20: #{tpu_custom_call.1} parent=11 // pred_fallthru
          _
        // Predicated region
        $region21: #{tpu_custom_call.1} parent=11 // pred_check
          %p294 = pneg %p111
        $region22: #{tpu_custom_call.1} parent=11 // pred_check_branch
          %296 = sbr.rel (%p294) target = $region24
        $region23: #{tpu_custom_call.1} parent=11 // pred_region
          %s298 = ssub.s32 5120, 5120
          %299 = vsyncadd [#allocation8], %s298
          %s300 = sshll.u32 [#allocation7], 4
          %s301 = int_to_ptr.vmem [resolvable:$true] %s300
          %306 = dma.hbm_to_vmem [thread:$0]  %s3, 5120, %s301, [#allocation8], 256, 256, 16
        $region24: #{tpu_custom_call.1} parent=11 // pred_fallthru
          _
        // Predicated region
        $region25: #{tpu_custom_call.1} parent=11 // pred_check
          %p307 = pneg %p132
        $region26: #{tpu_custom_call.1} parent=11 // pred_check_branch
          %309 = sbr.rel (%p307) target = $region28
        $region27: #{tpu_custom_call.1} parent=11 // pred_region
          _
        $region28: #{tpu_custom_call.1} parent=11 // pred_fallthru
          _
        // Predicated region
        $region29: #{tpu_custom_call.1} parent=11 // pred_check
          %p310 = pneg %p153
        $region30: #{tpu_custom_call.1} parent=11 // pred_check_branch
          %312 = sbr.rel (%p310) target = $region32
        $region31: #{tpu_custom_call.1} parent=11 // pred_region
          %s314 = ssub.s32 1024, 1024
          %315 = vsyncadd [#allocation8], %s314
          %s316 = sshll.u32 [#allocation9], 4
          %s317 = int_to_ptr.vmem [resolvable:$true] %s316
          %322 = dma.hbm_to_vmem [thread:$0]  %s5, 1024, %s317, [#allocation8], 256, 256, 16
        $region32: #{tpu_custom_call.1} parent=11 // pred_fallthru
          _
        // Predicated region
        $region33: #{tpu_custom_call.1} parent=11 // pred_check
          %p323 = pneg %p174
        $region34: #{tpu_custom_call.1} parent=11 // pred_check_branch
          %325 = sbr.rel (%p323) target = $region36
        $region35: #{tpu_custom_call.1} parent=11 // pred_region
          _
        $region36: #{tpu_custom_call.1} parent=11 // pred_fallthru
          _
        // Predicated region
        $region37: #{tpu_custom_call.1} parent=11 // pred_check
          %p326 = pneg %p195
        $region38: #{tpu_custom_call.1} parent=11 // pred_check_branch
          %328 = sbr.rel (%p326) target = $region40
        $region39: #{tpu_custom_call.1} parent=11 // pred_region
          %s330 = ssub.s32 224, 224
          %331 = vsyncadd [#allocation11], %s330
          %s332 = sshll.u32 [#allocation10], 4
          %s333 = int_to_ptr.vmem [resolvable:$true] %s332
          %338 = dma.hbm_to_vmem [thread:$0]  %s7, 224, %s333, [#allocation11], 32, 32, 2
        $region40: #{tpu_custom_call.1} parent=11 // pred_fallthru
          _
        // Predicated region
        $region41: #{tpu_custom_call.1} parent=11 // pred_check
          %p339 = pneg %p216
        $region42: #{tpu_custom_call.1} parent=11 // pred_check_branch
          %341 = sbr.rel (%p339) target = $region44
        $region43: #{tpu_custom_call.1} parent=11 // pred_region
          _
        $region44: #{tpu_custom_call.1} parent=11 // pred_fallthru
          _
        // Predicated region
        $region45: #{tpu_custom_call.1} parent=11 // pred_check
          %p342 = pneg %p237
        $region46: #{tpu_custom_call.1} parent=11 // pred_check_branch
          %344 = sbr.rel (%p342) target = $region48
        $region47: #{tpu_custom_call.1} parent=11 // pred_region
          _
        $region48: #{tpu_custom_call.1} parent=11 // pred_fallthru
          _
      $region12: #{tpu_custom_call.1} parent=5 // pred_fallthru
        _
      %p345 = scmp.lt.s32.totalorder %s22, 2
      // Predicated region
      $region49: #{tpu_custom_call.1} parent=5 // pred_check
        %p346 = pneg %p345
      $region50: #{tpu_custom_call.1} parent=5 // pred_check_branch
        %348 = sbr.rel (%p346) target = $region52
      $region51: #{tpu_custom_call.1} parent=5 // pred_region
        // Predicated region
        $region53: #{tpu_custom_call.1} parent=51 // pred_check
          %p349 = pneg %p42
        $region54: #{tpu_custom_call.1} parent=51 // pred_check_branch
          %351 = sbr.rel (%p349) target = $region56
        $region55: #{tpu_custom_call.1} parent=51 // pred_region
          %p352 = scmp.lt.s32.totalorder %s22, 1
          %s353 = scalar_select %p352, %s22, 1
          %s354 = smul.addr %s353, 8
          %s355 = smul.addr %s354, 8
          %s356 = scalar_lea.vmem %s0, %s355
        $region56: #{tpu_custom_call.1} parent=51 // pred_fallthru
          _
      $region52: #{tpu_custom_call.1} parent=5 // pred_fallthru
        _
      %p357 = scmp.le.s32.totalorder 1, %s22
      %p358 = scmp.lt.s32.totalorder %s22, 3
      %p359 = pnand %p357, %p358
      %p360 = pneg %p359
      // Predicated region
      $region57: #{tpu_custom_call.1} parent=5 // pred_check
        _
      $region58: #{tpu_custom_call.1} parent=5 // pred_check_branch
        %362 = sbr.rel (%p359) target = $region60
      $region59: #{tpu_custom_call.1} parent=5 // pred_region
        %s363 = ssub.s32 %s22, 1
        // Predicated region
        $region61: #{tpu_custom_call.1} parent=59 // pred_check
          %p364 = pneg %p69
        $region62: #{tpu_custom_call.1} parent=59 // pred_check_branch
          %366 = sbr.rel (%p364) target = $region64
        $region63: #{tpu_custom_call.1} parent=59 // pred_region
          %367 = dma.done [#allocation5], 512
        $region64: #{tpu_custom_call.1} parent=59 // pred_fallthru
          _
        // Predicated region
        $region65: #{tpu_custom_call.1} parent=59 // pred_check
          %p368 = pneg %p111
        $region66: #{tpu_custom_call.1} parent=59 // pred_check_branch
          %370 = sbr.rel (%p368) target = $region68
        $region67: #{tpu_custom_call.1} parent=59 // pred_region
          %371 = dma.done [#allocation8], 5120
        $region68: #{tpu_custom_call.1} parent=59 // pred_fallthru
          _
        // Predicated region
        $region69: #{tpu_custom_call.1} parent=59 // pred_check
          %p372 = pneg %p153
        $region70: #{tpu_custom_call.1} parent=59 // pred_check_branch
          %374 = sbr.rel (%p372) target = $region72
        $region71: #{tpu_custom_call.1} parent=59 // pred_region
          %375 = dma.done [#allocation8], 1024
        $region72: #{tpu_custom_call.1} parent=59 // pred_fallthru
          _
        // Predicated region
        $region73: #{tpu_custom_call.1} parent=59 // pred_check
          %p376 = pneg %p195
        $region74: #{tpu_custom_call.1} parent=59 // pred_check_branch
          %378 = sbr.rel (%p376) target = $region76
        $region75: #{tpu_custom_call.1} parent=59 // pred_region
          %379 = dma.done [#allocation11], 224
        $region76: #{tpu_custom_call.1} parent=59 // pred_fallthru
          _
        %p380 = scmp.lt.s32.totalorder %s27, 1
        %s381 = scalar_select %p380, %s27, 1
        %s382 = smul.addr %s381, 8
        %s383 = smul.addr %s382, 8
        %s384 = scalar_lea.vmem %s0, %s383
        %p385 = pneg %p48
        %p386 = pneg %p45
        %p387 = pneg %p69
        %p388 = pneg %p66
        %p389 = pneg %p90
        %p390 = pneg %p87
        %p391 = pneg %p111
        %p392 = pneg %p108
        %p393 = pneg %p132
        %p394 = pneg %p129
        %p395 = pneg %p153
        %p396 = pneg %p150
        %p397 = pneg %p174
        %p398 = pneg %p171
        %p399 = pneg %p195
        %p400 = pneg %p192
        %p401 = pneg %p216
        %p402 = pneg %p213
        %p403 = pneg %p237
        %p404 = pneg %p234
        %p405 = pneg %p263
        %p406 = pneg %p260
        %s407 = sand.u32 %s250, 1
        %s408 = scalar_lea.sflag [#allocation6], %s407
        %s409 = sand.u32 %s250, 1
        %s410 = smul.addr %s409, 64
        %s411 = scalar_lea.vmem [#allocation12], %s410
        %p412 = scmp.lt.s32.totalorder %s27, 1
        %s413 = scalar_select %p412, %s27, 1
        %s414 = smul.addr %s413, 8
        %s415 = smul.addr %s414, 8
        %s416 = scalar_lea.vmem %s0, %s415
        %417 = vst [vmem:[#allocation2] sm:$0xff] 0.0
        %418 = vst [vmem:[#allocation2 + $0x8] sm:$0xff] 0.0
        %419 = vst [vmem:[#allocation2 + $0x10] sm:$0xff] 0.0
        %420 = vst [vmem:[#allocation2 + $0x18] sm:$0xff] 0.0
        %421 = vst [vmem:[#allocation2 + $0x20] sm:$0xff] 0.0
        %422 = vst [vmem:[#allocation2 + $0x28] sm:$0xff] 0.0
        %423 = vst [vmem:[#allocation2 + $0x30] sm:$0xff] 0.0
        %424 = vst [vmem:[#allocation2 + $0x38] sm:$0xff] 0.0
        %v425 = vld [vmem:[%s416] sm:$0xff]
        %v426 = vld [vmem:[%s416 + $0x8] sm:$0xff]
        %v427 = vld [vmem:[%s416 + $0x10] sm:$0xff]
        %v428 = vld [vmem:[%s416 + $0x18] sm:$0xff]
        %v429 = vld [vmem:[%s416 + $0x20] sm:$0xff]
        %v430 = vld [vmem:[%s416 + $0x28] sm:$0xff]
        %v431 = vld [vmem:[%s416 + $0x30] sm:$0xff]
        %v432 = vld [vmem:[%s416 + $0x38] sm:$0xff]
        %433 = vst [vmem:[#allocation2] sm:$0xff] %v425
        %vm434 = vcmask 523264
        %435 = vst.msk [vmem:[#allocation2 + $0x8] sm:$0xff] %vm434, %v426
        %436 = vst [vmem:[#allocation2 + $0x10] sm:$0xff] %v427
        %437 = vst.msk [vmem:[#allocation2 + $0x18] sm:$0xff] %vm434, %v428
        %438 = vst [vmem:[#allocation2 + $0x20] sm:$0xff] %v429
        %439 = vst.msk [vmem:[#allocation2 + $0x28] sm:$0xff] %vm434, %v430
        %440 = vst [vmem:[#allocation2 + $0x30] sm:$0xff] %v431
        %441 = vst.msk [vmem:[#allocation2 + $0x38] sm:$0xff] %vm434, %v432
        %v442 = vld [vmem:[#allocation2] sm:$0xff]
        %v443 = vld [vmem:[#allocation2 + $0x8] sm:$0xff]
        %v444 = vld [vmem:[#allocation2 + $0x10] sm:$0xff]
        %v445 = vld [vmem:[#allocation2 + $0x18] sm:$0xff]
        %v446 = vld [vmem:[#allocation2 + $0x20] sm:$0xff]
        %v447 = vld [vmem:[#allocation2 + $0x28] sm:$0xff]
        %v448 = vld [vmem:[#allocation2 + $0x30] sm:$0xff]
        %v449 = vld [vmem:[#allocation2 + $0x38] sm:$0xff]
        %v450 = vld [vmem:[#allocation4] sm:$0xff]
        %v451 = vld [vmem:[#allocation4 + $0x8] sm:$0xff]
        %v452 = vld [vmem:[#allocation4 + $0x10] sm:$0xff]
        %v453 = vld [vmem:[#allocation4 + $0x18] sm:$0xff]
        %v454 = vld [vmem:[%s2] sm:$0xff]
        %v455 = vld [vmem:[%s2 + $0x8] sm:$0xff]
        %v456 = vld [vmem:[%s2 + $0x10] sm:$0xff]
        %v457 = vld [vmem:[%s2 + $0x18] sm:$0xff]
        %459 = vset.pattern.permute.xlu0 0
        %460 = vperm.xlu0 %459, %v454
        %v461 = vpop.permute.xlu0 %460
        %464 = vset.pattern.permute.xlu0 0
        %465 = vperm.xlu0 %464, %v455
        %v466 = vpop.permute.xlu0 %465
        %469 = vset.pattern.permute.xlu0 0
        %470 = vperm.xlu0 %469, %v456
        %v471 = vpop.permute.xlu0 %470
        %474 = vset.pattern.permute.xlu0 0
        %475 = vperm.xlu0 %474, %v457
        %v476 = vpop.permute.xlu0 %475
        %vm478 = vcmask 261120
        %v480 = vsel %vm478, %v450, 0
        %v483 = vsel %vm478, %v451, 0
        %v486 = vsel %vm478, %v452, 0
        %v489 = vsel %vm478, %v453, 0
        %v491 = vand.u32 %v443, 4294901760
        %492 = vmatprep.subr.mxu0 %v491
        %v493 = vand.u32 %v442, 4294901760
        %494 = vmatpush1.msra.mxu0 %v493
        %v495 = vand.u32 %v445, 4294901760
        %496 = vmatprep.subr.mxu0 %v495
        %v497 = vand.u32 %v444, 4294901760
        %498 = vmatpush1.msra.mxu0 %v497
        %v499 = vand.u32 %v447, 4294901760
        %500 = vmatprep.subr.mxu0 %v499
        %v501 = vand.u32 %v446, 4294901760
        %502 = vmatpush1.msra.mxu0 %v501
        %v503 = vand.u32 %v449, 4294901760
        %504 = vmatprep.subr.mxu0 %v503
        %v505 = vand.u32 %v448, 4294901760
        %506 = vmatpush1.msra.mxu0 %v505
        %507 = vmatprep.subr.mxu0 0.0
        %508 = vmatpush1.msra.mxu0 0.0
        %509 = vmatprep.subr.mxu0 0.0
        %510 = vmatpush1.msra.mxu0 0.0
        %511 = vmatprep.subr.mxu0 0.0
        %512 = vmatpush1.msra.mxu0 0.0
        %513 = vmatprep.subr.mxu0 0.0
        %514 = vmatpush1.msra.mxu0 0.0
        %515 = vmatprep.subr.mxu0 0.0
        %516 = vmatpush1.msra.mxu0 0.0
        %517 = vmatprep.subr.mxu0 0.0
        %518 = vmatpush1.msra.mxu0 0.0
        %519 = vmatprep.subr.mxu0 0.0
        %520 = vmatpush1.msra.mxu0 0.0
        %521 = vmatprep.subr.mxu0 0.0
        %522 = vmatpush1.msra.mxu0 0.0
        %523 = vmatprep.subr.mxu0 0.0
        %524 = vmatpush1.msra.mxu0 0.0
        %525 = vmatprep.subr.mxu0 0.0
        %526 = vmatpush1.msra.mxu0 0.0
        %527 = vmatprep.subr.mxu0 0.0
        %528 = vmatpush1.msra.mxu0 0.0
        %529 = vmatprep.subr.mxu0 0.0
        %530 = vmatpush1.msra.mxu0 0.0
        %531 = vmatprep.subr.mxu0 0.0
        %532 = vmatpush1.msra.mxu0 0.0
        %533 = vmatprep.subr.mxu0 0.0
        %534 = vmatpush1.msra.mxu0 0.0
        %535 = vmatprep.subr.mxu0 0.0
        %536 = vmatpush1.msra.mxu0 0.0
        %537 = vmatprep.subr.mxu0 0.0
        %538 = vmatpush1.msra.mxu0 0.0
        %539 = vmatprep.subr.mxu0 0.0
        %540 = vmatpush1.msra.mxu0 0.0
        %541 = vmatprep.subr.mxu0 0.0
        %542 = vmatpush1.msra.mxu0 0.0
        %543 = vmatprep.subr.mxu0 0.0
        %544 = vmatpush1.msra.mxu0 0.0
        %545 = vmatprep.subr.mxu0 0.0
        %546 = vmatpush1.msra.mxu0 0.0
        %547 = vmatprep.subr.mxu0 0.0
        %548 = vmatpush1.msra.mxu0 0.0
        %549 = vmatprep.subr.mxu0 0.0
        %550 = vmatpush1.msra.mxu0 0.0
        %551 = vmatprep.subr.mxu0 0.0
        %552 = vmatpush1.msra.mxu0 0.0
        %553 = vmatprep.subr.mxu0 0.0
        %554 = vmatpush1.msra.mxu0 0.0
        %555 = vmatprep.subr.mxu0 0.0
        %556 = vmatpush1.msra.mxu0 0.0
        %557 = vmatprep.subr.mxu0 0.0
        %558 = vmatpush1.msra.mxu0 0.0
        %559 = vmatprep.subr.mxu0 0.0
        %560 = vmatpush1.msra.mxu0 0.0
        %561 = vmatprep.subr.mxu0 0.0
        %562 = vmatpush1.msra.mxu0 0.0
        %563 = vmatprep.mubr.f32.mxu0 0.0
        %v564 = vand.u32 %v480, 4294901760
        %v565 = vsub.f32 %v480, %v564
        %v566 = vand.u32 %v565, 4294901760
        %v567 = vsub.f32 %v565, %v566
        %v568 = vand.u32 %v567, 4294901760
        %569 = vmatmul.mubr.f32.gmra.mrb[0].mxu0 %v568
        %v570 = vpop.f32.mrb[0].mxu0
        %v571 = vadd.f32 %v461, %v570
        %v572 = vpop.f32.mrb[0].mxu0
        %v573 = vadd.f32 %v461, %v572
        %574 = vmatprep.mubr.f32.mxu0 0.0
        %v575 = vand.u32 %v483, 4294901760
        %v576 = vsub.f32 %v483, %v575
        %v577 = vand.u32 %v576, 4294901760
        %v578 = vsub.f32 %v576, %v577
        %v579 = vand.u32 %v578, 4294901760
        %580 = vmatmul.mubr.f32.gmra.mrb[0].mxu0 %v579
        %v581 = vpop.f32.mrb[0].mxu0
        %v582 = vadd.f32 %v466, %v581
        %v583 = vpop.f32.mrb[0].mxu0
        %v584 = vadd.f32 %v466, %v583
        %585 = vmatprep.mubr.f32.mxu0 0.0
        %v586 = vand.u32 %v486, 4294901760
        %v587 = vsub.f32 %v486, %v586
        %v588 = vand.u32 %v587, 4294901760
        %v589 = vsub.f32 %v587, %v588
        %v590 = vand.u32 %v589, 4294901760
        %591 = vmatmul.mubr.f32.gmra.mrb[0].mxu0 %v590
        %v592 = vpop.f32.mrb[0].mxu0
        %v593 = vadd.f32 %v471, %v592
        %v594 = vpop.f32.mrb[0].mxu0
        %v595 = vadd.f32 %v471, %v594
        %596 = vmatprep.mubr.f32.mxu0 0.0
        %v597 = vand.u32 %v489, 4294901760
        %v598 = vsub.f32 %v489, %v597
        %v599 = vand.u32 %v598, 4294901760
        %v600 = vsub.f32 %v598, %v599
        %v601 = vand.u32 %v600, 4294901760
        %602 = vmatmul.mubr.f32.gmra.mrb[0].mxu0 %v601
        %v603 = vpop.f32.mrb[0].mxu0
        %v604 = vadd.f32 %v476, %v603
        %v605 = vpop.f32.mrb[0].mxu0
        %v606 = vadd.f32 %v476, %v605
        %607 = vdwg.mxu0
        %v608 = vand.u32 %v443, 4294901760
        %v609 = vsub.f32 %v443, %v608
        %v610 = vand.u32 %v609, 4294901760
        %v611 = vsub.f32 %v609, %v610
        %v612 = vand.u32 %v611, 4294901760
        %613 = vmatprep.subr.mxu0 %v612
        %v614 = vand.u32 %v442, 4294901760
        %v615 = vsub.f32 %v442, %v614
        %v616 = vand.u32 %v615, 4294901760
        %v617 = vsub.f32 %v615, %v616
        %v618 = vand.u32 %v617, 4294901760
        %619 = vmatpush1.msra.mxu0 %v618
        %v620 = vand.u32 %v445, 4294901760
        %v621 = vsub.f32 %v445, %v620
        %v622 = vand.u32 %v621, 4294901760
        %v623 = vsub.f32 %v621, %v622
        %v624 = vand.u32 %v623, 4294901760
        %625 = vmatprep.subr.mxu0 %v624
        %v626 = vand.u32 %v444, 4294901760
        %v627 = vsub.f32 %v444, %v626
        %v628 = vand.u32 %v627, 4294901760
        %v629 = vsub.f32 %v627, %v628
        %v630 = vand.u32 %v629, 4294901760
        %631 = vmatpush1.msra.mxu0 %v630
        %v632 = vand.u32 %v447, 4294901760
        %v633 = vsub.f32 %v447, %v632
        %v634 = vand.u32 %v633, 4294901760
        %v635 = vsub.f32 %v633, %v634
        %v636 = vand.u32 %v635, 4294901760
        %637 = vmatprep.subr.mxu0 %v636
        %v638 = vand.u32 %v446, 4294901760
        %v639 = vsub.f32 %v446, %v638
        %v640 = vand.u32 %v639, 4294901760
        %v641 = vsub.f32 %v639, %v640
        %v642 = vand.u32 %v641, 4294901760
        %643 = vmatpush1.msra.mxu0 %v642
        %v644 = vand.u32 %v449, 4294901760
        %v645 = vsub.f32 %v449, %v644
        %v646 = vand.u32 %v645, 4294901760
        %v647 = vsub.f32 %v645, %v646
        %v648 = vand.u32 %v647, 4294901760
        %649 = vmatprep.subr.mxu0 %v648
        %v650 = vand.u32 %v448, 4294901760
        %v651 = vsub.f32 %v448, %v650
        %v652 = vand.u32 %v651, 4294901760
        %v653 = vsub.f32 %v651, %v652
        %v654 = vand.u32 %v653, 4294901760
        %655 = vmatpush1.msra.mxu0 %v654
        %656 = vmatprep.subr.mxu0 0.0
        %657 = vmatpush1.msra.mxu0 0.0
        %658 = vmatprep.subr.mxu0 0.0
        %659 = vmatpush1.msra.mxu0 0.0
        %660 = vmatprep.subr.mxu0 0.0
        %661 = vmatpush1.msra.mxu0 0.0
        %662 = vmatprep.subr.mxu0 0.0
        %663 = vmatpush1.msra.mxu0 0.0
        %664 = vmatprep.subr.mxu0 0.0
        %665 = vmatpush1.msra.mxu0 0.0
        %666 = vmatprep.subr.mxu0 0.0
        %667 = vmatpush1.msra.mxu0 0.0
        %668 = vmatprep.subr.mxu0 0.0
        %669 = vmatpush1.msra.mxu0 0.0
        %670 = vmatprep.subr.mxu0 0.0
        %671 = vmatpush1.msra.mxu0 0.0
        %672 = vmatprep.subr.mxu0 0.0
        %673 = vmatpush1.msra.mxu0 0.0
        %674 = vmatprep.subr.mxu0 0.0
        %675 = vmatpush1.msra.mxu0 0.0
        %676 = vmatprep.subr.mxu0 0.0
        %677 = vmatpush1.msra.mxu0 0.0
        %678 = vmatprep.subr.mxu0 0.0
        %679 = vmatpush1.msra.mxu0 0.0
        %680 = vmatprep.subr.mxu0 0.0
        %681 = vmatpush1.msra.mxu0 0.0
        %682 = vmatprep.subr.mxu0 0.0
        %683 = vmatpush1.msra.mxu0 0.0
        %684 = vmatprep.subr.mxu0 0.0
        %685 = vmatpush1.msra.mxu0 0.0
        %686 = vmatprep.subr.mxu0 0.0
        %687 = vmatpush1.msra.mxu0 0.0
        %688 = vmatprep.subr.mxu0 0.0
        %689 = vmatpush1.msra.mxu0 0.0
        %690 = vmatprep.subr.mxu0 0.0
        %691 = vmatpush1.msra.mxu0 0.0
        %692 = vmatprep.subr.mxu0 0.0
        %693 = vmatpush1.msra.mxu0 0.0
        %694 = vmatprep.subr.mxu0 0.0
        %695 = vmatpush1.msra.mxu0 0.0
        %696 = vmatprep.subr.mxu0 0.0
        %697 = vmatpush1.msra.mxu0 0.0
        %698 = vmatprep.subr.mxu0 0.0
        %699 = vmatpush1.msra.mxu0 0.0
        %700 = vmatprep.subr.mxu0 0.0
        %701 = vmatpush1.msra.mxu0 0.0
        %702 = vmatprep.subr.mxu0 0.0
        %703 = vmatpush1.msra.mxu0 0.0
        %704 = vmatprep.subr.mxu0 0.0
        %705 = vmatpush1.msra.mxu0 0.0
        %706 = vmatprep.subr.mxu0 0.0
        %707 = vmatpush1.msra.mxu0 0.0
        %708 = vmatprep.subr.mxu0 0.0
        %709 = vmatpush1.msra.mxu0 0.0
        %710 = vmatprep.subr.mxu0 0.0
        %711 = vmatpush1.msra.mxu0 0.0
        %712 = vmatprep.mubr.f32.mxu0 0.0
        %v713 = vand.u32 %v480, 4294901760
        %714 = vmatmul.mubr.f32.gmra.mrb[0].mxu0 %v713
        %v715 = vpop.f32.mrb[0].mxu0
        %v716 = vadd.f32 %v571, %v715
        %v717 = vpop.f32.mrb[0].mxu0
        %v718 = vadd.f32 %v573, %v717
        %719 = vmatprep.mubr.f32.mxu0 0.0
        %v720 = vand.u32 %v483, 4294901760
        %721 = vmatmul.mubr.f32.gmra.mrb[0].mxu0 %v720
        %v722 = vpop.f32.mrb[0].mxu0
        %v723 = vadd.f32 %v582, %v722
        %v724 = vpop.f32.mrb[0].mxu0
        %v725 = vadd.f32 %v584, %v724
        %726 = vmatprep.mubr.f32.mxu0 0.0
        %v727 = vand.u32 %v486, 4294901760
        %728 = vmatmul.mubr.f32.gmra.mrb[0].mxu0 %v727
        %v729 = vpop.f32.mrb[0].mxu0
        %v730 = vadd.f32 %v593, %v729
        %v731 = vpop.f32.mrb[0].mxu0
        %v732 = vadd.f32 %v595, %v731
        %733 = vmatprep.mubr.f32.mxu0 0.0
        %v734 = vand.u32 %v489, 4294901760
        %735 = vmatmul.mubr.f32.gmra.mrb[0].mxu0 %v734
        %v736 = vpop.f32.mrb[0].mxu0
        %v737 = vadd.f32 %v604, %v736
        %v738 = vpop.f32.mrb[0].mxu0
        %v739 = vadd.f32 %v606, %v738
        %740 = vdwg.mxu0
        %v741 = vand.u32 %v443, 4294901760
        %v742 = vsub.f32 %v443, %v741
        %743 = vmatprep.subr.mxu0 %v742
        %v744 = vand.u32 %v442, 4294901760
        %v745 = vsub.f32 %v442, %v744
        %746 = vmatpush1.msra.mxu0 %v745
        %v747 = vand.u32 %v445, 4294901760
        %v748 = vsub.f32 %v445, %v747
        %749 = vmatprep.subr.mxu0 %v748
        %v750 = vand.u32 %v444, 4294901760
        %v751 = vsub.f32 %v444, %v750
        %752 = vmatpush1.msra.mxu0 %v751
        %v753 = vand.u32 %v447, 4294901760
        %v754 = vsub.f32 %v447, %v753
        %755 = vmatprep.subr.mxu0 %v754
        %v756 = vand.u32 %v446, 4294901760
        %v757 = vsub.f32 %v446, %v756
        %758 = vmatpush1.msra.mxu0 %v757
        %v759 = vand.u32 %v449, 4294901760
        %v760 = vsub.f32 %v449, %v759
        %761 = vmatprep.subr.mxu0 %v760
        %v762 = vand.u32 %v448, 4294901760
        %v763 = vsub.f32 %v448, %v762
        %764 = vmatpush1.msra.mxu0 %v763
        %765 = vmatprep.subr.mxu0 0.0
        %766 = vmatpush1.msra.mxu0 0.0
        %767 = vmatprep.subr.mxu0 0.0
        %768 = vmatpush1.msra.mxu0 0.0
        %769 = vmatprep.subr.mxu0 0.0
        %770 = vmatpush1.msra.mxu0 0.0
        %771 = vmatprep.subr.mxu0 0.0
        %772 = vmatpush1.msra.mxu0 0.0
        %773 = vmatprep.subr.mxu0 0.0
        %774 = vmatpush1.msra.mxu0 0.0
        %775 = vmatprep.subr.mxu0 0.0
        %776 = vmatpush1.msra.mxu0 0.0
        %777 = vmatprep.subr.mxu0 0.0
        %778 = vmatpush1.msra.mxu0 0.0
        %779 = vmatprep.subr.mxu0 0.0
        %780 = vmatpush1.msra.mxu0 0.0
        %781 = vmatprep.subr.mxu0 0.0
        %782 = vmatpush1.msra.mxu0 0.0
        %783 = vmatprep.subr.mxu0 0.0
        %784 = vmatpush1.msra.mxu0 0.0
        %785 = vmatprep.subr.mxu0 0.0
        %786 = vmatpush1.msra.mxu0 0.0
        %787 = vmatprep.subr.mxu0 0.0
        %788 = vmatpush1.msra.mxu0 0.0
        %789 = vmatprep.subr.mxu0 0.0
        %790 = vmatpush1.msra.mxu0 0.0
        %791 = vmatprep.subr.mxu0 0.0
        %792 = vmatpush1.msra.mxu0 0.0
        %793 = vmatprep.subr.mxu0 0.0
        %794 = vmatpush1.msra.mxu0 0.0
        %795 = vmatprep.subr.mxu0 0.0
        %796 = vmatpush1.msra.mxu0 0.0
        %797 = vmatprep.subr.mxu0 0.0
        %798 = vmatpush1.msra.mxu0 0.0
        %799 = vmatprep.subr.mxu0 0.0
        %800 = vmatpush1.msra.mxu0 0.0
        %801 = vmatprep.subr.mxu0 0.0
        %802 = vmatpush1.msra.mxu0 0.0
        %803 = vmatprep.subr.mxu0 0.0
        %804 = vmatpush1.msra.mxu0 0.0
        %805 = vmatprep.subr.mxu0 0.0
        %806 = vmatpush1.msra.mxu0 0.0
        %807 = vmatprep.subr.mxu0 0.0
        %808 = vmatpush1.msra.mxu0 0.0
        %809 = vmatprep.subr.mxu0 0.0
        %810 = vmatpush1.msra.mxu0 0.0
        %811 = vmatprep.subr.mxu0 0.0
        %812 = vmatpush1.msra.mxu0 0.0
        %813 = vmatprep.subr.mxu0 0.0
        %814 = vmatpush1.msra.mxu0 0.0
        %815 = vmatprep.subr.mxu0 0.0
        %816 = vmatpush1.msra.mxu0 0.0
        %817 = vmatprep.subr.mxu0 0.0
        %818 = vmatpush1.msra.mxu0 0.0
        %819 = vmatprep.subr.mxu0 0.0
        %820 = vmatpush1.msra.mxu0 0.0
        %821 = vmatprep.mubr.f32.mxu0 0.0
        %v822 = vand.u32 %v480, 4294901760
        %v823 = vsub.f32 %v480, %v822
        %824 = vmatmul.mubr.f32.gmra.mrb[0].mxu0 %v823
        %v825 = vpop.f32.mrb[0].mxu0
        %v826 = vadd.f32 %v716, %v825
        %v827 = vpop.f32.mrb[0].mxu0
        %v828 = vadd.f32 %v718, %v827
        %829 = vmatprep.mubr.f32.mxu0 0.0
        %v830 = vand.u32 %v483, 4294901760
        %v831 = vsub.f32 %v483, %v830
        %832 = vmatmul.mubr.f32.gmra.mrb[0].mxu0 %v831
        %v833 = vpop.f32.mrb[0].mxu0
        %v834 = vadd.f32 %v723, %v833
        %v835 = vpop.f32.mrb[0].mxu0
        %v836 = vadd.f32 %v725, %v835
        %837 = vmatprep.mubr.f32.mxu0 0.0
        %v838 = vand.u32 %v486, 4294901760
        %v839 = vsub.f32 %v486, %v838
        %840 = vmatmul.mubr.f32.gmra.mrb[0].mxu0 %v839
        %v841 = vpop.f32.mrb[0].mxu0
        %v842 = vadd.f32 %v730, %v841
        %v843 = vpop.f32.mrb[0].mxu0
        %v844 = vadd.f32 %v732, %v843
        %845 = vmatprep.mubr.f32.mxu0 0.0
        %v846 = vand.u32 %v489, 4294901760
        %v847 = vsub.f32 %v489, %v846
        %848 = vmatmul.mubr.f32.gmra.mrb[0].mxu0 %v847
        %v849 = vpop.f32.mrb[0].mxu0
        %v850 = vadd.f32 %v737, %v849
        %v851 = vpop.f32.mrb[0].mxu0
        %v852 = vadd.f32 %v739, %v851
        %853 = vdwg.mxu0
        %v854 = vand.u32 %v443, 4294901760
        %855 = vmatprep.subr.mxu0 %v854
        %v856 = vand.u32 %v442, 4294901760
        %857 = vmatpush1.msra.mxu0 %v856
        %v858 = vand.u32 %v445, 4294901760
        %859 = vmatprep.subr.mxu0 %v858
        %v860 = vand.u32 %v444, 4294901760
        %861 = vmatpush1.msra.mxu0 %v860
        %v862 = vand.u32 %v447, 4294901760
        %863 = vmatprep.subr.mxu0 %v862
        %v864 = vand.u32 %v446, 4294901760
        %865 = vmatpush1.msra.mxu0 %v864
        %v866 = vand.u32 %v449, 4294901760
        %867 = vmatprep.subr.mxu0 %v866
        %v868 = vand.u32 %v448, 4294901760
        %869 = vmatpush1.msra.mxu0 %v868
        %870 = vmatprep.subr.mxu0 0.0
        %871 = vmatpush1.msra.mxu0 0.0
        %872 = vmatprep.subr.mxu0 0.0
        %873 = vmatpush1.msra.mxu0 0.0
        %874 = vmatprep.subr.mxu0 0.0
        %875 = vmatpush1.msra.mxu0 0.0
        %876 = vmatprep.subr.mxu0 0.0
        %877 = vmatpush1.msra.mxu0 0.0
        %878 = vmatprep.subr.mxu0 0.0
        %879 = vmatpush1.msra.mxu0 0.0
        %880 = vmatprep.subr.mxu0 0.0
        %881 = vmatpush1.msra.mxu0 0.0
        %882 = vmatprep.subr.mxu0 0.0
        %883 = vmatpush1.msra.mxu0 0.0
        %884 = vmatprep.subr.mxu0 0.0
        %885 = vmatpush1.msra.mxu0 0.0
        %886 = vmatprep.subr.mxu0 0.0
        %887 = vmatpush1.msra.mxu0 0.0
        %888 = vmatprep.subr.mxu0 0.0
        %889 = vmatpush1.msra.mxu0 0.0
        %890 = vmatprep.subr.mxu0 0.0
        %891 = vmatpush1.msra.mxu0 0.0
        %892 = vmatprep.subr.mxu0 0.0
        %893 = vmatpush1.msra.mxu0 0.0
        %894 = vmatprep.subr.mxu0 0.0
        %895 = vmatpush1.msra.mxu0 0.0
        %896 = vmatprep.subr.mxu0 0.0
        %897 = vmatpush1.msra.mxu0 0.0
        %898 = vmatprep.subr.mxu0 0.0
        %899 = vmatpush1.msra.mxu0 0.0
        %900 = vmatprep.subr.mxu0 0.0
        %901 = vmatpush1.msra.mxu0 0.0
        %902 = vmatprep.subr.mxu0 0.0
        %903 = vmatpush1.msra.mxu0 0.0
        %904 = vmatprep.subr.mxu0 0.0
        %905 = vmatpush1.msra.mxu0 0.0
        %906 = vmatprep.subr.mxu0 0.0
        %907 = vmatpush1.msra.mxu0 0.0
        %908 = vmatprep.subr.mxu0 0.0
        %909 = vmatpush1.msra.mxu0 0.0
        %910 = vmatprep.subr.mxu0 0.0
        %911 = vmatpush1.msra.mxu0 0.0
        %912 = vmatprep.subr.mxu0 0.0
        %913 = vmatpush1.msra.mxu0 0.0
        %914 = vmatprep.subr.mxu0 0.0
        %915 = vmatpush1.msra.mxu0 0.0
        %916 = vmatprep.subr.mxu0 0.0
        %917 = vmatpush1.msra.mxu0 0.0
        %918 = vmatprep.subr.mxu0 0.0
        %919 = vmatpush1.msra.mxu0 0.0
        %920 = vmatprep.subr.mxu0 0.0
        %921 = vmatpush1.msra.mxu0 0.0
        %922 = vmatprep.subr.mxu0 0.0
        %923 = vmatpush1.msra.mxu0 0.0
        %924 = vmatprep.subr.mxu0 0.0
        %925 = vmatpush1.msra.mxu0 0.0
        %926 = vmatprep.mubr.f32.mxu0 0.0
        %v927 = vand.u32 %v480, 4294901760
        %v928 = vsub.f32 %v480, %v927
        %v929 = vand.u32 %v928, 4294901760
        %930 = vmatmul.mubr.f32.gmra.mrb[0].mxu0 %v929
        %v931 = vpop.f32.mrb[0].mxu0
        %v932 = vadd.f32 %v826, %v931
        %v933 = vpop.f32.mrb[0].mxu0
        %v934 = vadd.f32 %v828, %v933
        %935 = vmatprep.mubr.f32.mxu0 0.0
        %v936 = vand.u32 %v483, 4294901760
        %v937 = vsub.f32 %v483, %v936
        %v938 = vand.u32 %v937, 4294901760
        %939 = vmatmul.mubr.f32.gmra.mrb[0].mxu0 %v938
        %v940 = vpop.f32.mrb[0].mxu0
        %v941 = vadd.f32 %v834, %v940
        %v942 = vpop.f32.mrb[0].mxu0
        %v943 = vadd.f32 %v836, %v942
        %944 = vmatprep.mubr.f32.mxu0 0.0
        %v945 = vand.u32 %v486, 4294901760
        %v946 = vsub.f32 %v486, %v945
        %v947 = vand.u32 %v946, 4294901760
        %948 = vmatmul.mubr.f32.gmra.mrb[0].mxu0 %v947
        %v949 = vpop.f32.mrb[0].mxu0
        %v950 = vadd.f32 %v842, %v949
        %v951 = vpop.f32.mrb[0].mxu0
        %v952 = vadd.f32 %v844, %v951
        %953 = vmatprep.mubr.f32.mxu0 0.0
        %v954 = vand.u32 %v489, 4294901760
        %v955 = vsub.f32 %v489, %v954
        %v956 = vand.u32 %v955, 4294901760
        %957 = vmatmul.mubr.f32.gmra.mrb[0].mxu0 %v956
        %v958 = vpop.f32.mrb[0].mxu0
        %v959 = vadd.f32 %v850, %v958
        %v960 = vpop.f32.mrb[0].mxu0
        %v961 = vadd.f32 %v852, %v960
        %962 = vdwg.mxu0
        %v963 = vand.u32 %v443, 4294901760
        %v964 = vsub.f32 %v443, %v963
        %v965 = vand.u32 %v964, 4294901760
        %966 = vmatprep.subr.mxu0 %v965
        %v967 = vand.u32 %v442, 4294901760
        %v968 = vsub.f32 %v442, %v967
        %v969 = vand.u32 %v968, 4294901760
        %970 = vmatpush1.msra.mxu0 %v969
        %v971 = vand.u32 %v445, 4294901760
        %v972 = vsub.f32 %v445, %v971
        %v973 = vand.u32 %v972, 4294901760
        %974 = vmatprep.subr.mxu0 %v973
        %v975 = vand.u32 %v444, 4294901760
        %v976 = vsub.f32 %v444, %v975
        %v977 = vand.u32 %v976, 4294901760
        %978 = vmatpush1.msra.mxu0 %v977
        %v979 = vand.u32 %v447, 4294901760
        %v980 = vsub.f32 %v447, %v979
        %v981 = vand.u32 %v980, 4294901760
        %982 = vmatprep.subr.mxu0 %v981
        %v983 = vand.u32 %v446, 4294901760
        %v984 = vsub.f32 %v446, %v983
        %v985 = vand.u32 %v984, 4294901760
        %986 = vmatpush1.msra.mxu0 %v985
        %v987 = vand.u32 %v449, 4294901760
        %v988 = vsub.f32 %v449, %v987
        %v989 = vand.u32 %v988, 4294901760
        %990 = vmatprep.subr.mxu0 %v989
        %v991 = vand.u32 %v448, 4294901760
        %v992 = vsub.f32 %v448, %v991
        %v993 = vand.u32 %v992, 4294901760
        %994 = vmatpush1.msra.mxu0 %v993
        %995 = vmatprep.subr.mxu0 0.0
        %996 = vmatpush1.msra.mxu0 0.0
        %997 = vmatprep.subr.mxu0 0.0
        %998 = vmatpush1.msra.mxu0 0.0
        %999 = vmatprep.subr.mxu0 0.0
        %1000 = vmatpush1.msra.mxu0 0.0
        %1001 = vmatprep.subr.mxu0 0.0
        %1002 = vmatpush1.msra.mxu0 0.0
        %1003 = vmatprep.subr.mxu0 0.0
        %1004 = vmatpush1.msra.mxu0 0.0
        %1005 = vmatprep.subr.mxu0 0.0
        %1006 = vmatpush1.msra.mxu0 0.0
        %1007 = vmatprep.subr.mxu0 0.0
        %1008 = vmatpush1.msra.mxu0 0.0
        %1009 = vmatprep.subr.mxu0 0.0
        %1010 = vmatpush1.msra.mxu0 0.0
        %1011 = vmatprep.subr.mxu0 0.0
        %1012 = vmatpush1.msra.mxu0 0.0
        %1013 = vmatprep.subr.mxu0 0.0
        %1014 = vmatpush1.msra.mxu0 0.0
        %1015 = vmatprep.subr.mxu0 0.0
        %1016 = vmatpush1.msra.mxu0 0.0
        %1017 = vmatprep.subr.mxu0 0.0
        %1018 = vmatpush1.msra.mxu0 0.0
        %1019 = vmatprep.subr.mxu0 0.0
        %1020 = vmatpush1.msra.mxu0 0.0
        %1021 = vmatprep.subr.mxu0 0.0
        %1022 = vmatpush1.msra.mxu0 0.0
        %1023 = vmatprep.subr.mxu0 0.0
        %1024 = vmatpush1.msra.mxu0 0.0
        %1025 = vmatprep.subr.mxu0 0.0
        %1026 = vmatpush1.msra.mxu0 0.0
        %1027 = vmatprep.subr.mxu0 0.0
        %1028 = vmatpush1.msra.mxu0 0.0
        %1029 = vmatprep.subr.mxu0 0.0
        %1030 = vmatpush1.msra.mxu0 0.0
        %1031 = vmatprep.subr.mxu0 0.0
        %1032 = vmatpush1.msra.mxu0 0.0
        %1033 = vmatprep.subr.mxu0 0.0
        %1034 = vmatpush1.msra.mxu0 0.0
        %1035 = vmatprep.subr.mxu0 0.0
        %1036 = vmatpush1.msra.mxu0 0.0
        %1037 = vmatprep.subr.mxu0 0.0
        %1038 = vmatpush1.msra.mxu0 0.0
        %1039 = vmatprep.subr.mxu0 0.0
        %1040 = vmatpush1.msra.mxu0 0.0
        %1041 = vmatprep.subr.mxu0 0.0
        %1042 = vmatpush1.msra.mxu0 0.0
        %1043 = vmatprep.subr.mxu0 0.0
        %1044 = vmatpush1.msra.mxu0 0.0
        %1045 = vmatprep.subr.mxu0 0.0
        %1046 = vmatpush1.msra.mxu0 0.0
        %1047 = vmatprep.subr.mxu0 0.0
        %1048 = vmatpush1.msra.mxu0 0.0
        %1049 = vmatprep.subr.mxu0 0.0
        %1050 = vmatpush1.msra.mxu0 0.0
        %1051 = vmatprep.mubr.f32.mxu0 0.0
        %v1052 = vand.u32 %v480, 4294901760
        %1053 = vmatmul.mubr.f32.gmra.mrb[0].mxu0 %v1052
        %v1054 = vpop.f32.mrb[0].mxu0
        %v1055 = vadd.f32 %v932, %v1054
        %v1056 = vpop.f32.mrb[0].mxu0
        %v1057 = vadd.f32 %v934, %v1056
        %1058 = vmatprep.mubr.f32.mxu0 0.0
        %v1059 = vand.u32 %v483, 4294901760
        %1060 = vmatmul.mubr.f32.gmra.mrb[0].mxu0 %v1059
        %v1061 = vpop.f32.mrb[0].mxu0
        %v1062 = vadd.f32 %v941, %v1061
        %v1063 = vpop.f32.mrb[0].mxu0
        %v1064 = vadd.f32 %v943, %v1063
        %1065 = vmatprep.mubr.f32.mxu0 0.0
        %v1066 = vand.u32 %v486, 4294901760
        %1067 = vmatmul.mubr.f32.gmra.mrb[0].mxu0 %v1066
        %v1068 = vpop.f32.mrb[0].mxu0
        %v1069 = vadd.f32 %v950, %v1068
        %v1070 = vpop.f32.mrb[0].mxu0
        %v1071 = vadd.f32 %v952, %v1070
        %1072 = vmatprep.mubr.f32.mxu0 0.0
        %v1073 = vand.u32 %v489, 4294901760
        %1074 = vmatmul.mubr.f32.gmra.mrb[0].mxu0 %v1073
        %v1075 = vpop.f32.mrb[0].mxu0
        %v1076 = vadd.f32 %v959, %v1075
        %v1077 = vpop.f32.mrb[0].mxu0
        %v1078 = vadd.f32 %v961, %v1077
        %1079 = vdwg.mxu0
        %v1080 = vand.u32 %v443, 4294901760
        %1081 = vmatprep.subr.mxu0 %v1080
        %v1082 = vand.u32 %v442, 4294901760
        %1083 = vmatpush1.msra.mxu0 %v1082
        %v1084 = vand.u32 %v445, 4294901760
        %1085 = vmatprep.subr.mxu0 %v1084
        %v1086 = vand.u32 %v444, 4294901760
        %1087 = vmatpush1.msra.mxu0 %v1086
        %v1088 = vand.u32 %v447, 4294901760
        %1089 = vmatprep.subr.mxu0 %v1088
        %v1090 = vand.u32 %v446, 4294901760
        %1091 = vmatpush1.msra.mxu0 %v1090
        %v1092 = vand.u32 %v449, 4294901760
        %1093 = vmatprep.subr.mxu0 %v1092
        %v1094 = vand.u32 %v448, 4294901760
        %1095 = vmatpush1.msra.mxu0 %v1094
        %1096 = vmatprep.subr.mxu0 0.0
        %1097 = vmatpush1.msra.mxu0 0.0
        %1098 = vmatprep.subr.mxu0 0.0
        %1099 = vmatpush1.msra.mxu0 0.0
        %1100 = vmatprep.subr.mxu0 0.0
        %1101 = vmatpush1.msra.mxu0 0.0
        %1102 = vmatprep.subr.mxu0 0.0
        %1103 = vmatpush1.msra.mxu0 0.0
        %1104 = vmatprep.subr.mxu0 0.0
        %1105 = vmatpush1.msra.mxu0 0.0
        %1106 = vmatprep.subr.mxu0 0.0
        %1107 = vmatpush1.msra.mxu0 0.0
        %1108 = vmatprep.subr.mxu0 0.0
        %1109 = vmatpush1.msra.mxu0 0.0
        %1110 = vmatprep.subr.mxu0 0.0
        %1111 = vmatpush1.msra.mxu0 0.0
        %1112 = vmatprep.subr.mxu0 0.0
        %1113 = vmatpush1.msra.mxu0 0.0
        %1114 = vmatprep.subr.mxu0 0.0
        %1115 = vmatpush1.msra.mxu0 0.0
        %1116 = vmatprep.subr.mxu0 0.0
        %1117 = vmatpush1.msra.mxu0 0.0
        %1118 = vmatprep.subr.mxu0 0.0
        %1119 = vmatpush1.msra.mxu0 0.0
        %1120 = vmatprep.subr.mxu0 0.0
        %1121 = vmatpush1.msra.mxu0 0.0
        %1122 = vmatprep.subr.mxu0 0.0
        %1123 = vmatpush1.msra.mxu0 0.0
        %1124 = vmatprep.subr.mxu0 0.0
        %1125 = vmatpush1.msra.mxu0 0.0
        %1126 = vmatprep.subr.mxu0 0.0
        %1127 = vmatpush1.msra.mxu0 0.0
        %1128 = vmatprep.subr.mxu0 0.0
        %1129 = vmatpush1.msra.mxu0 0.0
        %1130 = vmatprep.subr.mxu0 0.0
        %1131 = vmatpush1.msra.mxu0 0.0
        %1132 = vmatprep.subr.mxu0 0.0
        %1133 = vmatpush1.msra.mxu0 0.0
        %1134 = vmatprep.subr.mxu0 0.0
        %1135 = vmatpush1.msra.mxu0 0.0
        %1136 = vmatprep.subr.mxu0 0.0
        %1137 = vmatpush1.msra.mxu0 0.0
        %1138 = vmatprep.subr.mxu0 0.0
        %1139 = vmatpush1.msra.mxu0 0.0
        %1140 = vmatprep.subr.mxu0 0.0
        %1141 = vmatpush1.msra.mxu0 0.0
        %1142 = vmatprep.subr.mxu0 0.0
        %1143 = vmatpush1.msra.mxu0 0.0
        %1144 = vmatprep.subr.mxu0 0.0
        %1145 = vmatpush1.msra.mxu0 0.0
        %1146 = vmatprep.subr.mxu0 0.0
        %1147 = vmatpush1.msra.mxu0 0.0
        %1148 = vmatprep.subr.mxu0 0.0
        %1149 = vmatpush1.msra.mxu0 0.0
        %1150 = vmatprep.subr.mxu0 0.0
        %1151 = vmatpush1.msra.mxu0 0.0
        %1152 = vmatprep.mubr.f32.mxu0 0.0
        %v1153 = vand.u32 %v480, 4294901760
        %1154 = vmatmul.mubr.f32.gmra.mrb[0].mxu0 %v1153
        %v1155 = vpop.f32.mrb[0].mxu0
        %v1156 = vadd.f32 %v1055, %v1155
        %v1157 = vpop.f32.mrb[0].mxu0
        %v1158 = vadd.f32 %v1057, %v1157
        %1159 = vmatprep.mubr.f32.mxu0 0.0
        %v1160 = vand.u32 %v483, 4294901760
        %1161 = vmatmul.mubr.f32.gmra.mrb[0].mxu0 %v1160
        %v1162 = vpop.f32.mrb[0].mxu0
        %v1163 = vadd.f32 %v1062, %v1162
        %v1164 = vpop.f32.mrb[0].mxu0
        %v1165 = vadd.f32 %v1064, %v1164
        %1166 = vmatprep.mubr.f32.mxu0 0.0
        %v1167 = vand.u32 %v486, 4294901760
        %1168 = vmatmul.mubr.f32.gmra.mrb[0].mxu0 %v1167
        %v1169 = vpop.f32.mrb[0].mxu0
        %v1170 = vadd.f32 %v1069, %v1169
        %v1171 = vpop.f32.mrb[0].mxu0
        %v1172 = vadd.f32 %v1071, %v1171
        %1173 = vmatprep.mubr.f32.mxu0 0.0
        %v1174 = vand.u32 %v489, 4294901760
        %1175 = vmatmul.mubr.f32.gmra.mrb[0].mxu0 %v1174
        %v1176 = vpop.f32.mrb[0].mxu0
        %v1177 = vadd.f32 %v1076, %v1176
        %v1178 = vpop.f32.mrb[0].mxu0
        %v1179 = vadd.f32 %v1078, %v1178
        %1180 = vdwg.mxu0
        %v1181 = vmul.f32 %v1156, 0.5
        %v1182 = vmul.f32 %v1158, 0.5
        %v1183 = vmul.f32 %v1163, 0.5
        %v1184 = vmul.f32 %v1165, 0.5
        %v1185 = vmul.f32 %v1170, 0.5
        %v1186 = vmul.f32 %v1172, 0.5
        %v1187 = vmul.f32 %v1177, 0.5
        %v1188 = vmul.f32 %v1179, 0.5
        %v1189 = vmul.f32 %v1156, 0.70710677
        %v1190 = vmul.f32 %v1158, 0.70710677
        %v1191 = vmul.f32 %v1163, 0.70710677
        %v1192 = vmul.f32 %v1165, 0.70710677
        %v1193 = vmul.f32 %v1170, 0.70710677
        %v1194 = vmul.f32 %v1172, 0.70710677
        %v1195 = vmul.f32 %v1177, 0.70710677
        %v1196 = vmul.f32 %v1179, 0.70710677
        %v1197 = verf.f32.pop %v1189
        %v1198 = verf.f32.pop %v1190
        %v1199 = verf.f32.pop %v1191
        %v1200 = verf.f32.pop %v1192
        %v1201 = verf.f32.pop %v1193
        %v1202 = verf.f32.pop %v1194
        %v1203 = verf.f32.pop %v1195
        %v1204 = verf.f32.pop %v1196
        %v1205 = vadd.f32 %v1197, 1.0
        %v1206 = vadd.f32 %v1198, 1.0
        %v1207 = vadd.f32 %v1199, 1.0
        %v1208 = vadd.f32 %v1200, 1.0
        %v1209 = vadd.f32 %v1201, 1.0
        %v1210 = vadd.f32 %v1202, 1.0
        %v1211 = vadd.f32 %v1203, 1.0
        %v1212 = vadd.f32 %v1204, 1.0
        %v1213 = vmul.f32 %v1181, %v1205
        %v1214 = vmul.f32 %v1182, %v1206
        %v1215 = vmul.f32 %v1183, %v1207
        %v1216 = vmul.f32 %v1184, %v1208
        %v1217 = vmul.f32 %v1185, %v1209
        %v1218 = vmul.f32 %v1186, %v1210
        %v1219 = vmul.f32 %v1187, %v1211
        %v1220 = vmul.f32 %v1188, %v1212
        %1221 = vrot.lane.b32.xlu0 %v1213, 2
        %v1222 = vpop.permute.xlu0 %1221
        %1223 = vrot.lane.b32.xlu0 %v1215, 2
        %v1224 = vpop.permute.xlu0 %1223
        %1225 = vrot.lane.b32.xlu0 %v1217, 2
        %v1226 = vpop.permute.xlu0 %1225
        %1227 = vrot.lane.b32.xlu0 %v1219, 2
        %v1228 = vpop.permute.xlu0 %1227
        %1229 = vrot.lane.b32.xlu0 %v1214, 2
        %v1230 = vpop.permute.xlu0 %1229
        %1231 = vrot.lane.b32.xlu0 %v1216, 2
        %v1232 = vpop.permute.xlu0 %1231
        %1233 = vrot.lane.b32.xlu0 %v1218, 2
        %v1234 = vpop.permute.xlu0 %1233
        %1235 = vrot.lane.b32.xlu0 %v1220, 2
        %v1236 = vpop.permute.xlu0 %1235
        %v1237 = vlaneseq
        %v1238 = vand.u32 %v1237, 127
        %vm1239 = vcmp.lt.s32.totalorder %v1238, 2
        %v1240 = vsel %vm1239, %v1222, %v1230
        %v1241 = vsel %vm1239, %v1224, %v1232
        %v1242 = vsel %vm1239, %v1226, %v1234
        %v1243 = vsel %vm1239, %v1228, %v1236
        %v1244 = vsel %vm1239, %v1230, %v1222
        %v1245 = vsel %vm1239, %v1232, %v1224
        %v1246 = vsel %vm1239, %v1234, %v1226
        %v1247 = vsel %vm1239, %v1236, %v1228
        %v1248 = vld [vmem:[#allocation7] sm:$0xff]
        %v1249 = vld [vmem:[#allocation7 + $0x8] sm:$0xff]
        %v1250 = vld [vmem:[#allocation7 + $0x10] sm:$0xff]
        %v1251 = vld [vmem:[#allocation7 + $0x18] sm:$0xff]
        %v1252 = vld [vmem:[#allocation7 + $0x20] sm:$0xff]
        %v1253 = vld [vmem:[#allocation7 + $0x28] sm:$0xff]
        %v1254 = vld [vmem:[#allocation7 + $0x30] sm:$0xff]
        %v1255 = vld [vmem:[#allocation7 + $0x38] sm:$0xff]
        %v1256 = vmul.f32 %v1248, %v1244
        %v1257 = vmul.f32 %v1249, %v1240
        %v1258 = vmul.f32 %v1250, %v1245
        %v1259 = vmul.f32 %v1251, %v1241
        %v1260 = vmul.f32 %v1252, %v1246
        %v1261 = vmul.f32 %v1253, %v1242
        %v1262 = vmul.f32 %v1254, %v1247
        %v1263 = vmul.f32 %v1255, %v1243
        %1264 = vrot.lane.b32.xlu0 %v1213, 1
        %v1265 = vpop.permute.xlu0 %1264
        %1266 = vrot.lane.b32.xlu0 %v1215, 1
        %v1267 = vpop.permute.xlu0 %1266
        %1268 = vrot.lane.b32.xlu0 %v1217, 1
        %v1269 = vpop.permute.xlu0 %1268
        %1270 = vrot.lane.b32.xlu0 %v1219, 1
        %v1271 = vpop.permute.xlu0 %1270
        %1272 = vrot.lane.b32.xlu0 %v1214, 1
        %v1273 = vpop.permute.xlu0 %1272
        %1274 = vrot.lane.b32.xlu0 %v1216, 1
        %v1275 = vpop.permute.xlu0 %1274
        %1276 = vrot.lane.b32.xlu0 %v1218, 1
        %v1277 = vpop.permute.xlu0 %1276
        %1278 = vrot.lane.b32.xlu0 %v1220, 1
        %v1279 = vpop.permute.xlu0 %1278
        %vm1280 = vcmp.lt.s32.totalorder %v1238, 1
        %v1281 = vsel %vm1280, %v1265, %v1273
        %v1282 = vsel %vm1280, %v1267, %v1275
        %v1283 = vsel %vm1280, %v1269, %v1277
        %v1284 = vsel %vm1280, %v1271, %v1279
        %v1285 = vsel %vm1280, %v1273, %v1265
        %v1286 = vsel %vm1280, %v1275, %v1267
        %v1287 = vsel %vm1280, %v1277, %v1269
        %v1288 = vsel %vm1280, %v1279, %v1271
        %s1289 = scalar_lea.vmem [#allocation7], 64
        %v1290 = vld [vmem:[%s1289] sm:$0xff]
        %v1291 = vld [vmem:[%s1289 + $0x8] sm:$0xff]
        %v1292 = vld [vmem:[%s1289 + $0x10] sm:$0xff]
        %v1293 = vld [vmem:[%s1289 + $0x18] sm:$0xff]
        %v1294 = vld [vmem:[%s1289 + $0x20] sm:$0xff]
        %v1295 = vld [vmem:[%s1289 + $0x28] sm:$0xff]
        %v1296 = vld [vmem:[%s1289 + $0x30] sm:$0xff]
        %v1297 = vld [vmem:[%s1289 + $0x38] sm:$0xff]
        %v1298 = vmul.f32 %v1290, %v1285
        %v1299 = vmul.f32 %v1291, %v1281
        %v1300 = vmul.f32 %v1292, %v1286
        %v1301 = vmul.f32 %v1293, %v1282
        %v1302 = vmul.f32 %v1294, %v1287
        %v1303 = vmul.f32 %v1295, %v1283
        %v1304 = vmul.f32 %v1296, %v1288
        %v1305 = vmul.f32 %v1297, %v1284
        %v1306 = vadd.f32 %v1256, %v1298
        %v1307 = vadd.f32 %v1257, %v1299
        %v1308 = vadd.f32 %v1258, %v1300
        %v1309 = vadd.f32 %v1259, %v1301
        %v1310 = vadd.f32 %v1260, %v1302
        %v1311 = vadd.f32 %v1261, %v1303
        %v1312 = vadd.f32 %v1262, %v1304
        %v1313 = vadd.f32 %v1263, %v1305
        %s1314 = scalar_lea.vmem [#allocation7], 128
        %v1315 = vld [vmem:[%s1314] sm:$0xff]
        %v1316 = vld [vmem:[%s1314 + $0x8] sm:$0xff]
        %v1317 = vld [vmem:[%s1314 + $0x10] sm:$0xff]
        %v1318 = vld [vmem:[%s1314 + $0x18] sm:$0xff]
        %v1319 = vld [vmem:[%s1314 + $0x20] sm:$0xff]
        %v1320 = vld [vmem:[%s1314 + $0x28] sm:$0xff]
        %v1321 = vld [vmem:[%s1314 + $0x30] sm:$0xff]
        %v1322 = vld [vmem:[%s1314 + $0x38] sm:$0xff]
        %v1323 = vmul.f32 %v1315, %v1213
        %v1324 = vmul.f32 %v1316, %v1214
        %v1325 = vmul.f32 %v1317, %v1215
        %v1326 = vmul.f32 %v1318, %v1216
        %v1327 = vmul.f32 %v1319, %v1217
        %v1328 = vmul.f32 %v1320, %v1218
        %v1329 = vmul.f32 %v1321, %v1219
        %v1330 = vmul.f32 %v1322, %v1220
        %v1331 = vadd.f32 %v1306, %v1323
        %v1332 = vadd.f32 %v1307, %v1324
        %v1333 = vadd.f32 %v1308, %v1325
        %v1334 = vadd.f32 %v1309, %v1326
        %v1335 = vadd.f32 %v1310, %v1327
        %v1336 = vadd.f32 %v1311, %v1328
        %v1337 = vadd.f32 %v1312, %v1329
        %v1338 = vadd.f32 %v1313, %v1330
        %1339 = vrot.lane.b32.xlu0 %v1213, 127
        %v1340 = vpop.permute.xlu0 %1339
        %1341 = vrot.lane.b32.xlu0 %v1215, 127
        %v1342 = vpop.permute.xlu0 %1341
        %1343 = vrot.lane.b32.xlu0 %v1217, 127
        %v1344 = vpop.permute.xlu0 %1343
        %1345 = vrot.lane.b32.xlu0 %v1219, 127
        %v1346 = vpop.permute.xlu0 %1345
        %1347 = vrot.lane.b32.xlu0 %v1214, 127
        %v1348 = vpop.permute.xlu0 %1347
        %1349 = vrot.lane.b32.xlu0 %v1216, 127
        %v1350 = vpop.permute.xlu0 %1349
        %1351 = vrot.lane.b32.xlu0 %v1218, 127
        %v1352 = vpop.permute.xlu0 %1351
        %1353 = vrot.lane.b32.xlu0 %v1220, 127
        %v1354 = vpop.permute.xlu0 %1353
        %vm1355 = vcmp.lt.s32.totalorder %v1238, 127
        %v1356 = vsel %vm1355, %v1340, %v1348
        %v1357 = vsel %vm1355, %v1342, %v1350
        %v1358 = vsel %vm1355, %v1344, %v1352
        %v1359 = vsel %vm1355, %v1346, %v1354
        %v1360 = vsel %vm1355, %v1348, %v1340
        %v1361 = vsel %vm1355, %v1350, %v1342
        %v1362 = vsel %vm1355, %v1352, %v1344
        %v1363 = vsel %vm1355, %v1354, %v1346
        %s1364 = scalar_lea.vmem [#allocation7], 192
        %v1365 = vld [vmem:[%s1364] sm:$0xff]
        %v1366 = vld [vmem:[%s1364 + $0x8] sm:$0xff]
        %v1367 = vld [vmem:[%s1364 + $0x10] sm:$0xff]
        %v1368 = vld [vmem:[%s1364 + $0x18] sm:$0xff]
        %v1369 = vld [vmem:[%s1364 + $0x20] sm:$0xff]
        %v1370 = vld [vmem:[%s1364 + $0x28] sm:$0xff]
        %v1371 = vld [vmem:[%s1364 + $0x30] sm:$0xff]
        %v1372 = vld [vmem:[%s1364 + $0x38] sm:$0xff]
        %v1373 = vmul.f32 %v1365, %v1356
        %v1374 = vmul.f32 %v1366, %v1360
        %v1375 = vmul.f32 %v1367, %v1357
        %v1376 = vmul.f32 %v1368, %v1361
        %v1377 = vmul.f32 %v1369, %v1358
        %v1378 = vmul.f32 %v1370, %v1362
        %v1379 = vmul.f32 %v1371, %v1359
        %v1380 = vmul.f32 %v1372, %v1363
        %v1381 = vadd.f32 %v1331, %v1373
        %v1382 = vadd.f32 %v1332, %v1374
        %v1383 = vadd.f32 %v1333, %v1375
        %v1384 = vadd.f32 %v1334, %v1376
        %v1385 = vadd.f32 %v1335, %v1377
        %v1386 = vadd.f32 %v1336, %v1378
        %v1387 = vadd.f32 %v1337, %v1379
        %v1388 = vadd.f32 %v1338, %v1380
        %1389 = vrot.lane.b32.xlu0 %v1213, 126
        %v1390 = vpop.permute.xlu0 %1389
        %1391 = vrot.lane.b32.xlu0 %v1215, 126
        %v1392 = vpop.permute.xlu0 %1391
        %1393 = vrot.lane.b32.xlu0 %v1217, 126
        %v1394 = vpop.permute.xlu0 %1393
        %1395 = vrot.lane.b32.xlu0 %v1219, 126
        %v1396 = vpop.permute.xlu0 %1395
        %1397 = vrot.lane.b32.xlu0 %v1214, 126
        %v1398 = vpop.permute.xlu0 %1397
        %1399 = vrot.lane.b32.xlu0 %v1216, 126
        %v1400 = vpop.permute.xlu0 %1399
        %1401 = vrot.lane.b32.xlu0 %v1218, 126
        %v1402 = vpop.permute.xlu0 %1401
        %1403 = vrot.lane.b32.xlu0 %v1220, 126
        %v1404 = vpop.permute.xlu0 %1403
        %vm1405 = vcmp.lt.s32.totalorder %v1238, 126
        %v1406 = vsel %vm1405, %v1390, %v1398
        %v1407 = vsel %vm1405, %v1392, %v1400
        %v1408 = vsel %vm1405, %v1394, %v1402
        %v1409 = vsel %vm1405, %v1396, %v1404
        %v1410 = vsel %vm1405, %v1398, %v1390
        %v1411 = vsel %vm1405, %v1400, %v1392
        %v1412 = vsel %vm1405, %v1402, %v1394
        %v1413 = vsel %vm1405, %v1404, %v1396
        %s1414 = scalar_lea.vmem [#allocation7], 256
        %v1415 = vld [vmem:[%s1414] sm:$0xff]
        %v1416 = vld [vmem:[%s1414 + $0x8] sm:$0xff]
        %v1417 = vld [vmem:[%s1414 + $0x10] sm:$0xff]
        %v1418 = vld [vmem:[%s1414 + $0x18] sm:$0xff]
        %v1419 = vld [vmem:[%s1414 + $0x20] sm:$0xff]
        %v1420 = vld [vmem:[%s1414 + $0x28] sm:$0xff]
        %v1421 = vld [vmem:[%s1414 + $0x30] sm:$0xff]
        %v1422 = vld [vmem:[%s1414 + $0x38] sm:$0xff]
        %v1423 = vmul.f32 %v1415, %v1406
        %v1424 = vmul.f32 %v1416, %v1410
        %v1425 = vmul.f32 %v1417, %v1407
        %v1426 = vmul.f32 %v1418, %v1411
        %v1427 = vmul.f32 %v1419, %v1408
        %v1428 = vmul.f32 %v1420, %v1412
        %v1429 = vmul.f32 %v1421, %v1409
        %v1430 = vmul.f32 %v1422, %v1413
        %v1431 = vadd.f32 %v1381, %v1423
        %v1432 = vadd.f32 %v1382, %v1424
        %v1433 = vadd.f32 %v1383, %v1425
        %v1434 = vadd.f32 %v1384, %v1426
        %v1435 = vadd.f32 %v1385, %v1427
        %v1436 = vadd.f32 %v1386, %v1428
        %v1437 = vadd.f32 %v1387, %v1429
        %v1438 = vadd.f32 %v1388, %v1430
        %v1439 = vld [vmem:[%s4] sm:$0xff]
        %v1440 = vld [vmem:[%s4 + $0x8] sm:$0xff]
        %v1441 = vld [vmem:[%s4 + $0x10] sm:$0xff]
        %v1442 = vld [vmem:[%s4 + $0x18] sm:$0xff]
        %1444 = vset.pattern.permute.xlu0 0
        %1445 = vperm.xlu0 %1444, %v1439
        %v1446 = vpop.permute.xlu0 %1445
        %1449 = vset.pattern.permute.xlu0 0
        %1450 = vperm.xlu0 %1449, %v1440
        %v1451 = vpop.permute.xlu0 %1450
        %1454 = vset.pattern.permute.xlu0 0
        %1455 = vperm.xlu0 %1454, %v1441
        %v1456 = vpop.permute.xlu0 %1455
        %1459 = vset.pattern.permute.xlu0 0
        %1460 = vperm.xlu0 %1459, %v1442
        %v1461 = vpop.permute.xlu0 %1460
        %v1463 = vadd.f32 %v1431, %v1446
        %v1464 = vadd.f32 %v1432, %v1446
        %v1465 = vadd.f32 %v1433, %v1451
        %v1466 = vadd.f32 %v1434, %v1451
        %v1467 = vadd.f32 %v1435, %v1456
        %v1468 = vadd.f32 %v1436, %v1456
        %v1469 = vadd.f32 %v1437, %v1461
        %v1470 = vadd.f32 %v1438, %v1461
        %1471 = vrot.lane.b32.xlu0 %v1463, 9
        %v1472 = vpop.permute.xlu0 %1471
        %1473 = vrot.lane.b32.xlu0 %v1465, 9
        %v1474 = vpop.permute.xlu0 %1473
        %1475 = vrot.lane.b32.xlu0 %v1467, 9
        %v1476 = vpop.permute.xlu0 %1475
        %1477 = vrot.lane.b32.xlu0 %v1469, 9
        %v1478 = vpop.permute.xlu0 %1477
        %1479 = vrot.lane.b32.xlu0 %v1464, 9
        %v1480 = vpop.permute.xlu0 %1479
        %1481 = vrot.lane.b32.xlu0 %v1466, 9
        %v1482 = vpop.permute.xlu0 %1481
        %1483 = vrot.lane.b32.xlu0 %v1468, 9
        %v1484 = vpop.permute.xlu0 %1483
        %1485 = vrot.lane.b32.xlu0 %v1470, 9
        %v1486 = vpop.permute.xlu0 %1485
        %vm1487 = vcmp.lt.s32.totalorder %v1238, 9
        %v1488 = vsel %vm1487, %v1472, %v1480
        %v1489 = vsel %vm1487, %v1474, %v1482
        %v1490 = vsel %vm1487, %v1476, %v1484
        %v1491 = vsel %vm1487, %v1478, %v1486
        %v1492 = vsel %vm1487, %v1480, %v1472
        %v1493 = vsel %vm1487, %v1482, %v1474
        %v1494 = vsel %vm1487, %v1484, %v1476
        %v1495 = vsel %vm1487, %v1486, %v1478
        %v1496 = vld [vmem:[#allocation10] sm:$0x3]
        %v1498 = vlaneseq
        %v1499 = vshrl.u32 %v1498, 7
        %v1500 = vsub.s32 0, %v1499
        %v1501 = vrot.slane %v1496, %v1500
        %v1502 = vlaneseq
        %v1503 = vshrl.u32 %v1502, 7
        %v1504 = vsub.s32 1, %v1503
        %v1505 = vrot.slane %v1496, %v1504
        %v1508 = vmul.f32 %v1501, %v1492
        %v1509 = vmul.f32 %v1505, %v1488
        %v1510 = vmul.f32 %v1501, %v1493
        %v1511 = vmul.f32 %v1505, %v1489
        %v1512 = vmul.f32 %v1501, %v1494
        %v1513 = vmul.f32 %v1505, %v1490
        %v1514 = vmul.f32 %v1501, %v1495
        %v1515 = vmul.f32 %v1505, %v1491
        %1516 = vst [vmem:[#allocation3] sm:$0xff] %v1508
        %1517 = vst [vmem:[#allocation3 + $0x8] sm:$0xff] %v1509
        %1518 = vst [vmem:[#allocation3 + $0x10] sm:$0xff] %v1510
        %1519 = vst [vmem:[#allocation3 + $0x18] sm:$0xff] %v1511
        %1520 = vst [vmem:[#allocation3 + $0x20] sm:$0xff] %v1512
        %1521 = vst [vmem:[#allocation3 + $0x28] sm:$0xff] %v1513
        %1522 = vst [vmem:[#allocation3 + $0x30] sm:$0xff] %v1514
        %1523 = vst [vmem:[#allocation3 + $0x38] sm:$0xff] %v1515
        %1524 = vrot.lane.b32.xlu0 %v1463, 6
        %v1525 = vpop.permute.xlu0 %1524
        %1526 = vrot.lane.b32.xlu0 %v1465, 6
        %v1527 = vpop.permute.xlu0 %1526
        %1528 = vrot.lane.b32.xlu0 %v1467, 6
        %v1529 = vpop.permute.xlu0 %1528
        %1530 = vrot.lane.b32.xlu0 %v1469, 6
        %v1531 = vpop.permute.xlu0 %1530
        %1532 = vrot.lane.b32.xlu0 %v1464, 6
        %v1533 = vpop.permute.xlu0 %1532
        %1534 = vrot.lane.b32.xlu0 %v1466, 6
        %v1535 = vpop.permute.xlu0 %1534
        %1536 = vrot.lane.b32.xlu0 %v1468, 6
        %v1537 = vpop.permute.xlu0 %1536
        %1538 = vrot.lane.b32.xlu0 %v1470, 6
        %v1539 = vpop.permute.xlu0 %1538
        %vm1540 = vcmp.lt.s32.totalorder %v1238, 6
        %v1541 = vsel %vm1540, %v1525, %v1533
        %v1542 = vsel %vm1540, %v1527, %v1535
        %v1543 = vsel %vm1540, %v1529, %v1537
        %v1544 = vsel %vm1540, %v1531, %v1539
        %v1545 = vsel %vm1540, %v1533, %v1525
        %v1546 = vsel %vm1540, %v1535, %v1527
        %v1547 = vsel %vm1540, %v1537, %v1529
        %v1548 = vsel %vm1540, %v1539, %v1531
        %s1549 = scalar_lea.vmem [#allocation10], 2
        %v1550 = vld [vmem:[%s1549] sm:$0x3]
        %v1552 = vlaneseq
        %v1553 = vshrl.u32 %v1552, 7
        %v1554 = vsub.s32 0, %v1553
        %v1555 = vrot.slane %v1550, %v1554
        %v1556 = vlaneseq
        %v1557 = vshrl.u32 %v1556, 7
        %v1558 = vsub.s32 1, %v1557
        %v1559 = vrot.slane %v1550, %v1558
        %v1562 = vmul.f32 %v1555, %v1545
        %v1563 = vmul.f32 %v1559, %v1541
        %v1564 = vmul.f32 %v1555, %v1546
        %v1565 = vmul.f32 %v1559, %v1542
        %v1566 = vmul.f32 %v1555, %v1547
        %v1567 = vmul.f32 %v1559, %v1543
        %v1568 = vmul.f32 %v1555, %v1548
        %v1569 = vmul.f32 %v1559, %v1544
        %1570 = vst [vmem:[#allocation3 + $0x40] sm:$0xff] %v1562
        %1571 = vst [vmem:[#allocation3 + $0x48] sm:$0xff] %v1563
        %1572 = vst [vmem:[#allocation3 + $0x50] sm:$0xff] %v1564
        %1573 = vst [vmem:[#allocation3 + $0x58] sm:$0xff] %v1565
        %1574 = vst [vmem:[#allocation3 + $0x60] sm:$0xff] %v1566
        %1575 = vst [vmem:[#allocation3 + $0x68] sm:$0xff] %v1567
        %1576 = vst [vmem:[#allocation3 + $0x70] sm:$0xff] %v1568
        %1577 = vst [vmem:[#allocation3 + $0x78] sm:$0xff] %v1569
        %1578 = vrot.lane.b32.xlu0 %v1463, 3
        %v1579 = vpop.permute.xlu0 %1578
        %1580 = vrot.lane.b32.xlu0 %v1465, 3
        %v1581 = vpop.permute.xlu0 %1580
        %1582 = vrot.lane.b32.xlu0 %v1467, 3
        %v1583 = vpop.permute.xlu0 %1582
        %1584 = vrot.lane.b32.xlu0 %v1469, 3
        %v1585 = vpop.permute.xlu0 %1584
        %1586 = vrot.lane.b32.xlu0 %v1464, 3
        %v1587 = vpop.permute.xlu0 %1586
        %1588 = vrot.lane.b32.xlu0 %v1466, 3
        %v1589 = vpop.permute.xlu0 %1588
        %1590 = vrot.lane.b32.xlu0 %v1468, 3
        %v1591 = vpop.permute.xlu0 %1590
        %1592 = vrot.lane.b32.xlu0 %v1470, 3
        %v1593 = vpop.permute.xlu0 %1592
        %vm1594 = vcmp.lt.s32.totalorder %v1238, 3
        %v1595 = vsel %vm1594, %v1579, %v1587
        %v1596 = vsel %vm1594, %v1581, %v1589
        %v1597 = vsel %vm1594, %v1583, %v1591
        %v1598 = vsel %vm1594, %v1585, %v1593
        %v1599 = vsel %vm1594, %v1587, %v1579
        %v1600 = vsel %vm1594, %v1589, %v1581
        %v1601 = vsel %vm1594, %v1591, %v1583
        %v1602 = vsel %vm1594, %v1593, %v1585
        %s1603 = scalar_lea.vmem [#allocation10], 4
        %v1604 = vld [vmem:[%s1603] sm:$0x3]
        %v1606 = vlaneseq
        %v1607 = vshrl.u32 %v1606, 7
        %v1608 = vsub.s32 0, %v1607
        %v1609 = vrot.slane %v1604, %v1608
        %v1610 = vlaneseq
        %v1611 = vshrl.u32 %v1610, 7
        %v1612 = vsub.s32 1, %v1611
        %v1613 = vrot.slane %v1604, %v1612
        %v1616 = vmul.f32 %v1609, %v1599
        %v1617 = vmul.f32 %v1613, %v1595
        %v1618 = vmul.f32 %v1609, %v1600
        %v1619 = vmul.f32 %v1613, %v1596
        %v1620 = vmul.f32 %v1609, %v1601
        %v1621 = vmul.f32 %v1613, %v1597
        %v1622 = vmul.f32 %v1609, %v1602
        %v1623 = vmul.f32 %v1613, %v1598
        %1624 = vst [vmem:[#allocation3 + $0x80] sm:$0xff] %v1616
        %1625 = vst [vmem:[#allocation3 + $0x88] sm:$0xff] %v1617
        %1626 = vst [vmem:[#allocation3 + $0x90] sm:$0xff] %v1618
        %1627 = vst [vmem:[#allocation3 + $0x98] sm:$0xff] %v1619
        %1628 = vst [vmem:[#allocation3 + $0xa0] sm:$0xff] %v1620
        %1629 = vst [vmem:[#allocation3 + $0xa8] sm:$0xff] %v1621
        %1630 = vst [vmem:[#allocation3 + $0xb0] sm:$0xff] %v1622
        %1631 = vst [vmem:[#allocation3 + $0xb8] sm:$0xff] %v1623
        %1632 = vst [vmem:[#allocation3 + $0xc0] sm:$0xff] %v1463
        %1633 = vst [vmem:[#allocation3 + $0xc8] sm:$0xff] %v1464
        %1634 = vst [vmem:[#allocation3 + $0xd0] sm:$0xff] %v1465
        %1635 = vst [vmem:[#allocation3 + $0xd8] sm:$0xff] %v1466
        %1636 = vst [vmem:[#allocation3 + $0xe0] sm:$0xff] %v1467
        %1637 = vst [vmem:[#allocation3 + $0xe8] sm:$0xff] %v1468
        %1638 = vst [vmem:[#allocation3 + $0xf0] sm:$0xff] %v1469
        %1639 = vst [vmem:[#allocation3 + $0xf8] sm:$0xff] %v1470
        %1640 = vrot.lane.b32.xlu0 %v1463, 125
        %v1641 = vpop.permute.xlu0 %1640
        %1642 = vrot.lane.b32.xlu0 %v1465, 125
        %v1643 = vpop.permute.xlu0 %1642
        %1644 = vrot.lane.b32.xlu0 %v1467, 125
        %v1645 = vpop.permute.xlu0 %1644
        %1646 = vrot.lane.b32.xlu0 %v1469, 125
        %v1647 = vpop.permute.xlu0 %1646
        %1648 = vrot.lane.b32.xlu0 %v1464, 125
        %v1649 = vpop.permute.xlu0 %1648
        %1650 = vrot.lane.b32.xlu0 %v1466, 125
        %v1651 = vpop.permute.xlu0 %1650
        %1652 = vrot.lane.b32.xlu0 %v1468, 125
        %v1653 = vpop.permute.xlu0 %1652
        %1654 = vrot.lane.b32.xlu0 %v1470, 125
        %v1655 = vpop.permute.xlu0 %1654
        %vm1656 = vcmp.lt.s32.totalorder %v1238, 125
        %v1657 = vsel %vm1656, %v1641, %v1649
        %v1658 = vsel %vm1656, %v1643, %v1651
        %v1659 = vsel %vm1656, %v1645, %v1653
        %v1660 = vsel %vm1656, %v1647, %v1655
        %v1661 = vsel %vm1656, %v1649, %v1641
        %v1662 = vsel %vm1656, %v1651, %v1643
        %v1663 = vsel %vm1656, %v1653, %v1645
        %v1664 = vsel %vm1656, %v1655, %v1647
        %s1665 = scalar_lea.vmem [#allocation10], 8
        %v1666 = vld [vmem:[%s1665] sm:$0x3]
        %v1668 = vlaneseq
        %v1669 = vshrl.u32 %v1668, 7
        %v1670 = vsub.s32 0, %v1669
        %v1671 = vrot.slane %v1666, %v1670
        %v1672 = vlaneseq
        %v1673 = vshrl.u32 %v1672, 7
        %v1674 = vsub.s32 1, %v1673
        %v1675 = vrot.slane %v1666, %v1674
        %v1678 = vmul.f32 %v1671, %v1657
        %v1679 = vmul.f32 %v1675, %v1661
        %v1680 = vmul.f32 %v1671, %v1658
        %v1681 = vmul.f32 %v1675, %v1662
        %v1682 = vmul.f32 %v1671, %v1659
        %v1683 = vmul.f32 %v1675, %v1663
        %v1684 = vmul.f32 %v1671, %v1660
        %v1685 = vmul.f32 %v1675, %v1664
        %1686 = vst [vmem:[#allocation3 + $0x100] sm:$0xff] %v1678
        %1687 = vst [vmem:[#allocation3 + $0x108] sm:$0xff] %v1679
        %1688 = vst [vmem:[#allocation3 + $0x110] sm:$0xff] %v1680
        %1689 = vst [vmem:[#allocation3 + $0x118] sm:$0xff] %v1681
        %1690 = vst [vmem:[#allocation3 + $0x120] sm:$0xff] %v1682
        %1691 = vst [vmem:[#allocation3 + $0x128] sm:$0xff] %v1683
        %1692 = vst [vmem:[#allocation3 + $0x130] sm:$0xff] %v1684
        %1693 = vst [vmem:[#allocation3 + $0x138] sm:$0xff] %v1685
        %1694 = vrot.lane.b32.xlu0 %v1463, 122
        %v1695 = vpop.permute.xlu0 %1694
        %1696 = vrot.lane.b32.xlu0 %v1465, 122
        %v1697 = vpop.permute.xlu0 %1696
        %1698 = vrot.lane.b32.xlu0 %v1467, 122
        %v1699 = vpop.permute.xlu0 %1698
        %1700 = vrot.lane.b32.xlu0 %v1469, 122
        %v1701 = vpop.permute.xlu0 %1700
        %1702 = vrot.lane.b32.xlu0 %v1464, 122
        %v1703 = vpop.permute.xlu0 %1702
        %1704 = vrot.lane.b32.xlu0 %v1466, 122
        %v1705 = vpop.permute.xlu0 %1704
        %1706 = vrot.lane.b32.xlu0 %v1468, 122
        %v1707 = vpop.permute.xlu0 %1706
        %1708 = vrot.lane.b32.xlu0 %v1470, 122
        %v1709 = vpop.permute.xlu0 %1708
        %vm1710 = vcmp.lt.s32.totalorder %v1238, 122
        %v1711 = vsel %vm1710, %v1695, %v1703
        %v1712 = vsel %vm1710, %v1697, %v1705
        %v1713 = vsel %vm1710, %v1699, %v1707
        %v1714 = vsel %vm1710, %v1701, %v1709
        %v1715 = vsel %vm1710, %v1703, %v1695
        %v1716 = vsel %vm1710, %v1705, %v1697
        %v1717 = vsel %vm1710, %v1707, %v1699
        %v1718 = vsel %vm1710, %v1709, %v1701
        %s1719 = scalar_lea.vmem [#allocation10], 10
        %v1720 = vld [vmem:[%s1719] sm:$0x3]
        %v1722 = vlaneseq
        %v1723 = vshrl.u32 %v1722, 7
        %v1724 = vsub.s32 0, %v1723
        %v1725 = vrot.slane %v1720, %v1724
        %v1726 = vlaneseq
        %v1727 = vshrl.u32 %v1726, 7
        %v1728 = vsub.s32 1, %v1727
        %v1729 = vrot.slane %v1720, %v1728
        %v1732 = vmul.f32 %v1725, %v1711
        %v1733 = vmul.f32 %v1729, %v1715
        %v1734 = vmul.f32 %v1725, %v1712
        %v1735 = vmul.f32 %v1729, %v1716
        %v1736 = vmul.f32 %v1725, %v1713
        %v1737 = vmul.f32 %v1729, %v1717
        %v1738 = vmul.f32 %v1725, %v1714
        %v1739 = vmul.f32 %v1729, %v1718
        %1740 = vst [vmem:[#allocation3 + $0x140] sm:$0xff] %v1732
        %1741 = vst [vmem:[#allocation3 + $0x148] sm:$0xff] %v1733
        %1742 = vst [vmem:[#allocation3 + $0x150] sm:$0xff] %v1734
        %1743 = vst [vmem:[#allocation3 + $0x158] sm:$0xff] %v1735
        %1744 = vst [vmem:[#allocation3 + $0x160] sm:$0xff] %v1736
        %1745 = vst [vmem:[#allocation3 + $0x168] sm:$0xff] %v1737
        %1746 = vst [vmem:[#allocation3 + $0x170] sm:$0xff] %v1738
        %1747 = vst [vmem:[#allocation3 + $0x178] sm:$0xff] %v1739
        %1748 = vrot.lane.b32.xlu0 %v1463, 119
        %v1749 = vpop.permute.xlu0 %1748
        %1750 = vrot.lane.b32.xlu0 %v1465, 119
        %v1751 = vpop.permute.xlu0 %1750
        %1752 = vrot.lane.b32.xlu0 %v1467, 119
        %v1753 = vpop.permute.xlu0 %1752
        %1754 = vrot.lane.b32.xlu0 %v1469, 119
        %v1755 = vpop.permute.xlu0 %1754
        %1756 = vrot.lane.b32.xlu0 %v1464, 119
        %v1757 = vpop.permute.xlu0 %1756
        %1758 = vrot.lane.b32.xlu0 %v1466, 119
        %v1759 = vpop.permute.xlu0 %1758
        %1760 = vrot.lane.b32.xlu0 %v1468, 119
        %v1761 = vpop.permute.xlu0 %1760
        %1762 = vrot.lane.b32.xlu0 %v1470, 119
        %v1763 = vpop.permute.xlu0 %1762
        %vm1764 = vcmp.lt.s32.totalorder %v1238, 119
        %v1765 = vsel %vm1764, %v1749, %v1757
        %v1766 = vsel %vm1764, %v1751, %v1759
        %v1767 = vsel %vm1764, %v1753, %v1761
        %v1768 = vsel %vm1764, %v1755, %v1763
        %v1769 = vsel %vm1764, %v1757, %v1749
        %v1770 = vsel %vm1764, %v1759, %v1751
        %v1771 = vsel %vm1764, %v1761, %v1753
        %v1772 = vsel %vm1764, %v1763, %v1755
        %s1773 = scalar_lea.vmem [#allocation10], 12
        %v1774 = vld [vmem:[%s1773] sm:$0x3]
        %v1776 = vlaneseq
        %v1777 = vshrl.u32 %v1776, 7
        %v1778 = vsub.s32 0, %v1777
        %v1779 = vrot.slane %v1774, %v1778
        %v1780 = vlaneseq
        %v1781 = vshrl.u32 %v1780, 7
        %v1782 = vsub.s32 1, %v1781
        %v1783 = vrot.slane %v1774, %v1782
        %v1786 = vmul.f32 %v1779, %v1765
        %v1787 = vmul.f32 %v1783, %v1769
        %v1788 = vmul.f32 %v1779, %v1766
        %v1789 = vmul.f32 %v1783, %v1770
        %v1790 = vmul.f32 %v1779, %v1767
        %v1791 = vmul.f32 %v1783, %v1771
        %v1792 = vmul.f32 %v1779, %v1768
        %v1793 = vmul.f32 %v1783, %v1772
        %1794 = vst [vmem:[#allocation3 + $0x180] sm:$0xff] %v1786
        %1795 = vst [vmem:[#allocation3 + $0x188] sm:$0xff] %v1787
        %1796 = vst [vmem:[#allocation3 + $0x190] sm:$0xff] %v1788
        %1797 = vst [vmem:[#allocation3 + $0x198] sm:$0xff] %v1789
        %1798 = vst [vmem:[#allocation3 + $0x1a0] sm:$0xff] %v1790
        %1799 = vst [vmem:[#allocation3 + $0x1a8] sm:$0xff] %v1791
        %1800 = vst [vmem:[#allocation3 + $0x1b0] sm:$0xff] %v1792
        %1801 = vst [vmem:[#allocation3 + $0x1b8] sm:$0xff] %v1793
        %v1802 = vld [vmem:[#allocation9] sm:$0xff]
        %v1803 = vld [vmem:[#allocation9 + $0x8] sm:$0xff]
        %v1804 = vld [vmem:[#allocation9 + $0x10] sm:$0xff]
        %v1805 = vld [vmem:[#allocation9 + $0x18] sm:$0xff]
        %v1806 = vld [vmem:[#allocation9 + $0x20] sm:$0xff]
        %v1807 = vld [vmem:[#allocation9 + $0x28] sm:$0xff]
        %v1808 = vld [vmem:[#allocation9 + $0x30] sm:$0xff]
        %v1809 = vld [vmem:[#allocation9 + $0x38] sm:$0xff]
        %v1810 = vld [vmem:[#allocation3] sm:$0xff]
        %v1811 = vld [vmem:[#allocation3 + $0x8] sm:$0xff]
        %v1812 = vld [vmem:[#allocation3 + $0x10] sm:$0xff]
        %v1813 = vld [vmem:[#allocation3 + $0x18] sm:$0xff]
        %v1814 = vld [vmem:[#allocation3 + $0x20] sm:$0xff]
        %v1815 = vld [vmem:[#allocation3 + $0x28] sm:$0xff]
        %v1816 = vld [vmem:[#allocation3 + $0x30] sm:$0xff]
        %v1817 = vld [vmem:[#allocation3 + $0x38] sm:$0xff]
        %v1818 = vld [vmem:[#allocation3 + $0x40] sm:$0xff]
        %v1819 = vld [vmem:[#allocation3 + $0x48] sm:$0xff]
        %v1820 = vld [vmem:[#allocation3 + $0x50] sm:$0xff]
        %v1821 = vld [vmem:[#allocation3 + $0x58] sm:$0xff]
        %v1822 = vld [vmem:[#allocation3 + $0x60] sm:$0xff]
        %v1823 = vld [vmem:[#allocation3 + $0x68] sm:$0xff]
        %v1824 = vld [vmem:[#allocation3 + $0x70] sm:$0xff]
        %v1825 = vld [vmem:[#allocation3 + $0x78] sm:$0xff]
        %v1826 = vld [vmem:[#allocation3 + $0x80] sm:$0xff]
        %v1827 = vld [vmem:[#allocation3 + $0x88] sm:$0xff]
        %v1828 = vld [vmem:[#allocation3 + $0x90] sm:$0xff]
        %v1829 = vld [vmem:[#allocation3 + $0x98] sm:$0xff]
        %v1830 = vld [vmem:[#allocation3 + $0xa0] sm:$0xff]
        %v1831 = vld [vmem:[#allocation3 + $0xa8] sm:$0xff]
        %v1832 = vld [vmem:[#allocation3 + $0xb0] sm:$0xff]
        %v1833 = vld [vmem:[#allocation3 + $0xb8] sm:$0xff]
        %v1834 = vld [vmem:[#allocation3 + $0xc0] sm:$0xff]
        %v1835 = vld [vmem:[#allocation3 + $0xc8] sm:$0xff]
        %v1836 = vld [vmem:[#allocation3 + $0xd0] sm:$0xff]
        %v1837 = vld [vmem:[#allocation3 + $0xd8] sm:$0xff]
        %v1838 = vld [vmem:[#allocation3 + $0xe0] sm:$0xff]
        %v1839 = vld [vmem:[#allocation3 + $0xe8] sm:$0xff]
        %v1840 = vld [vmem:[#allocation3 + $0xf0] sm:$0xff]
        %v1841 = vld [vmem:[#allocation3 + $0xf8] sm:$0xff]
        %v1842 = vld [vmem:[#allocation3 + $0x100] sm:$0xff]
        %v1843 = vld [vmem:[#allocation3 + $0x108] sm:$0xff]
        %v1844 = vld [vmem:[#allocation3 + $0x110] sm:$0xff]
        %v1845 = vld [vmem:[#allocation3 + $0x118] sm:$0xff]
        %v1846 = vld [vmem:[#allocation3 + $0x120] sm:$0xff]
        %v1847 = vld [vmem:[#allocation3 + $0x128] sm:$0xff]
        %v1848 = vld [vmem:[#allocation3 + $0x130] sm:$0xff]
        %v1849 = vld [vmem:[#allocation3 + $0x138] sm:$0xff]
        %v1850 = vld [vmem:[#allocation3 + $0x140] sm:$0xff]
        %v1851 = vld [vmem:[#allocation3 + $0x148] sm:$0xff]
        %v1852 = vld [vmem:[#allocation3 + $0x150] sm:$0xff]
        %v1853 = vld [vmem:[#allocation3 + $0x158] sm:$0xff]
        %v1854 = vld [vmem:[#allocation3 + $0x160] sm:$0xff]
        %v1855 = vld [vmem:[#allocation3 + $0x168] sm:$0xff]
        %v1856 = vld [vmem:[#allocation3 + $0x170] sm:$0xff]
        %v1857 = vld [vmem:[#allocation3 + $0x178] sm:$0xff]
        %v1858 = vld [vmem:[#allocation3 + $0x180] sm:$0xff]
        %v1859 = vld [vmem:[#allocation3 + $0x188] sm:$0xff]
        %v1860 = vld [vmem:[#allocation3 + $0x190] sm:$0xff]
        %v1861 = vld [vmem:[#allocation3 + $0x198] sm:$0xff]
        %v1862 = vld [vmem:[#allocation3 + $0x1a0] sm:$0xff]
        %v1863 = vld [vmem:[#allocation3 + $0x1a8] sm:$0xff]
        %v1864 = vld [vmem:[#allocation3 + $0x1b0] sm:$0xff]
        %v1865 = vld [vmem:[#allocation3 + $0x1b8] sm:$0xff]
        %v1866 = vld [vmem:[%s6] sm:$0xff]
        %v1867 = vld [vmem:[%s6 + $0x8] sm:$0xff]
        %v1868 = vld [vmem:[%s6 + $0x10] sm:$0xff]
        %v1869 = vld [vmem:[%s6 + $0x18] sm:$0xff]
        %1871 = vset.pattern.permute.xlu0 0
        %1872 = vperm.xlu0 %1871, %v1866
        %v1873 = vpop.permute.xlu0 %1872
        %1876 = vset.pattern.permute.xlu0 0
        %1877 = vperm.xlu0 %1876, %v1867
        %v1878 = vpop.permute.xlu0 %1877
        %1881 = vset.pattern.permute.xlu0 0
        %1882 = vperm.xlu0 %1881, %v1868
        %v1883 = vpop.permute.xlu0 %1882
        %1886 = vset.pattern.permute.xlu0 0
        %1887 = vperm.xlu0 %1886, %v1869
        %v1888 = vpop.permute.xlu0 %1887
        %vm1890 = vcmask 785408
        %v1892 = vsel %vm1890, %v1803, 0
        %v1895 = vsel %vm1890, %v1805, 0
        %v1898 = vsel %vm1890, %v1807, 0
        %v1901 = vsel %vm1890, %v1809, 0
        %v1903 = vand.u32 %v1811, 4294901760
        %1904 = vmatprep.subr.mxu0 %v1903
        %v1905 = vand.u32 %v1810, 4294901760
        %1906 = vmatpush1.msra.mxu0 %v1905
        %v1907 = vand.u32 %v1813, 4294901760
        %1908 = vmatprep.subr.mxu0 %v1907
        %v1909 = vand.u32 %v1812, 4294901760
        %1910 = vmatpush1.msra.mxu0 %v1909
        %v1911 = vand.u32 %v1815, 4294901760
        %1912 = vmatprep.subr.mxu0 %v1911
        %v1913 = vand.u32 %v1814, 4294901760
        %1914 = vmatpush1.msra.mxu0 %v1913
        %v1915 = vand.u32 %v1817, 4294901760
        %1916 = vmatprep.subr.mxu0 %v1915
        %v1917 = vand.u32 %v1816, 4294901760
        %1918 = vmatpush1.msra.mxu0 %v1917
        %v1919 = vand.u32 %v1819, 4294901760
        %1920 = vmatprep.subr.mxu0 %v1919
        %v1921 = vand.u32 %v1818, 4294901760
        %1922 = vmatpush1.msra.mxu0 %v1921
        %v1923 = vand.u32 %v1821, 4294901760
        %1924 = vmatprep.subr.mxu0 %v1923
        %v1925 = vand.u32 %v1820, 4294901760
        %1926 = vmatpush1.msra.mxu0 %v1925
        %v1927 = vand.u32 %v1823, 4294901760
        %1928 = vmatprep.subr.mxu0 %v1927
        %v1929 = vand.u32 %v1822, 4294901760
        %1930 = vmatpush1.msra.mxu0 %v1929
        %v1931 = vand.u32 %v1825, 4294901760
        %1932 = vmatprep.subr.mxu0 %v1931
        %v1933 = vand.u32 %v1824, 4294901760
        %1934 = vmatpush1.msra.mxu0 %v1933
        %v1935 = vand.u32 %v1827, 4294901760
        %1936 = vmatprep.subr.mxu0 %v1935
        %v1937 = vand.u32 %v1826, 4294901760
        %1938 = vmatpush1.msra.mxu0 %v1937
        %v1939 = vand.u32 %v1829, 4294901760
        %1940 = vmatprep.subr.mxu0 %v1939
        %v1941 = vand.u32 %v1828, 4294901760
        %1942 = vmatpush1.msra.mxu0 %v1941
        %v1943 = vand.u32 %v1831, 4294901760
        %1944 = vmatprep.subr.mxu0 %v1943
        %v1945 = vand.u32 %v1830, 4294901760
        %1946 = vmatpush1.msra.mxu0 %v1945
        %v1947 = vand.u32 %v1833, 4294901760
        %1948 = vmatprep.subr.mxu0 %v1947
        %v1949 = vand.u32 %v1832, 4294901760
        %1950 = vmatpush1.msra.mxu0 %v1949
        %v1951 = vand.u32 %v1835, 4294901760
        %1952 = vmatprep.subr.mxu0 %v1951
        %v1953 = vand.u32 %v1834, 4294901760
        %1954 = vmatpush1.msra.mxu0 %v1953
        %v1955 = vand.u32 %v1837, 4294901760
        %1956 = vmatprep.subr.mxu0 %v1955
        %v1957 = vand.u32 %v1836, 4294901760
        %1958 = vmatpush1.msra.mxu0 %v1957
        %v1959 = vand.u32 %v1839, 4294901760
        %1960 = vmatprep.subr.mxu0 %v1959
        %v1961 = vand.u32 %v1838, 4294901760
        %1962 = vmatpush1.msra.mxu0 %v1961
        %v1963 = vand.u32 %v1841, 4294901760
        %1964 = vmatprep.subr.mxu0 %v1963
        %v1965 = vand.u32 %v1840, 4294901760
        %1966 = vmatpush1.msra.mxu0 %v1965
        %v1967 = vand.u32 %v1843, 4294901760
        %1968 = vmatprep.subr.mxu0 %v1967
        %v1969 = vand.u32 %v1842, 4294901760
        %1970 = vmatpush1.msra.mxu0 %v1969
        %v1971 = vand.u32 %v1845, 4294901760
        %1972 = vmatprep.subr.mxu0 %v1971
        %v1973 = vand.u32 %v1844, 4294901760
        %1974 = vmatpush1.msra.mxu0 %v1973
        %v1975 = vand.u32 %v1847, 4294901760
        %1976 = vmatprep.subr.mxu0 %v1975
        %v1977 = vand.u32 %v1846, 4294901760
        %1978 = vmatpush1.msra.mxu0 %v1977
        %v1979 = vand.u32 %v1849, 4294901760
        %1980 = vmatprep.subr.mxu0 %v1979
        %v1981 = vand.u32 %v1848, 4294901760
        %1982 = vmatpush1.msra.mxu0 %v1981
        %v1983 = vand.u32 %v1851, 4294901760
        %1984 = vmatprep.subr.mxu0 %v1983
        %v1985 = vand.u32 %v1850, 4294901760
        %1986 = vmatpush1.msra.mxu0 %v1985
        %v1987 = vand.u32 %v1853, 4294901760
        %1988 = vmatprep.subr.mxu0 %v1987
        %v1989 = vand.u32 %v1852, 4294901760
        %1990 = vmatpush1.msra.mxu0 %v1989
        %v1991 = vand.u32 %v1855, 4294901760
        %1992 = vmatprep.subr.mxu0 %v1991
        %v1993 = vand.u32 %v1854, 4294901760
        %1994 = vmatpush1.msra.mxu0 %v1993
        %v1995 = vand.u32 %v1857, 4294901760
        %1996 = vmatprep.subr.mxu0 %v1995
        %v1997 = vand.u32 %v1856, 4294901760
        %1998 = vmatpush1.msra.mxu0 %v1997
        %v1999 = vand.u32 %v1859, 4294901760
        %2000 = vmatprep.subr.mxu0 %v1999
        %v2001 = vand.u32 %v1858, 4294901760
        %2002 = vmatpush1.msra.mxu0 %v2001
        %v2003 = vand.u32 %v1861, 4294901760
        %2004 = vmatprep.subr.mxu0 %v2003
        %v2005 = vand.u32 %v1860, 4294901760
        %2006 = vmatpush1.msra.mxu0 %v2005
        %v2007 = vand.u32 %v1863, 4294901760
        %2008 = vmatprep.subr.mxu0 %v2007
        %v2009 = vand.u32 %v1862, 4294901760
        %2010 = vmatpush1.msra.mxu0 %v2009
        %v2011 = vand.u32 %v1865, 4294901760
        %2012 = vmatprep.subr.mxu0 %v2011
        %v2013 = vand.u32 %v1864, 4294901760
        %2014 = vmatpush1.msra.mxu0 %v2013
        %2015 = vmatprep.subr.mxu0 0.0
        %2016 = vmatpush1.msra.mxu0 0.0
        %2017 = vmatprep.subr.mxu0 0.0
        %2018 = vmatpush1.msra.mxu0 0.0
        %2019 = vmatprep.subr.mxu0 0.0
        %2020 = vmatpush1.msra.mxu0 0.0
        %2021 = vmatprep.subr.mxu0 0.0
        %2022 = vmatpush1.msra.mxu0 0.0
        %v2023 = vand.u32 %v1892, 4294901760
        %v2024 = vsub.f32 %v1892, %v2023
        %v2025 = vand.u32 %v2024, 4294901760
        %v2026 = vsub.f32 %v2024, %v2025
        %v2027 = vand.u32 %v2026, 4294901760
        %2028 = vmatprep.mubr.f32.mxu0 %v2027
        %v2029 = vand.u32 %v1802, 4294901760
        %v2030 = vsub.f32 %v1802, %v2029
        %v2031 = vand.u32 %v2030, 4294901760
        %v2032 = vsub.f32 %v2030, %v2031
        %v2033 = vand.u32 %v2032, 4294901760
        %2034 = vmatmul.mubr.f32.gmra.mrb[0].mxu0 %v2033
        %v2035 = vpop.f32.mrb[0].mxu0
        %v2036 = vadd.f32 %v1873, %v2035
        %v2037 = vpop.f32.mrb[0].mxu0
        %v2038 = vadd.f32 %v1873, %v2037
        %v2039 = vand.u32 %v1895, 4294901760
        %v2040 = vsub.f32 %v1895, %v2039
        %v2041 = vand.u32 %v2040, 4294901760
        %v2042 = vsub.f32 %v2040, %v2041
        %v2043 = vand.u32 %v2042, 4294901760
        %2044 = vmatprep.mubr.f32.mxu0 %v2043
        %v2045 = vand.u32 %v1804, 4294901760
        %v2046 = vsub.f32 %v1804, %v2045
        %v2047 = vand.u32 %v2046, 4294901760
        %v2048 = vsub.f32 %v2046, %v2047
        %v2049 = vand.u32 %v2048, 4294901760
        %2050 = vmatmul.mubr.f32.gmra.mrb[0].mxu0 %v2049
        %v2051 = vpop.f32.mrb[0].mxu0
        %v2052 = vadd.f32 %v1878, %v2051
        %v2053 = vpop.f32.mrb[0].mxu0
        %v2054 = vadd.f32 %v1878, %v2053
        %v2055 = vand.u32 %v1898, 4294901760
        %v2056 = vsub.f32 %v1898, %v2055
        %v2057 = vand.u32 %v2056, 4294901760
        %v2058 = vsub.f32 %v2056, %v2057
        %v2059 = vand.u32 %v2058, 4294901760
        %2060 = vmatprep.mubr.f32.mxu0 %v2059
        %v2061 = vand.u32 %v1806, 4294901760
        %v2062 = vsub.f32 %v1806, %v2061
        %v2063 = vand.u32 %v2062, 4294901760
        %v2064 = vsub.f32 %v2062, %v2063
        %v2065 = vand.u32 %v2064, 4294901760
        %2066 = vmatmul.mubr.f32.gmra.mrb[0].mxu0 %v2065
        %v2067 = vpop.f32.mrb[0].mxu0
        %v2068 = vadd.f32 %v1883, %v2067
        %v2069 = vpop.f32.mrb[0].mxu0
        %v2070 = vadd.f32 %v1883, %v2069
        %v2071 = vand.u32 %v1901, 4294901760
        %v2072 = vsub.f32 %v1901, %v2071
        %v2073 = vand.u32 %v2072, 4294901760
        %v2074 = vsub.f32 %v2072, %v2073
        %v2075 = vand.u32 %v2074, 4294901760
        %2076 = vmatprep.mubr.f32.mxu0 %v2075
        %v2077 = vand.u32 %v1808, 4294901760
        %v2078 = vsub.f32 %v1808, %v2077
        %v2079 = vand.u32 %v2078, 4294901760
        %v2080 = vsub.f32 %v2078, %v2079
        %v2081 = vand.u32 %v2080, 4294901760
        %2082 = vmatmul.mubr.f32.gmra.mrb[0].mxu0 %v2081
        %v2083 = vpop.f32.mrb[0].mxu0
        %v2084 = vadd.f32 %v1888, %v2083
        %v2085 = vpop.f32.mrb[0].mxu0
        %v2086 = vadd.f32 %v1888, %v2085
        %2087 = vdwg.mxu0
        %v2088 = vand.u32 %v1811, 4294901760
        %v2089 = vsub.f32 %v1811, %v2088
        %v2090 = vand.u32 %v2089, 4294901760
        %v2091 = vsub.f32 %v2089, %v2090
        %v2092 = vand.u32 %v2091, 4294901760
        %2093 = vmatprep.subr.mxu0 %v2092
        %v2094 = vand.u32 %v1810, 4294901760
        %v2095 = vsub.f32 %v1810, %v2094
        %v2096 = vand.u32 %v2095, 4294901760
        %v2097 = vsub.f32 %v2095, %v2096
        %v2098 = vand.u32 %v2097, 4294901760
        %2099 = vmatpush1.msra.mxu0 %v2098
        %v2100 = vand.u32 %v1813, 4294901760
        %v2101 = vsub.f32 %v1813, %v2100
        %v2102 = vand.u32 %v2101, 4294901760
        %v2103 = vsub.f32 %v2101, %v2102
        %v2104 = vand.u32 %v2103, 4294901760
        %2105 = vmatprep.subr.mxu0 %v2104
        %v2106 = vand.u32 %v1812, 4294901760
        %v2107 = vsub.f32 %v1812, %v2106
        %v2108 = vand.u32 %v2107, 4294901760
        %v2109 = vsub.f32 %v2107, %v2108
        %v2110 = vand.u32 %v2109, 4294901760
        %2111 = vmatpush1.msra.mxu0 %v2110
        %v2112 = vand.u32 %v1815, 4294901760
        %v2113 = vsub.f32 %v1815, %v2112
        %v2114 = vand.u32 %v2113, 4294901760
        %v2115 = vsub.f32 %v2113, %v2114
        %v2116 = vand.u32 %v2115, 4294901760
        %2117 = vmatprep.subr.mxu0 %v2116
        %v2118 = vand.u32 %v1814, 4294901760
        %v2119 = vsub.f32 %v1814, %v2118
        %v2120 = vand.u32 %v2119, 4294901760
        %v2121 = vsub.f32 %v2119, %v2120
        %v2122 = vand.u32 %v2121, 4294901760
        %2123 = vmatpush1.msra.mxu0 %v2122
        %v2124 = vand.u32 %v1817, 4294901760
        %v2125 = vsub.f32 %v1817, %v2124
        %v2126 = vand.u32 %v2125, 4294901760
        %v2127 = vsub.f32 %v2125, %v2126
        %v2128 = vand.u32 %v2127, 4294901760
        %2129 = vmatprep.subr.mxu0 %v2128
        %v2130 = vand.u32 %v1816, 4294901760
        %v2131 = vsub.f32 %v1816, %v2130
        %v2132 = vand.u32 %v2131, 4294901760
        %v2133 = vsub.f32 %v2131, %v2132
        %v2134 = vand.u32 %v2133, 4294901760
        %2135 = vmatpush1.msra.mxu0 %v2134
        %v2136 = vand.u32 %v1819, 4294901760
        %v2137 = vsub.f32 %v1819, %v2136
        %v2138 = vand.u32 %v2137, 4294901760
        %v2139 = vsub.f32 %v2137, %v2138
        %v2140 = vand.u32 %v2139, 4294901760
        %2141 = vmatprep.subr.mxu0 %v2140
        %v2142 = vand.u32 %v1818, 4294901760
        %v2143 = vsub.f32 %v1818, %v2142
        %v2144 = vand.u32 %v2143, 4294901760
        %v2145 = vsub.f32 %v2143, %v2144
        %v2146 = vand.u32 %v2145, 4294901760
        %2147 = vmatpush1.msra.mxu0 %v2146
        %v2148 = vand.u32 %v1821, 4294901760
        %v2149 = vsub.f32 %v1821, %v2148
        %v2150 = vand.u32 %v2149, 4294901760
        %v2151 = vsub.f32 %v2149, %v2150
        %v2152 = vand.u32 %v2151, 4294901760
        %2153 = vmatprep.subr.mxu0 %v2152
        %v2154 = vand.u32 %v1820, 4294901760
        %v2155 = vsub.f32 %v1820, %v2154
        %v2156 = vand.u32 %v2155, 4294901760
        %v2157 = vsub.f32 %v2155, %v2156
        %v2158 = vand.u32 %v2157, 4294901760
        %2159 = vmatpush1.msra.mxu0 %v2158
        %v2160 = vand.u32 %v1823, 4294901760
        %v2161 = vsub.f32 %v1823, %v2160
        %v2162 = vand.u32 %v2161, 4294901760
        %v2163 = vsub.f32 %v2161, %v2162
        %v2164 = vand.u32 %v2163, 4294901760
        %2165 = vmatprep.subr.mxu0 %v2164
        %v2166 = vand.u32 %v1822, 4294901760
        %v2167 = vsub.f32 %v1822, %v2166
        %v2168 = vand.u32 %v2167, 4294901760
        %v2169 = vsub.f32 %v2167, %v2168
        %v2170 = vand.u32 %v2169, 4294901760
        %2171 = vmatpush1.msra.mxu0 %v2170
        %v2172 = vand.u32 %v1825, 4294901760
        %v2173 = vsub.f32 %v1825, %v2172
        %v2174 = vand.u32 %v2173, 4294901760
        %v2175 = vsub.f32 %v2173, %v2174
        %v2176 = vand.u32 %v2175, 4294901760
        %2177 = vmatprep.subr.mxu0 %v2176
        %v2178 = vand.u32 %v1824, 4294901760
        %v2179 = vsub.f32 %v1824, %v2178
        %v2180 = vand.u32 %v2179, 4294901760
        %v2181 = vsub.f32 %v2179, %v2180
        %v2182 = vand.u32 %v2181, 4294901760
        %2183 = vmatpush1.msra.mxu0 %v2182
        %v2184 = vand.u32 %v1827, 4294901760
        %v2185 = vsub.f32 %v1827, %v2184
        %v2186 = vand.u32 %v2185, 4294901760
        %v2187 = vsub.f32 %v2185, %v2186
        %v2188 = vand.u32 %v2187, 4294901760
        %2189 = vmatprep.subr.mxu0 %v2188
        %v2190 = vand.u32 %v1826, 4294901760
        %v2191 = vsub.f32 %v1826, %v2190
        %v2192 = vand.u32 %v2191, 4294901760
        %v2193 = vsub.f32 %v2191, %v2192
        %v2194 = vand.u32 %v2193, 4294901760
        %2195 = vmatpush1.msra.mxu0 %v2194
        %v2196 = vand.u32 %v1829, 4294901760
        %v2197 = vsub.f32 %v1829, %v2196
        %v2198 = vand.u32 %v2197, 4294901760
        %v2199 = vsub.f32 %v2197, %v2198
        %v2200 = vand.u32 %v2199, 4294901760
        %2201 = vmatprep.subr.mxu0 %v2200
        %v2202 = vand.u32 %v1828, 4294901760
        %v2203 = vsub.f32 %v1828, %v2202
        %v2204 = vand.u32 %v2203, 4294901760
        %v2205 = vsub.f32 %v2203, %v2204
        %v2206 = vand.u32 %v2205, 4294901760
        %2207 = vmatpush1.msra.mxu0 %v2206
        %v2208 = vand.u32 %v1831, 4294901760
        %v2209 = vsub.f32 %v1831, %v2208
        %v2210 = vand.u32 %v2209, 4294901760
        %v2211 = vsub.f32 %v2209, %v2210
        %v2212 = vand.u32 %v2211, 4294901760
        %2213 = vmatprep.subr.mxu0 %v2212
        %v2214 = vand.u32 %v1830, 4294901760
        %v2215 = vsub.f32 %v1830, %v2214
        %v2216 = vand.u32 %v2215, 4294901760
        %v2217 = vsub.f32 %v2215, %v2216
        %v2218 = vand.u32 %v2217, 4294901760
        %2219 = vmatpush1.msra.mxu0 %v2218
        %v2220 = vand.u32 %v1833, 4294901760
        %v2221 = vsub.f32 %v1833, %v2220
        %v2222 = vand.u32 %v2221, 4294901760
        %v2223 = vsub.f32 %v2221, %v2222
        %v2224 = vand.u32 %v2223, 4294901760
        %2225 = vmatprep.subr.mxu0 %v2224
        %v2226 = vand.u32 %v1832, 4294901760
        %v2227 = vsub.f32 %v1832, %v2226
        %v2228 = vand.u32 %v2227, 4294901760
        %v2229 = vsub.f32 %v2227, %v2228
        %v2230 = vand.u32 %v2229, 4294901760
        %2231 = vmatpush1.msra.mxu0 %v2230
        %v2232 = vand.u32 %v1835, 4294901760
        %v2233 = vsub.f32 %v1835, %v2232
        %v2234 = vand.u32 %v2233, 4294901760
        %v2235 = vsub.f32 %v2233, %v2234
        %v2236 = vand.u32 %v2235, 4294901760
        %2237 = vmatprep.subr.mxu0 %v2236
        %v2238 = vand.u32 %v1834, 4294901760
        %v2239 = vsub.f32 %v1834, %v2238
        %v2240 = vand.u32 %v2239, 4294901760
        %v2241 = vsub.f32 %v2239, %v2240
        %v2242 = vand.u32 %v2241, 4294901760
        %2243 = vmatpush1.msra.mxu0 %v2242
        %v2244 = vand.u32 %v1837, 4294901760
        %v2245 = vsub.f32 %v1837, %v2244
        %v2246 = vand.u32 %v2245, 4294901760
        %v2247 = vsub.f32 %v2245, %v2246
        %v2248 = vand.u32 %v2247, 4294901760
        %2249 = vmatprep.subr.mxu0 %v2248
        %v2250 = vand.u32 %v1836, 4294901760
        %v2251 = vsub.f32 %v1836, %v2250
        %v2252 = vand.u32 %v2251, 4294901760
        %v2253 = vsub.f32 %v2251, %v2252
        %v2254 = vand.u32 %v2253, 4294901760
        %2255 = vmatpush1.msra.mxu0 %v2254
        %v2256 = vand.u32 %v1839, 4294901760
        %v2257 = vsub.f32 %v1839, %v2256
        %v2258 = vand.u32 %v2257, 4294901760
        %v2259 = vsub.f32 %v2257, %v2258
        %v2260 = vand.u32 %v2259, 4294901760
        %2261 = vmatprep.subr.mxu0 %v2260
        %v2262 = vand.u32 %v1838, 4294901760
        %v2263 = vsub.f32 %v1838, %v2262
        %v2264 = vand.u32 %v2263, 4294901760
        %v2265 = vsub.f32 %v2263, %v2264
        %v2266 = vand.u32 %v2265, 4294901760
        %2267 = vmatpush1.msra.mxu0 %v2266
        %v2268 = vand.u32 %v1841, 4294901760
        %v2269 = vsub.f32 %v1841, %v2268
        %v2270 = vand.u32 %v2269, 4294901760
        %v2271 = vsub.f32 %v2269, %v2270
        %v2272 = vand.u32 %v2271, 4294901760
        %2273 = vmatprep.subr.mxu0 %v2272
        %v2274 = vand.u32 %v1840, 4294901760
        %v2275 = vsub.f32 %v1840, %v2274
        %v2276 = vand.u32 %v2275, 4294901760
        %v2277 = vsub.f32 %v2275, %v2276
        %v2278 = vand.u32 %v2277, 4294901760
        %2279 = vmatpush1.msra.mxu0 %v2278
        %v2280 = vand.u32 %v1843, 4294901760
        %v2281 = vsub.f32 %v1843, %v2280
        %v2282 = vand.u32 %v2281, 4294901760
        %v2283 = vsub.f32 %v2281, %v2282
        %v2284 = vand.u32 %v2283, 4294901760
        %2285 = vmatprep.subr.mxu0 %v2284
        %v2286 = vand.u32 %v1842, 4294901760
        %v2287 = vsub.f32 %v1842, %v2286
        %v2288 = vand.u32 %v2287, 4294901760
        %v2289 = vsub.f32 %v2287, %v2288
        %v2290 = vand.u32 %v2289, 4294901760
        %2291 = vmatpush1.msra.mxu0 %v2290
        %v2292 = vand.u32 %v1845, 4294901760
        %v2293 = vsub.f32 %v1845, %v2292
        %v2294 = vand.u32 %v2293, 4294901760
        %v2295 = vsub.f32 %v2293, %v2294
        %v2296 = vand.u32 %v2295, 4294901760
        %2297 = vmatprep.subr.mxu0 %v2296
        %v2298 = vand.u32 %v1844, 4294901760
        %v2299 = vsub.f32 %v1844, %v2298
        %v2300 = vand.u32 %v2299, 4294901760
        %v2301 = vsub.f32 %v2299, %v2300
        %v2302 = vand.u32 %v2301, 4294901760
        %2303 = vmatpush1.msra.mxu0 %v2302
        %v2304 = vand.u32 %v1847, 4294901760
        %v2305 = vsub.f32 %v1847, %v2304
        %v2306 = vand.u32 %v2305, 4294901760
        %v2307 = vsub.f32 %v2305, %v2306
        %v2308 = vand.u32 %v2307, 4294901760
        %2309 = vmatprep.subr.mxu0 %v2308
        %v2310 = vand.u32 %v1846, 4294901760
        %v2311 = vsub.f32 %v1846, %v2310
        %v2312 = vand.u32 %v2311, 4294901760
        %v2313 = vsub.f32 %v2311, %v2312
        %v2314 = vand.u32 %v2313, 4294901760
        %2315 = vmatpush1.msra.mxu0 %v2314
        %v2316 = vand.u32 %v1849, 4294901760
        %v2317 = vsub.f32 %v1849, %v2316
        %v2318 = vand.u32 %v2317, 4294901760
        %v2319 = vsub.f32 %v2317, %v2318
        %v2320 = vand.u32 %v2319, 4294901760
        %2321 = vmatprep.subr.mxu0 %v2320
        %v2322 = vand.u32 %v1848, 4294901760
        %v2323 = vsub.f32 %v1848, %v2322
        %v2324 = vand.u32 %v2323, 4294901760
        %v2325 = vsub.f32 %v2323, %v2324
        %v2326 = vand.u32 %v2325, 4294901760
        %2327 = vmatpush1.msra.mxu0 %v2326
        %v2328 = vand.u32 %v1851, 4294901760
        %v2329 = vsub.f32 %v1851, %v2328
        %v2330 = vand.u32 %v2329, 4294901760
        %v2331 = vsub.f32 %v2329, %v2330
        %v2332 = vand.u32 %v2331, 4294901760
        %2333 = vmatprep.subr.mxu0 %v2332
        %v2334 = vand.u32 %v1850, 4294901760
        %v2335 = vsub.f32 %v1850, %v2334
        %v2336 = vand.u32 %v2335, 4294901760
        %v2337 = vsub.f32 %v2335, %v2336
        %v2338 = vand.u32 %v2337, 4294901760
        %2339 = vmatpush1.msra.mxu0 %v2338
        %v2340 = vand.u32 %v1853, 4294901760
        %v2341 = vsub.f32 %v1853, %v2340
        %v2342 = vand.u32 %v2341, 4294901760
        %v2343 = vsub.f32 %v2341, %v2342
        %v2344 = vand.u32 %v2343, 4294901760
        %2345 = vmatprep.subr.mxu0 %v2344
        %v2346 = vand.u32 %v1852, 4294901760
        %v2347 = vsub.f32 %v1852, %v2346
        %v2348 = vand.u32 %v2347, 4294901760
        %v2349 = vsub.f32 %v2347, %v2348
        %v2350 = vand.u32 %v2349, 4294901760
        %2351 = vmatpush1.msra.mxu0 %v2350
        %v2352 = vand.u32 %v1855, 4294901760
        %v2353 = vsub.f32 %v1855, %v2352
        %v2354 = vand.u32 %v2353, 4294901760
        %v2355 = vsub.f32 %v2353, %v2354
        %v2356 = vand.u32 %v2355, 4294901760
        %2357 = vmatprep.subr.mxu0 %v2356
        %v2358 = vand.u32 %v1854, 4294901760
        %v2359 = vsub.f32 %v1854, %v2358
        %v2360 = vand.u32 %v2359, 4294901760
        %v2361 = vsub.f32 %v2359, %v2360
        %v2362 = vand.u32 %v2361, 4294901760
        %2363 = vmatpush1.msra.mxu0 %v2362
        %v2364 = vand.u32 %v1857, 4294901760
        %v2365 = vsub.f32 %v1857, %v2364
        %v2366 = vand.u32 %v2365, 4294901760
        %v2367 = vsub.f32 %v2365, %v2366
        %v2368 = vand.u32 %v2367, 4294901760
        %2369 = vmatprep.subr.mxu0 %v2368
        %v2370 = vand.u32 %v1856, 4294901760
        %v2371 = vsub.f32 %v1856, %v2370
        %v2372 = vand.u32 %v2371, 4294901760
        %v2373 = vsub.f32 %v2371, %v2372
        %v2374 = vand.u32 %v2373, 4294901760
        %2375 = vmatpush1.msra.mxu0 %v2374
        %v2376 = vand.u32 %v1859, 4294901760
        %v2377 = vsub.f32 %v1859, %v2376
        %v2378 = vand.u32 %v2377, 4294901760
        %v2379 = vsub.f32 %v2377, %v2378
        %v2380 = vand.u32 %v2379, 4294901760
        %2381 = vmatprep.subr.mxu0 %v2380
        %v2382 = vand.u32 %v1858, 4294901760
        %v2383 = vsub.f32 %v1858, %v2382
        %v2384 = vand.u32 %v2383, 4294901760
        %v2385 = vsub.f32 %v2383, %v2384
        %v2386 = vand.u32 %v2385, 4294901760
        %2387 = vmatpush1.msra.mxu0 %v2386
        %v2388 = vand.u32 %v1861, 4294901760
        %v2389 = vsub.f32 %v1861, %v2388
        %v2390 = vand.u32 %v2389, 4294901760
        %v2391 = vsub.f32 %v2389, %v2390
        %v2392 = vand.u32 %v2391, 4294901760
        %2393 = vmatprep.subr.mxu0 %v2392
        %v2394 = vand.u32 %v1860, 4294901760
        %v2395 = vsub.f32 %v1860, %v2394
        %v2396 = vand.u32 %v2395, 4294901760
        %v2397 = vsub.f32 %v2395, %v2396
        %v2398 = vand.u32 %v2397, 4294901760
        %2399 = vmatpush1.msra.mxu0 %v2398
        %v2400 = vand.u32 %v1863, 4294901760
        %v2401 = vsub.f32 %v1863, %v2400
        %v2402 = vand.u32 %v2401, 4294901760
        %v2403 = vsub.f32 %v2401, %v2402
        %v2404 = vand.u32 %v2403, 4294901760
        %2405 = vmatprep.subr.mxu0 %v2404
        %v2406 = vand.u32 %v1862, 4294901760
        %v2407 = vsub.f32 %v1862, %v2406
        %v2408 = vand.u32 %v2407, 4294901760
        %v2409 = vsub.f32 %v2407, %v2408
        %v2410 = vand.u32 %v2409, 4294901760
        %2411 = vmatpush1.msra.mxu0 %v2410
        %v2412 = vand.u32 %v1865, 4294901760
        %v2413 = vsub.f32 %v1865, %v2412
        %v2414 = vand.u32 %v2413, 4294901760
        %v2415 = vsub.f32 %v2413, %v2414
        %v2416 = vand.u32 %v2415, 4294901760
        %2417 = vmatprep.subr.mxu0 %v2416
        %v2418 = vand.u32 %v1864, 4294901760
        %v2419 = vsub.f32 %v1864, %v2418
        %v2420 = vand.u32 %v2419, 4294901760
        %v2421 = vsub.f32 %v2419, %v2420
        %v2422 = vand.u32 %v2421, 4294901760
        %2423 = vmatpush1.msra.mxu0 %v2422
        %2424 = vmatprep.subr.mxu0 0.0
        %2425 = vmatpush1.msra.mxu0 0.0
        %2426 = vmatprep.subr.mxu0 0.0
        %2427 = vmatpush1.msra.mxu0 0.0
        %2428 = vmatprep.subr.mxu0 0.0
        %2429 = vmatpush1.msra.mxu0 0.0
        %2430 = vmatprep.subr.mxu0 0.0
        %2431 = vmatpush1.msra.mxu0 0.0
        %v2432 = vand.u32 %v1892, 4294901760
        %2433 = vmatprep.mubr.f32.mxu0 %v2432
        %v2434 = vand.u32 %v1802, 4294901760
        %2435 = vmatmul.mubr.f32.gmra.mrb[0].mxu0 %v2434
        %v2436 = vpop.f32.mrb[0].mxu0
        %v2437 = vadd.f32 %v2036, %v2436
        %v2438 = vpop.f32.mrb[0].mxu0
        %v2439 = vadd.f32 %v2038, %v2438
        %v2440 = vand.u32 %v1895, 4294901760
        %2441 = vmatprep.mubr.f32.mxu0 %v2440
        %v2442 = vand.u32 %v1804, 4294901760
        %2443 = vmatmul.mubr.f32.gmra.mrb[0].mxu0 %v2442
        %v2444 = vpop.f32.mrb[0].mxu0
        %v2445 = vadd.f32 %v2052, %v2444
        %v2446 = vpop.f32.mrb[0].mxu0
        %v2447 = vadd.f32 %v2054, %v2446
        %v2448 = vand.u32 %v1898, 4294901760
        %2449 = vmatprep.mubr.f32.mxu0 %v2448
        %v2450 = vand.u32 %v1806, 4294901760
        %2451 = vmatmul.mubr.f32.gmra.mrb[0].mxu0 %v2450
        %v2452 = vpop.f32.mrb[0].mxu0
        %v2453 = vadd.f32 %v2068, %v2452
        %v2454 = vpop.f32.mrb[0].mxu0
        %v2455 = vadd.f32 %v2070, %v2454
        %v2456 = vand.u32 %v1901, 4294901760
        %2457 = vmatprep.mubr.f32.mxu0 %v2456
        %v2458 = vand.u32 %v1808, 4294901760
        %2459 = vmatmul.mubr.f32.gmra.mrb[0].mxu0 %v2458
        %v2460 = vpop.f32.mrb[0].mxu0
        %v2461 = vadd.f32 %v2084, %v2460
        %v2462 = vpop.f32.mrb[0].mxu0
        %v2463 = vadd.f32 %v2086, %v2462
        %2464 = vdwg.mxu0
        %v2465 = vand.u32 %v1811, 4294901760
        %v2466 = vsub.f32 %v1811, %v2465
        %2467 = vmatprep.subr.mxu0 %v2466
        %v2468 = vand.u32 %v1810, 4294901760
        %v2469 = vsub.f32 %v1810, %v2468
        %2470 = vmatpush1.msra.mxu0 %v2469
        %v2471 = vand.u32 %v1813, 4294901760
        %v2472 = vsub.f32 %v1813, %v2471
        %2473 = vmatprep.subr.mxu0 %v2472
        %v2474 = vand.u32 %v1812, 4294901760
        %v2475 = vsub.f32 %v1812, %v2474
        %2476 = vmatpush1.msra.mxu0 %v2475
        %v2477 = vand.u32 %v1815, 4294901760
        %v2478 = vsub.f32 %v1815, %v2477
        %2479 = vmatprep.subr.mxu0 %v2478
        %v2480 = vand.u32 %v1814, 4294901760
        %v2481 = vsub.f32 %v1814, %v2480
        %2482 = vmatpush1.msra.mxu0 %v2481
        %v2483 = vand.u32 %v1817, 4294901760
        %v2484 = vsub.f32 %v1817, %v2483
        %2485 = vmatprep.subr.mxu0 %v2484
        %v2486 = vand.u32 %v1816, 4294901760
        %v2487 = vsub.f32 %v1816, %v2486
        %2488 = vmatpush1.msra.mxu0 %v2487
        %v2489 = vand.u32 %v1819, 4294901760
        %v2490 = vsub.f32 %v1819, %v2489
        %2491 = vmatprep.subr.mxu0 %v2490
        %v2492 = vand.u32 %v1818, 4294901760
        %v2493 = vsub.f32 %v1818, %v2492
        %2494 = vmatpush1.msra.mxu0 %v2493
        %v2495 = vand.u32 %v1821, 4294901760
        %v2496 = vsub.f32 %v1821, %v2495
        %2497 = vmatprep.subr.mxu0 %v2496
        %v2498 = vand.u32 %v1820, 4294901760
        %v2499 = vsub.f32 %v1820, %v2498
        %2500 = vmatpush1.msra.mxu0 %v2499
        %v2501 = vand.u32 %v1823, 4294901760
        %v2502 = vsub.f32 %v1823, %v2501
        %2503 = vmatprep.subr.mxu0 %v2502
        %v2504 = vand.u32 %v1822, 4294901760
        %v2505 = vsub.f32 %v1822, %v2504
        %2506 = vmatpush1.msra.mxu0 %v2505
        %v2507 = vand.u32 %v1825, 4294901760
        %v2508 = vsub.f32 %v1825, %v2507
        %2509 = vmatprep.subr.mxu0 %v2508
        %v2510 = vand.u32 %v1824, 4294901760
        %v2511 = vsub.f32 %v1824, %v2510
        %2512 = vmatpush1.msra.mxu0 %v2511
        %v2513 = vand.u32 %v1827, 4294901760
        %v2514 = vsub.f32 %v1827, %v2513
        %2515 = vmatprep.subr.mxu0 %v2514
        %v2516 = vand.u32 %v1826, 4294901760
        %v2517 = vsub.f32 %v1826, %v2516
        %2518 = vmatpush1.msra.mxu0 %v2517
        %v2519 = vand.u32 %v1829, 4294901760
        %v2520 = vsub.f32 %v1829, %v2519
        %2521 = vmatprep.subr.mxu0 %v2520
        %v2522 = vand.u32 %v1828, 4294901760
        %v2523 = vsub.f32 %v1828, %v2522
        %2524 = vmatpush1.msra.mxu0 %v2523
        %v2525 = vand.u32 %v1831, 4294901760
        %v2526 = vsub.f32 %v1831, %v2525
        %2527 = vmatprep.subr.mxu0 %v2526
        %v2528 = vand.u32 %v1830, 4294901760
        %v2529 = vsub.f32 %v1830, %v2528
        %2530 = vmatpush1.msra.mxu0 %v2529
        %v2531 = vand.u32 %v1833, 4294901760
        %v2532 = vsub.f32 %v1833, %v2531
        %2533 = vmatprep.subr.mxu0 %v2532
        %v2534 = vand.u32 %v1832, 4294901760
        %v2535 = vsub.f32 %v1832, %v2534
        %2536 = vmatpush1.msra.mxu0 %v2535
        %v2537 = vand.u32 %v1835, 4294901760
        %v2538 = vsub.f32 %v1835, %v2537
        %2539 = vmatprep.subr.mxu0 %v2538
        %v2540 = vand.u32 %v1834, 4294901760
        %v2541 = vsub.f32 %v1834, %v2540
        %2542 = vmatpush1.msra.mxu0 %v2541
        %v2543 = vand.u32 %v1837, 4294901760
        %v2544 = vsub.f32 %v1837, %v2543
        %2545 = vmatprep.subr.mxu0 %v2544
        %v2546 = vand.u32 %v1836, 4294901760
        %v2547 = vsub.f32 %v1836, %v2546
        %2548 = vmatpush1.msra.mxu0 %v2547
        %v2549 = vand.u32 %v1839, 4294901760
        %v2550 = vsub.f32 %v1839, %v2549
        %2551 = vmatprep.subr.mxu0 %v2550
        %v2552 = vand.u32 %v1838, 4294901760
        %v2553 = vsub.f32 %v1838, %v2552
        %2554 = vmatpush1.msra.mxu0 %v2553
        %v2555 = vand.u32 %v1841, 4294901760
        %v2556 = vsub.f32 %v1841, %v2555
        %2557 = vmatprep.subr.mxu0 %v2556
        %v2558 = vand.u32 %v1840, 4294901760
        %v2559 = vsub.f32 %v1840, %v2558
        %2560 = vmatpush1.msra.mxu0 %v2559
        %v2561 = vand.u32 %v1843, 4294901760
        %v2562 = vsub.f32 %v1843, %v2561
        %2563 = vmatprep.subr.mxu0 %v2562
        %v2564 = vand.u32 %v1842, 4294901760
        %v2565 = vsub.f32 %v1842, %v2564
        %2566 = vmatpush1.msra.mxu0 %v2565
        %v2567 = vand.u32 %v1845, 4294901760
        %v2568 = vsub.f32 %v1845, %v2567
        %2569 = vmatprep.subr.mxu0 %v2568
        %v2570 = vand.u32 %v1844, 4294901760
        %v2571 = vsub.f32 %v1844, %v2570
        %2572 = vmatpush1.msra.mxu0 %v2571
        %v2573 = vand.u32 %v1847, 4294901760
        %v2574 = vsub.f32 %v1847, %v2573
        %2575 = vmatprep.subr.mxu0 %v2574
        %v2576 = vand.u32 %v1846, 4294901760
        %v2577 = vsub.f32 %v1846, %v2576
        %2578 = vmatpush1.msra.mxu0 %v2577
        %v2579 = vand.u32 %v1849, 4294901760
        %v2580 = vsub.f32 %v1849, %v2579
        %2581 = vmatprep.subr.mxu0 %v2580
        %v2582 = vand.u32 %v1848, 4294901760
        %v2583 = vsub.f32 %v1848, %v2582
        %2584 = vmatpush1.msra.mxu0 %v2583
        %v2585 = vand.u32 %v1851, 4294901760
        %v2586 = vsub.f32 %v1851, %v2585
        %2587 = vmatprep.subr.mxu0 %v2586
        %v2588 = vand.u32 %v1850, 4294901760
        %v2589 = vsub.f32 %v1850, %v2588
        %2590 = vmatpush1.msra.mxu0 %v2589
        %v2591 = vand.u32 %v1853, 4294901760
        %v2592 = vsub.f32 %v1853, %v2591
        %2593 = vmatprep.subr.mxu0 %v2592
        %v2594 = vand.u32 %v1852, 4294901760
        %v2595 = vsub.f32 %v1852, %v2594
        %2596 = vmatpush1.msra.mxu0 %v2595
        %v2597 = vand.u32 %v1855, 4294901760
        %v2598 = vsub.f32 %v1855, %v2597
        %2599 = vmatprep.subr.mxu0 %v2598
        %v2600 = vand.u32 %v1854, 4294901760
        %v2601 = vsub.f32 %v1854, %v2600
        %2602 = vmatpush1.msra.mxu0 %v2601
        %v2603 = vand.u32 %v1857, 4294901760
        %v2604 = vsub.f32 %v1857, %v2603
        %2605 = vmatprep.subr.mxu0 %v2604
        %v2606 = vand.u32 %v1856, 4294901760
        %v2607 = vsub.f32 %v1856, %v2606
        %2608 = vmatpush1.msra.mxu0 %v2607
        %v2609 = vand.u32 %v1859, 4294901760
        %v2610 = vsub.f32 %v1859, %v2609
        %2611 = vmatprep.subr.mxu0 %v2610
        %v2612 = vand.u32 %v1858, 4294901760
        %v2613 = vsub.f32 %v1858, %v2612
        %2614 = vmatpush1.msra.mxu0 %v2613
        %v2615 = vand.u32 %v1861, 4294901760
        %v2616 = vsub.f32 %v1861, %v2615
        %2617 = vmatprep.subr.mxu0 %v2616
        %v2618 = vand.u32 %v1860, 4294901760
        %v2619 = vsub.f32 %v1860, %v2618
        %2620 = vmatpush1.msra.mxu0 %v2619
        %v2621 = vand.u32 %v1863, 4294901760
        %v2622 = vsub.f32 %v1863, %v2621
        %2623 = vmatprep.subr.mxu0 %v2622
        %v2624 = vand.u32 %v1862, 4294901760
        %v2625 = vsub.f32 %v1862, %v2624
        %2626 = vmatpush1.msra.mxu0 %v2625
        %v2627 = vand.u32 %v1865, 4294901760
        %v2628 = vsub.f32 %v1865, %v2627
        %2629 = vmatprep.subr.mxu0 %v2628
        %v2630 = vand.u32 %v1864, 4294901760
        %v2631 = vsub.f32 %v1864, %v2630
        %2632 = vmatpush1.msra.mxu0 %v2631
        %2633 = vmatprep.subr.mxu0 0.0
        %2634 = vmatpush1.msra.mxu0 0.0
        %2635 = vmatprep.subr.mxu0 0.0
        %2636 = vmatpush1.msra.mxu0 0.0
        %2637 = vmatprep.subr.mxu0 0.0
        %2638 = vmatpush1.msra.mxu0 0.0
        %2639 = vmatprep.subr.mxu0 0.0
        %2640 = vmatpush1.msra.mxu0 0.0
        %v2641 = vand.u32 %v1892, 4294901760
        %v2642 = vsub.f32 %v1892, %v2641
        %2643 = vmatprep.mubr.f32.mxu0 %v2642
        %v2644 = vand.u32 %v1802, 4294901760
        %v2645 = vsub.f32 %v1802, %v2644
        %2646 = vmatmul.mubr.f32.gmra.mrb[0].mxu0 %v2645
        %v2647 = vpop.f32.mrb[0].mxu0
        %v2648 = vadd.f32 %v2437, %v2647
        %v2649 = vpop.f32.mrb[0].mxu0
        %v2650 = vadd.f32 %v2439, %v2649
        %v2651 = vand.u32 %v1895, 4294901760
        %v2652 = vsub.f32 %v1895, %v2651
        %2653 = vmatprep.mubr.f32.mxu0 %v2652
        %v2654 = vand.u32 %v1804, 4294901760
        %v2655 = vsub.f32 %v1804, %v2654
        %2656 = vmatmul.mubr.f32.gmra.mrb[0].mxu0 %v2655
        %v2657 = vpop.f32.mrb[0].mxu0
        %v2658 = vadd.f32 %v2445, %v2657
        %v2659 = vpop.f32.mrb[0].mxu0
        %v2660 = vadd.f32 %v2447, %v2659
        %v2661 = vand.u32 %v1898, 4294901760
        %v2662 = vsub.f32 %v1898, %v2661
        %2663 = vmatprep.mubr.f32.mxu0 %v2662
        %v2664 = vand.u32 %v1806, 4294901760
        %v2665 = vsub.f32 %v1806, %v2664
        %2666 = vmatmul.mubr.f32.gmra.mrb[0].mxu0 %v2665
        %v2667 = vpop.f32.mrb[0].mxu0
        %v2668 = vadd.f32 %v2453, %v2667
        %v2669 = vpop.f32.mrb[0].mxu0
        %v2670 = vadd.f32 %v2455, %v2669
        %v2671 = vand.u32 %v1901, 4294901760
        %v2672 = vsub.f32 %v1901, %v2671
        %2673 = vmatprep.mubr.f32.mxu0 %v2672
        %v2674 = vand.u32 %v1808, 4294901760
        %v2675 = vsub.f32 %v1808, %v2674
        %2676 = vmatmul.mubr.f32.gmra.mrb[0].mxu0 %v2675
        %v2677 = vpop.f32.mrb[0].mxu0
        %v2678 = vadd.f32 %v2461, %v2677
        %v2679 = vpop.f32.mrb[0].mxu0
        %v2680 = vadd.f32 %v2463, %v2679
        %2681 = vdwg.mxu0
        %v2682 = vand.u32 %v1811, 4294901760
        %2683 = vmatprep.subr.mxu0 %v2682
        %v2684 = vand.u32 %v1810, 4294901760
        %2685 = vmatpush1.msra.mxu0 %v2684
        %v2686 = vand.u32 %v1813, 4294901760
        %2687 = vmatprep.subr.mxu0 %v2686
        %v2688 = vand.u32 %v1812, 4294901760
        %2689 = vmatpush1.msra.mxu0 %v2688
        %v2690 = vand.u32 %v1815, 4294901760
        %2691 = vmatprep.subr.mxu0 %v2690
        %v2692 = vand.u32 %v1814, 4294901760
        %2693 = vmatpush1.msra.mxu0 %v2692
        %v2694 = vand.u32 %v1817, 4294901760
        %2695 = vmatprep.subr.mxu0 %v2694
        %v2696 = vand.u32 %v1816, 4294901760
        %2697 = vmatpush1.msra.mxu0 %v2696
        %v2698 = vand.u32 %v1819, 4294901760
        %2699 = vmatprep.subr.mxu0 %v2698
        %v2700 = vand.u32 %v1818, 4294901760
        %2701 = vmatpush1.msra.mxu0 %v2700
        %v2702 = vand.u32 %v1821, 4294901760
        %2703 = vmatprep.subr.mxu0 %v2702
        %v2704 = vand.u32 %v1820, 4294901760
        %2705 = vmatpush1.msra.mxu0 %v2704
        %v2706 = vand.u32 %v1823, 4294901760
        %2707 = vmatprep.subr.mxu0 %v2706
        %v2708 = vand.u32 %v1822, 4294901760
        %2709 = vmatpush1.msra.mxu0 %v2708
        %v2710 = vand.u32 %v1825, 4294901760
        %2711 = vmatprep.subr.mxu0 %v2710
        %v2712 = vand.u32 %v1824, 4294901760
        %2713 = vmatpush1.msra.mxu0 %v2712
        %v2714 = vand.u32 %v1827, 4294901760
        %2715 = vmatprep.subr.mxu0 %v2714
        %v2716 = vand.u32 %v1826, 4294901760
        %2717 = vmatpush1.msra.mxu0 %v2716
        %v2718 = vand.u32 %v1829, 4294901760
        %2719 = vmatprep.subr.mxu0 %v2718
        %v2720 = vand.u32 %v1828, 4294901760
        %2721 = vmatpush1.msra.mxu0 %v2720
        %v2722 = vand.u32 %v1831, 4294901760
        %2723 = vmatprep.subr.mxu0 %v2722
        %v2724 = vand.u32 %v1830, 4294901760
        %2725 = vmatpush1.msra.mxu0 %v2724
        %v2726 = vand.u32 %v1833, 4294901760
        %2727 = vmatprep.subr.mxu0 %v2726
        %v2728 = vand.u32 %v1832, 4294901760
        %2729 = vmatpush1.msra.mxu0 %v2728
        %v2730 = vand.u32 %v1835, 4294901760
        %2731 = vmatprep.subr.mxu0 %v2730
        %v2732 = vand.u32 %v1834, 4294901760
        %2733 = vmatpush1.msra.mxu0 %v2732
        %v2734 = vand.u32 %v1837, 4294901760
        %2735 = vmatprep.subr.mxu0 %v2734
        %v2736 = vand.u32 %v1836, 4294901760
        %2737 = vmatpush1.msra.mxu0 %v2736
        %v2738 = vand.u32 %v1839, 4294901760
        %2739 = vmatprep.subr.mxu0 %v2738
        %v2740 = vand.u32 %v1838, 4294901760
        %2741 = vmatpush1.msra.mxu0 %v2740
        %v2742 = vand.u32 %v1841, 4294901760
        %2743 = vmatprep.subr.mxu0 %v2742
        %v2744 = vand.u32 %v1840, 4294901760
        %2745 = vmatpush1.msra.mxu0 %v2744
        %v2746 = vand.u32 %v1843, 4294901760
        %2747 = vmatprep.subr.mxu0 %v2746
        %v2748 = vand.u32 %v1842, 4294901760
        %2749 = vmatpush1.msra.mxu0 %v2748
        %v2750 = vand.u32 %v1845, 4294901760
        %2751 = vmatprep.subr.mxu0 %v2750
        %v2752 = vand.u32 %v1844, 4294901760
        %2753 = vmatpush1.msra.mxu0 %v2752
        %v2754 = vand.u32 %v1847, 4294901760
        %2755 = vmatprep.subr.mxu0 %v2754
        %v2756 = vand.u32 %v1846, 4294901760
        %2757 = vmatpush1.msra.mxu0 %v2756
        %v2758 = vand.u32 %v1849, 4294901760
        %2759 = vmatprep.subr.mxu0 %v2758
        %v2760 = vand.u32 %v1848, 4294901760
        %2761 = vmatpush1.msra.mxu0 %v2760
        %v2762 = vand.u32 %v1851, 4294901760
        %2763 = vmatprep.subr.mxu0 %v2762
        %v2764 = vand.u32 %v1850, 4294901760
        %2765 = vmatpush1.msra.mxu0 %v2764
        %v2766 = vand.u32 %v1853, 4294901760
        %2767 = vmatprep.subr.mxu0 %v2766
        %v2768 = vand.u32 %v1852, 4294901760
        %2769 = vmatpush1.msra.mxu0 %v2768
        %v2770 = vand.u32 %v1855, 4294901760
        %2771 = vmatprep.subr.mxu0 %v2770
        %v2772 = vand.u32 %v1854, 4294901760
        %2773 = vmatpush1.msra.mxu0 %v2772
        %v2774 = vand.u32 %v1857, 4294901760
        %2775 = vmatprep.subr.mxu0 %v2774
        %v2776 = vand.u32 %v1856, 4294901760
        %2777 = vmatpush1.msra.mxu0 %v2776
        %v2778 = vand.u32 %v1859, 4294901760
        %2779 = vmatprep.subr.mxu0 %v2778
        %v2780 = vand.u32 %v1858, 4294901760
        %2781 = vmatpush1.msra.mxu0 %v2780
        %v2782 = vand.u32 %v1861, 4294901760
        %2783 = vmatprep.subr.mxu0 %v2782
        %v2784 = vand.u32 %v1860, 4294901760
        %2785 = vmatpush1.msra.mxu0 %v2784
        %v2786 = vand.u32 %v1863, 4294901760
        %2787 = vmatprep.subr.mxu0 %v2786
        %v2788 = vand.u32 %v1862, 4294901760
        %2789 = vmatpush1.msra.mxu0 %v2788
        %v2790 = vand.u32 %v1865, 4294901760
        %2791 = vmatprep.subr.mxu0 %v2790
        %v2792 = vand.u32 %v1864, 4294901760
        %2793 = vmatpush1.msra.mxu0 %v2792
        %2794 = vmatprep.subr.mxu0 0.0
        %2795 = vmatpush1.msra.mxu0 0.0
        %2796 = vmatprep.subr.mxu0 0.0
        %2797 = vmatpush1.msra.mxu0 0.0
        %2798 = vmatprep.subr.mxu0 0.0
        %2799 = vmatpush1.msra.mxu0 0.0
        %2800 = vmatprep.subr.mxu0 0.0
        %2801 = vmatpush1.msra.mxu0 0.0
        %v2802 = vand.u32 %v1892, 4294901760
        %v2803 = vsub.f32 %v1892, %v2802
        %v2804 = vand.u32 %v2803, 4294901760
        %2805 = vmatprep.mubr.f32.mxu0 %v2804
        %v2806 = vand.u32 %v1802, 4294901760
        %v2807 = vsub.f32 %v1802, %v2806
        %v2808 = vand.u32 %v2807, 4294901760
        %2809 = vmatmul.mubr.f32.gmra.mrb[0].mxu0 %v2808
        %v2810 = vpop.f32.mrb[0].mxu0
        %v2811 = vadd.f32 %v2648, %v2810
        %v2812 = vpop.f32.mrb[0].mxu0
        %v2813 = vadd.f32 %v2650, %v2812
        %v2814 = vand.u32 %v1895, 4294901760
        %v2815 = vsub.f32 %v1895, %v2814
        %v2816 = vand.u32 %v2815, 4294901760
        %2817 = vmatprep.mubr.f32.mxu0 %v2816
        %v2818 = vand.u32 %v1804, 4294901760
        %v2819 = vsub.f32 %v1804, %v2818
        %v2820 = vand.u32 %v2819, 4294901760
        %2821 = vmatmul.mubr.f32.gmra.mrb[0].mxu0 %v2820
        %v2822 = vpop.f32.mrb[0].mxu0
        %v2823 = vadd.f32 %v2658, %v2822
        %v2824 = vpop.f32.mrb[0].mxu0
        %v2825 = vadd.f32 %v2660, %v2824
        %v2826 = vand.u32 %v1898, 4294901760
        %v2827 = vsub.f32 %v1898, %v2826
        %v2828 = vand.u32 %v2827, 4294901760
        %2829 = vmatprep.mubr.f32.mxu0 %v2828
        %v2830 = vand.u32 %v1806, 4294901760
        %v2831 = vsub.f32 %v1806, %v2830
        %v2832 = vand.u32 %v2831, 4294901760
        %2833 = vmatmul.mubr.f32.gmra.mrb[0].mxu0 %v2832
        %v2834 = vpop.f32.mrb[0].mxu0
        %v2835 = vadd.f32 %v2668, %v2834
        %v2836 = vpop.f32.mrb[0].mxu0
        %v2837 = vadd.f32 %v2670, %v2836
        %v2838 = vand.u32 %v1901, 4294901760
        %v2839 = vsub.f32 %v1901, %v2838
        %v2840 = vand.u32 %v2839, 4294901760
        %2841 = vmatprep.mubr.f32.mxu0 %v2840
        %v2842 = vand.u32 %v1808, 4294901760
        %v2843 = vsub.f32 %v1808, %v2842
        %v2844 = vand.u32 %v2843, 4294901760
        %2845 = vmatmul.mubr.f32.gmra.mrb[0].mxu0 %v2844
        %v2846 = vpop.f32.mrb[0].mxu0
        %v2847 = vadd.f32 %v2678, %v2846
        %v2848 = vpop.f32.mrb[0].mxu0
        %v2849 = vadd.f32 %v2680, %v2848
        %2850 = vdwg.mxu0
        %v2851 = vand.u32 %v1811, 4294901760
        %v2852 = vsub.f32 %v1811, %v2851
        %v2853 = vand.u32 %v2852, 4294901760
        %2854 = vmatprep.subr.mxu0 %v2853
        %v2855 = vand.u32 %v1810, 4294901760
        %v2856 = vsub.f32 %v1810, %v2855
        %v2857 = vand.u32 %v2856, 4294901760
        %2858 = vmatpush1.msra.mxu0 %v2857
        %v2859 = vand.u32 %v1813, 4294901760
        %v2860 = vsub.f32 %v1813, %v2859
        %v2861 = vand.u32 %v2860, 4294901760
        %2862 = vmatprep.subr.mxu0 %v2861
        %v2863 = vand.u32 %v1812, 4294901760
        %v2864 = vsub.f32 %v1812, %v2863
        %v2865 = vand.u32 %v2864, 4294901760
        %2866 = vmatpush1.msra.mxu0 %v2865
        %v2867 = vand.u32 %v1815, 4294901760
        %v2868 = vsub.f32 %v1815, %v2867
        %v2869 = vand.u32 %v2868, 4294901760
        %2870 = vmatprep.subr.mxu0 %v2869
        %v2871 = vand.u32 %v1814, 4294901760
        %v2872 = vsub.f32 %v1814, %v2871
        %v2873 = vand.u32 %v2872, 4294901760
        %2874 = vmatpush1.msra.mxu0 %v2873
        %v2875 = vand.u32 %v1817, 4294901760
        %v2876 = vsub.f32 %v1817, %v2875
        %v2877 = vand.u32 %v2876, 4294901760
        %2878 = vmatprep.subr.mxu0 %v2877
        %v2879 = vand.u32 %v1816, 4294901760
        %v2880 = vsub.f32 %v1816, %v2879
        %v2881 = vand.u32 %v2880, 4294901760
        %2882 = vmatpush1.msra.mxu0 %v2881
        %v2883 = vand.u32 %v1819, 4294901760
        %v2884 = vsub.f32 %v1819, %v2883
        %v2885 = vand.u32 %v2884, 4294901760
        %2886 = vmatprep.subr.mxu0 %v2885
        %v2887 = vand.u32 %v1818, 4294901760
        %v2888 = vsub.f32 %v1818, %v2887
        %v2889 = vand.u32 %v2888, 4294901760
        %2890 = vmatpush1.msra.mxu0 %v2889
        %v2891 = vand.u32 %v1821, 4294901760
        %v2892 = vsub.f32 %v1821, %v2891
        %v2893 = vand.u32 %v2892, 4294901760
        %2894 = vmatprep.subr.mxu0 %v2893
        %v2895 = vand.u32 %v1820, 4294901760
        %v2896 = vsub.f32 %v1820, %v2895
        %v2897 = vand.u32 %v2896, 4294901760
        %2898 = vmatpush1.msra.mxu0 %v2897
        %v2899 = vand.u32 %v1823, 4294901760
        %v2900 = vsub.f32 %v1823, %v2899
        %v2901 = vand.u32 %v2900, 4294901760
        %2902 = vmatprep.subr.mxu0 %v2901
        %v2903 = vand.u32 %v1822, 4294901760
        %v2904 = vsub.f32 %v1822, %v2903
        %v2905 = vand.u32 %v2904, 4294901760
        %2906 = vmatpush1.msra.mxu0 %v2905
        %v2907 = vand.u32 %v1825, 4294901760
        %v2908 = vsub.f32 %v1825, %v2907
        %v2909 = vand.u32 %v2908, 4294901760
        %2910 = vmatprep.subr.mxu0 %v2909
        %v2911 = vand.u32 %v1824, 4294901760
        %v2912 = vsub.f32 %v1824, %v2911
        %v2913 = vand.u32 %v2912, 4294901760
        %2914 = vmatpush1.msra.mxu0 %v2913
        %v2915 = vand.u32 %v1827, 4294901760
        %v2916 = vsub.f32 %v1827, %v2915
        %v2917 = vand.u32 %v2916, 4294901760
        %2918 = vmatprep.subr.mxu0 %v2917
        %v2919 = vand.u32 %v1826, 4294901760
        %v2920 = vsub.f32 %v1826, %v2919
        %v2921 = vand.u32 %v2920, 4294901760
        %2922 = vmatpush1.msra.mxu0 %v2921
        %v2923 = vand.u32 %v1829, 4294901760
        %v2924 = vsub.f32 %v1829, %v2923
        %v2925 = vand.u32 %v2924, 4294901760
        %2926 = vmatprep.subr.mxu0 %v2925
        %v2927 = vand.u32 %v1828, 4294901760
        %v2928 = vsub.f32 %v1828, %v2927
        %v2929 = vand.u32 %v2928, 4294901760
        %2930 = vmatpush1.msra.mxu0 %v2929
        %v2931 = vand.u32 %v1831, 4294901760
        %v2932 = vsub.f32 %v1831, %v2931
        %v2933 = vand.u32 %v2932, 4294901760
        %2934 = vmatprep.subr.mxu0 %v2933
        %v2935 = vand.u32 %v1830, 4294901760
        %v2936 = vsub.f32 %v1830, %v2935
        %v2937 = vand.u32 %v2936, 4294901760
        %2938 = vmatpush1.msra.mxu0 %v2937
        %v2939 = vand.u32 %v1833, 4294901760
        %v2940 = vsub.f32 %v1833, %v2939
        %v2941 = vand.u32 %v2940, 4294901760
        %2942 = vmatprep.subr.mxu0 %v2941
        %v2943 = vand.u32 %v1832, 4294901760
        %v2944 = vsub.f32 %v1832, %v2943
        %v2945 = vand.u32 %v2944, 4294901760
        %2946 = vmatpush1.msra.mxu0 %v2945
        %v2947 = vand.u32 %v1835, 4294901760
        %v2948 = vsub.f32 %v1835, %v2947
        %v2949 = vand.u32 %v2948, 4294901760
        %2950 = vmatprep.subr.mxu0 %v2949
        %v2951 = vand.u32 %v1834, 4294901760
        %v2952 = vsub.f32 %v1834, %v2951
        %v2953 = vand.u32 %v2952, 4294901760
        %2954 = vmatpush1.msra.mxu0 %v2953
        %v2955 = vand.u32 %v1837, 4294901760
        %v2956 = vsub.f32 %v1837, %v2955
        %v2957 = vand.u32 %v2956, 4294901760
        %2958 = vmatprep.subr.mxu0 %v2957
        %v2959 = vand.u32 %v1836, 4294901760
        %v2960 = vsub.f32 %v1836, %v2959
        %v2961 = vand.u32 %v2960, 4294901760
        %2962 = vmatpush1.msra.mxu0 %v2961
        %v2963 = vand.u32 %v1839, 4294901760
        %v2964 = vsub.f32 %v1839, %v2963
        %v2965 = vand.u32 %v2964, 4294901760
        %2966 = vmatprep.subr.mxu0 %v2965
        %v2967 = vand.u32 %v1838, 4294901760
        %v2968 = vsub.f32 %v1838, %v2967
        %v2969 = vand.u32 %v2968, 4294901760
        %2970 = vmatpush1.msra.mxu0 %v2969
        %v2971 = vand.u32 %v1841, 4294901760
        %v2972 = vsub.f32 %v1841, %v2971
        %v2973 = vand.u32 %v2972, 4294901760
        %2974 = vmatprep.subr.mxu0 %v2973
        %v2975 = vand.u32 %v1840, 4294901760
        %v2976 = vsub.f32 %v1840, %v2975
        %v2977 = vand.u32 %v2976, 4294901760
        %2978 = vmatpush1.msra.mxu0 %v2977
        %v2979 = vand.u32 %v1843, 4294901760
        %v2980 = vsub.f32 %v1843, %v2979
        %v2981 = vand.u32 %v2980, 4294901760
        %2982 = vmatprep.subr.mxu0 %v2981
        %v2983 = vand.u32 %v1842, 4294901760
        %v2984 = vsub.f32 %v1842, %v2983
        %v2985 = vand.u32 %v2984, 4294901760
        %2986 = vmatpush1.msra.mxu0 %v2985
        %v2987 = vand.u32 %v1845, 4294901760
        %v2988 = vsub.f32 %v1845, %v2987
        %v2989 = vand.u32 %v2988, 4294901760
        %2990 = vmatprep.subr.mxu0 %v2989
        %v2991 = vand.u32 %v1844, 4294901760
        %v2992 = vsub.f32 %v1844, %v2991
        %v2993 = vand.u32 %v2992, 4294901760
        %2994 = vmatpush1.msra.mxu0 %v2993
        %v2995 = vand.u32 %v1847, 4294901760
        %v2996 = vsub.f32 %v1847, %v2995
        %v2997 = vand.u32 %v2996, 4294901760
        %2998 = vmatprep.subr.mxu0 %v2997
        %v2999 = vand.u32 %v1846, 4294901760
        %v3000 = vsub.f32 %v1846, %v2999
        %v3001 = vand.u32 %v3000, 4294901760
        %3002 = vmatpush1.msra.mxu0 %v3001
        %v3003 = vand.u32 %v1849, 4294901760
        %v3004 = vsub.f32 %v1849, %v3003
        %v3005 = vand.u32 %v3004, 4294901760
        %3006 = vmatprep.subr.mxu0 %v3005
        %v3007 = vand.u32 %v1848, 4294901760
        %v3008 = vsub.f32 %v1848, %v3007
        %v3009 = vand.u32 %v3008, 4294901760
        %3010 = vmatpush1.msra.mxu0 %v3009
        %v3011 = vand.u32 %v1851, 4294901760
        %v3012 = vsub.f32 %v1851, %v3011
        %v3013 = vand.u32 %v3012, 4294901760
        %3014 = vmatprep.subr.mxu0 %v3013
        %v3015 = vand.u32 %v1850, 4294901760
        %v3016 = vsub.f32 %v1850, %v3015
        %v3017 = vand.u32 %v3016, 4294901760
        %3018 = vmatpush1.msra.mxu0 %v3017
        %v3019 = vand.u32 %v1853, 4294901760
        %v3020 = vsub.f32 %v1853, %v3019
        %v3021 = vand.u32 %v3020, 4294901760
        %3022 = vmatprep.subr.mxu0 %v3021
        %v3023 = vand.u32 %v1852, 4294901760
        %v3024 = vsub.f32 %v1852, %v3023
        %v3025 = vand.u32 %v3024, 4294901760
        %3026 = vmatpush1.msra.mxu0 %v3025
        %v3027 = vand.u32 %v1855, 4294901760
        %v3028 = vsub.f32 %v1855, %v3027
        %v3029 = vand.u32 %v3028, 4294901760
        %3030 = vmatprep.subr.mxu0 %v3029
        %v3031 = vand.u32 %v1854, 4294901760
        %v3032 = vsub.f32 %v1854, %v3031
        %v3033 = vand.u32 %v3032, 4294901760
        %3034 = vmatpush1.msra.mxu0 %v3033
        %v3035 = vand.u32 %v1857, 4294901760
        %v3036 = vsub.f32 %v1857, %v3035
        %v3037 = vand.u32 %v3036, 4294901760
        %3038 = vmatprep.subr.mxu0 %v3037
        %v3039 = vand.u32 %v1856, 4294901760
        %v3040 = vsub.f32 %v1856, %v3039
        %v3041 = vand.u32 %v3040, 4294901760
        %3042 = vmatpush1.msra.mxu0 %v3041
        %v3043 = vand.u32 %v1859, 4294901760
        %v3044 = vsub.f32 %v1859, %v3043
        %v3045 = vand.u32 %v3044, 4294901760
        %3046 = vmatprep.subr.mxu0 %v3045
        %v3047 = vand.u32 %v1858, 4294901760
        %v3048 = vsub.f32 %v1858, %v3047
        %v3049 = vand.u32 %v3048, 4294901760
        %3050 = vmatpush1.msra.mxu0 %v3049
        %v3051 = vand.u32 %v1861, 4294901760
        %v3052 = vsub.f32 %v1861, %v3051
        %v3053 = vand.u32 %v3052, 4294901760
        %3054 = vmatprep.subr.mxu0 %v3053
        %v3055 = vand.u32 %v1860, 4294901760
        %v3056 = vsub.f32 %v1860, %v3055
        %v3057 = vand.u32 %v3056, 4294901760
        %3058 = vmatpush1.msra.mxu0 %v3057
        %v3059 = vand.u32 %v1863, 4294901760
        %v3060 = vsub.f32 %v1863, %v3059
        %v3061 = vand.u32 %v3060, 4294901760
        %3062 = vmatprep.subr.mxu0 %v3061
        %v3063 = vand.u32 %v1862, 4294901760
        %v3064 = vsub.f32 %v1862, %v3063
        %v3065 = vand.u32 %v3064, 4294901760
        %3066 = vmatpush1.msra.mxu0 %v3065
        %v3067 = vand.u32 %v1865, 4294901760
        %v3068 = vsub.f32 %v1865, %v3067
        %v3069 = vand.u32 %v3068, 4294901760
        %3070 = vmatprep.subr.mxu0 %v3069
        %v3071 = vand.u32 %v1864, 4294901760
        %v3072 = vsub.f32 %v1864, %v3071
        %v3073 = vand.u32 %v3072, 4294901760
        %3074 = vmatpush1.msra.mxu0 %v3073
        %3075 = vmatprep.subr.mxu0 0.0
        %3076 = vmatpush1.msra.mxu0 0.0
        %3077 = vmatprep.subr.mxu0 0.0
        %3078 = vmatpush1.msra.mxu0 0.0
        %3079 = vmatprep.subr.mxu0 0.0
        %3080 = vmatpush1.msra.mxu0 0.0
        %3081 = vmatprep.subr.mxu0 0.0
        %3082 = vmatpush1.msra.mxu0 0.0
        %v3083 = vand.u32 %v1892, 4294901760
        %3084 = vmatprep.mubr.f32.mxu0 %v3083
        %v3085 = vand.u32 %v1802, 4294901760
        %3086 = vmatmul.mubr.f32.gmra.mrb[0].mxu0 %v3085
        %v3087 = vpop.f32.mrb[0].mxu0
        %v3088 = vadd.f32 %v2811, %v3087
        %v3089 = vpop.f32.mrb[0].mxu0
        %v3090 = vadd.f32 %v2813, %v3089
        %v3091 = vand.u32 %v1895, 4294901760
        %3092 = vmatprep.mubr.f32.mxu0 %v3091
        %v3093 = vand.u32 %v1804, 4294901760
        %3094 = vmatmul.mubr.f32.gmra.mrb[0].mxu0 %v3093
        %v3095 = vpop.f32.mrb[0].mxu0
        %v3096 = vadd.f32 %v2823, %v3095
        %v3097 = vpop.f32.mrb[0].mxu0
        %v3098 = vadd.f32 %v2825, %v3097
        %v3099 = vand.u32 %v1898, 4294901760
        %3100 = vmatprep.mubr.f32.mxu0 %v3099
        %v3101 = vand.u32 %v1806, 4294901760
        %3102 = vmatmul.mubr.f32.gmra.mrb[0].mxu0 %v3101
        %v3103 = vpop.f32.mrb[0].mxu0
        %v3104 = vadd.f32 %v2835, %v3103
        %v3105 = vpop.f32.mrb[0].mxu0
        %v3106 = vadd.f32 %v2837, %v3105
        %v3107 = vand.u32 %v1901, 4294901760
        %3108 = vmatprep.mubr.f32.mxu0 %v3107
        %v3109 = vand.u32 %v1808, 4294901760
        %3110 = vmatmul.mubr.f32.gmra.mrb[0].mxu0 %v3109
        %v3111 = vpop.f32.mrb[0].mxu0
        %v3112 = vadd.f32 %v2847, %v3111
        %v3113 = vpop.f32.mrb[0].mxu0
        %v3114 = vadd.f32 %v2849, %v3113
        %3115 = vdwg.mxu0
        %v3116 = vand.u32 %v1811, 4294901760
        %3117 = vmatprep.subr.mxu0 %v3116
        %v3118 = vand.u32 %v1810, 4294901760
        %3119 = vmatpush1.msra.mxu0 %v3118
        %v3120 = vand.u32 %v1813, 4294901760
        %3121 = vmatprep.subr.mxu0 %v3120
        %v3122 = vand.u32 %v1812, 4294901760
        %3123 = vmatpush1.msra.mxu0 %v3122
        %v3124 = vand.u32 %v1815, 4294901760
        %3125 = vmatprep.subr.mxu0 %v3124
        %v3126 = vand.u32 %v1814, 4294901760
        %3127 = vmatpush1.msra.mxu0 %v3126
        %v3128 = vand.u32 %v1817, 4294901760
        %3129 = vmatprep.subr.mxu0 %v3128
        %v3130 = vand.u32 %v1816, 4294901760
        %3131 = vmatpush1.msra.mxu0 %v3130
        %v3132 = vand.u32 %v1819, 4294901760
        %3133 = vmatprep.subr.mxu0 %v3132
        %v3134 = vand.u32 %v1818, 4294901760
        %3135 = vmatpush1.msra.mxu0 %v3134
        %v3136 = vand.u32 %v1821, 4294901760
        %3137 = vmatprep.subr.mxu0 %v3136
        %v3138 = vand.u32 %v1820, 4294901760
        %3139 = vmatpush1.msra.mxu0 %v3138
        %v3140 = vand.u32 %v1823, 4294901760
        %3141 = vmatprep.subr.mxu0 %v3140
        %v3142 = vand.u32 %v1822, 4294901760
        %3143 = vmatpush1.msra.mxu0 %v3142
        %v3144 = vand.u32 %v1825, 4294901760
        %3145 = vmatprep.subr.mxu0 %v3144
        %v3146 = vand.u32 %v1824, 4294901760
        %3147 = vmatpush1.msra.mxu0 %v3146
        %v3148 = vand.u32 %v1827, 4294901760
        %3149 = vmatprep.subr.mxu0 %v3148
        %v3150 = vand.u32 %v1826, 4294901760
        %3151 = vmatpush1.msra.mxu0 %v3150
        %v3152 = vand.u32 %v1829, 4294901760
        %3153 = vmatprep.subr.mxu0 %v3152
        %v3154 = vand.u32 %v1828, 4294901760
        %3155 = vmatpush1.msra.mxu0 %v3154
        %v3156 = vand.u32 %v1831, 4294901760
        %3157 = vmatprep.subr.mxu0 %v3156
        %v3158 = vand.u32 %v1830, 4294901760
        %3159 = vmatpush1.msra.mxu0 %v3158
        %v3160 = vand.u32 %v1833, 4294901760
        %3161 = vmatprep.subr.mxu0 %v3160
        %v3162 = vand.u32 %v1832, 4294901760
        %3163 = vmatpush1.msra.mxu0 %v3162
        %v3164 = vand.u32 %v1835, 4294901760
        %3165 = vmatprep.subr.mxu0 %v3164
        %v3166 = vand.u32 %v1834, 4294901760
        %3167 = vmatpush1.msra.mxu0 %v3166
        %v3168 = vand.u32 %v1837, 4294901760
        %3169 = vmatprep.subr.mxu0 %v3168
        %v3170 = vand.u32 %v1836, 4294901760
        %3171 = vmatpush1.msra.mxu0 %v3170
        %v3172 = vand.u32 %v1839, 4294901760
        %3173 = vmatprep.subr.mxu0 %v3172
        %v3174 = vand.u32 %v1838, 4294901760
        %3175 = vmatpush1.msra.mxu0 %v3174
        %v3176 = vand.u32 %v1841, 4294901760
        %3177 = vmatprep.subr.mxu0 %v3176
        %v3178 = vand.u32 %v1840, 4294901760
        %3179 = vmatpush1.msra.mxu0 %v3178
        %v3180 = vand.u32 %v1843, 4294901760
        %3181 = vmatprep.subr.mxu0 %v3180
        %v3182 = vand.u32 %v1842, 4294901760
        %3183 = vmatpush1.msra.mxu0 %v3182
        %v3184 = vand.u32 %v1845, 4294901760
        %3185 = vmatprep.subr.mxu0 %v3184
        %v3186 = vand.u32 %v1844, 4294901760
        %3187 = vmatpush1.msra.mxu0 %v3186
        %v3188 = vand.u32 %v1847, 4294901760
        %3189 = vmatprep.subr.mxu0 %v3188
        %v3190 = vand.u32 %v1846, 4294901760
        %3191 = vmatpush1.msra.mxu0 %v3190
        %v3192 = vand.u32 %v1849, 4294901760
        %3193 = vmatprep.subr.mxu0 %v3192
        %v3194 = vand.u32 %v1848, 4294901760
        %3195 = vmatpush1.msra.mxu0 %v3194
        %v3196 = vand.u32 %v1851, 4294901760
        %3197 = vmatprep.subr.mxu0 %v3196
        %v3198 = vand.u32 %v1850, 4294901760
        %3199 = vmatpush1.msra.mxu0 %v3198
        %v3200 = vand.u32 %v1853, 4294901760
        %3201 = vmatprep.subr.mxu0 %v3200
        %v3202 = vand.u32 %v1852, 4294901760
        %3203 = vmatpush1.msra.mxu0 %v3202
        %v3204 = vand.u32 %v1855, 4294901760
        %3205 = vmatprep.subr.mxu0 %v3204
        %v3206 = vand.u32 %v1854, 4294901760
        %3207 = vmatpush1.msra.mxu0 %v3206
        %v3208 = vand.u32 %v1857, 4294901760
        %3209 = vmatprep.subr.mxu0 %v3208
        %v3210 = vand.u32 %v1856, 4294901760
        %3211 = vmatpush1.msra.mxu0 %v3210
        %v3212 = vand.u32 %v1859, 4294901760
        %3213 = vmatprep.subr.mxu0 %v3212
        %v3214 = vand.u32 %v1858, 4294901760
        %3215 = vmatpush1.msra.mxu0 %v3214
        %v3216 = vand.u32 %v1861, 4294901760
        %3217 = vmatprep.subr.mxu0 %v3216
        %v3218 = vand.u32 %v1860, 4294901760
        %3219 = vmatpush1.msra.mxu0 %v3218
        %v3220 = vand.u32 %v1863, 4294901760
        %3221 = vmatprep.subr.mxu0 %v3220
        %v3222 = vand.u32 %v1862, 4294901760
        %3223 = vmatpush1.msra.mxu0 %v3222
        %v3224 = vand.u32 %v1865, 4294901760
        %3225 = vmatprep.subr.mxu0 %v3224
        %v3226 = vand.u32 %v1864, 4294901760
        %3227 = vmatpush1.msra.mxu0 %v3226
        %3228 = vmatprep.subr.mxu0 0.0
        %3229 = vmatpush1.msra.mxu0 0.0
        %3230 = vmatprep.subr.mxu0 0.0
        %3231 = vmatpush1.msra.mxu0 0.0
        %3232 = vmatprep.subr.mxu0 0.0
        %3233 = vmatpush1.msra.mxu0 0.0
        %3234 = vmatprep.subr.mxu0 0.0
        %3235 = vmatpush1.msra.mxu0 0.0
        %v3236 = vand.u32 %v1892, 4294901760
        %3237 = vmatprep.mubr.f32.mxu0 %v3236
        %v3238 = vand.u32 %v1802, 4294901760
        %3239 = vmatmul.mubr.f32.gmra.mrb[0].mxu0 %v3238
        %v3240 = vpop.f32.mrb[0].mxu0
        %v3241 = vadd.f32 %v3088, %v3240
        %v3242 = vpop.f32.mrb[0].mxu0
        %v3243 = vadd.f32 %v3090, %v3242
        %v3244 = vand.u32 %v1895, 4294901760
        %3245 = vmatprep.mubr.f32.mxu0 %v3244
        %v3246 = vand.u32 %v1804, 4294901760
        %3247 = vmatmul.mubr.f32.gmra.mrb[0].mxu0 %v3246
        %v3248 = vpop.f32.mrb[0].mxu0
        %v3249 = vadd.f32 %v3096, %v3248
        %v3250 = vpop.f32.mrb[0].mxu0
        %v3251 = vadd.f32 %v3098, %v3250
        %v3252 = vand.u32 %v1898, 4294901760
        %3253 = vmatprep.mubr.f32.mxu0 %v3252
        %v3254 = vand.u32 %v1806, 4294901760
        %3255 = vmatmul.mubr.f32.gmra.mrb[0].mxu0 %v3254
        %v3256 = vpop.f32.mrb[0].mxu0
        %v3257 = vadd.f32 %v3104, %v3256
        %v3258 = vpop.f32.mrb[0].mxu0
        %v3259 = vadd.f32 %v3106, %v3258
        %v3260 = vand.u32 %v1901, 4294901760
        %3261 = vmatprep.mubr.f32.mxu0 %v3260
        %v3262 = vand.u32 %v1808, 4294901760
        %3263 = vmatmul.mubr.f32.gmra.mrb[0].mxu0 %v3262
        %v3264 = vpop.f32.mrb[0].mxu0
        %v3265 = vadd.f32 %v3112, %v3264
        %v3266 = vpop.f32.mrb[0].mxu0
        %v3267 = vadd.f32 %v3114, %v3266
        %3268 = vdwg.mxu0
        %v3269 = vmul.f32 %v1213, %v3241
        %v3270 = vmul.f32 %v1214, %v3243
        %v3271 = vmul.f32 %v1215, %v3249
        %v3272 = vmul.f32 %v1216, %v3251
        %v3273 = vmul.f32 %v1217, %v3257
        %v3274 = vmul.f32 %v1218, %v3259
        %v3275 = vmul.f32 %v1219, %v3265
        %v3276 = vmul.f32 %v1220, %v3267
        %v3277 = vld [vmem:[%s8] sm:$0xff]
        %v3278 = vld [vmem:[%s8 + $0x8] sm:$0xff]
        %v3279 = vld [vmem:[%s8 + $0x10] sm:$0xff]
        %v3280 = vld [vmem:[%s8 + $0x18] sm:$0xff]
        %v3281 = vld [vmem:[%s9] sm:$0xff]
        %v3282 = vld [vmem:[%s9 + $0x8] sm:$0xff]
        %v3283 = vld [vmem:[%s9 + $0x10] sm:$0xff]
        %v3284 = vld [vmem:[%s9 + $0x18] sm:$0xff]
        %3286 = vset.pattern.permute.xlu0 0
        %3287 = vperm.xlu0 %3286, %v3281
        %v3288 = vpop.permute.xlu0 %3287
        %3291 = vset.pattern.permute.xlu0 0
        %3292 = vperm.xlu0 %3291, %v3282
        %v3293 = vpop.permute.xlu0 %3292
        %3296 = vset.pattern.permute.xlu0 0
        %3297 = vperm.xlu0 %3296, %v3283
        %v3298 = vpop.permute.xlu0 %3297
        %3301 = vset.pattern.permute.xlu0 0
        %3302 = vperm.xlu0 %3301, %v3284
        %v3303 = vpop.permute.xlu0 %3302
        %v3306 = vsel %vm478, %v3277, 0
        %v3309 = vsel %vm478, %v3278, 0
        %v3312 = vsel %vm478, %v3279, 0
        %v3315 = vsel %vm478, %v3280, 0
        %v3317 = vand.u32 %v3270, 4294901760
        %3318 = vmatprep.subr.mxu0 %v3317
        %v3319 = vand.u32 %v3269, 4294901760
        %3320 = vmatpush1.msra.mxu0 %v3319
        %v3321 = vand.u32 %v3272, 4294901760
        %3322 = vmatprep.subr.mxu0 %v3321
        %v3323 = vand.u32 %v3271, 4294901760
        %3324 = vmatpush1.msra.mxu0 %v3323
        %v3325 = vand.u32 %v3274, 4294901760
        %3326 = vmatprep.subr.mxu0 %v3325
        %v3327 = vand.u32 %v3273, 4294901760
        %3328 = vmatpush1.msra.mxu0 %v3327
        %v3329 = vand.u32 %v3276, 4294901760
        %3330 = vmatprep.subr.mxu0 %v3329
        %v3331 = vand.u32 %v3275, 4294901760
        %3332 = vmatpush1.msra.mxu0 %v3331
        %3333 = vmatprep.subr.mxu0 0.0
        %3334 = vmatpush1.msra.mxu0 0.0
        %3335 = vmatprep.subr.mxu0 0.0
        %3336 = vmatpush1.msra.mxu0 0.0
        %3337 = vmatprep.subr.mxu0 0.0
        %3338 = vmatpush1.msra.mxu0 0.0
        %3339 = vmatprep.subr.mxu0 0.0
        %3340 = vmatpush1.msra.mxu0 0.0
        %3341 = vmatprep.subr.mxu0 0.0
        %3342 = vmatpush1.msra.mxu0 0.0
        %3343 = vmatprep.subr.mxu0 0.0
        %3344 = vmatpush1.msra.mxu0 0.0
        %3345 = vmatprep.subr.mxu0 0.0
        %3346 = vmatpush1.msra.mxu0 0.0
        %3347 = vmatprep.subr.mxu0 0.0
        %3348 = vmatpush1.msra.mxu0 0.0
        %3349 = vmatprep.subr.mxu0 0.0
        %3350 = vmatpush1.msra.mxu0 0.0
        %3351 = vmatprep.subr.mxu0 0.0
        %3352 = vmatpush1.msra.mxu0 0.0
        %3353 = vmatprep.subr.mxu0 0.0
        %3354 = vmatpush1.msra.mxu0 0.0
        %3355 = vmatprep.subr.mxu0 0.0
        %3356 = vmatpush1.msra.mxu0 0.0
        %3357 = vmatprep.subr.mxu0 0.0
        %3358 = vmatpush1.msra.mxu0 0.0
        %3359 = vmatprep.subr.mxu0 0.0
        %3360 = vmatpush1.msra.mxu0 0.0
        %3361 = vmatprep.subr.mxu0 0.0
        %3362 = vmatpush1.msra.mxu0 0.0
        %3363 = vmatprep.subr.mxu0 0.0
        %3364 = vmatpush1.msra.mxu0 0.0
        %3365 = vmatprep.subr.mxu0 0.0
        %3366 = vmatpush1.msra.mxu0 0.0
        %3367 = vmatprep.subr.mxu0 0.0
        %3368 = vmatpush1.msra.mxu0 0.0
        %3369 = vmatprep.subr.mxu0 0.0
        %3370 = vmatpush1.msra.mxu0 0.0
        %3371 = vmatprep.subr.mxu0 0.0
        %3372 = vmatpush1.msra.mxu0 0.0
        %3373 = vmatprep.subr.mxu0 0.0
        %3374 = vmatpush1.msra.mxu0 0.0
        %3375 = vmatprep.subr.mxu0 0.0
        %3376 = vmatpush1.msra.mxu0 0.0
        %3377 = vmatprep.subr.mxu0 0.0
        %3378 = vmatpush1.msra.mxu0 0.0
        %3379 = vmatprep.subr.mxu0 0.0
        %3380 = vmatpush1.msra.mxu0 0.0
        %3381 = vmatprep.subr.mxu0 0.0
        %3382 = vmatpush1.msra.mxu0 0.0
        %3383 = vmatprep.subr.mxu0 0.0
        %3384 = vmatpush1.msra.mxu0 0.0
        %3385 = vmatprep.subr.mxu0 0.0
        %3386 = vmatpush1.msra.mxu0 0.0
        %3387 = vmatprep.subr.mxu0 0.0
        %3388 = vmatpush1.msra.mxu0 0.0
        %3389 = vmatprep.mubr.f32.mxu0 0.0
        %v3390 = vand.u32 %v3306, 4294901760
        %v3391 = vsub.f32 %v3306, %v3390
        %v3392 = vand.u32 %v3391, 4294901760
        %v3393 = vsub.f32 %v3391, %v3392
        %v3394 = vand.u32 %v3393, 4294901760
        %3395 = vmatmul.mubr.f32.gmra.mrb[0].mxu0 %v3394
        %v3396 = vpop.f32.mrb[0].mxu0
        %v3397 = vadd.f32 %v3288, %v3396
        %v3398 = vpop.f32.mrb[0].mxu0
        %v3399 = vadd.f32 %v3288, %v3398
        %3400 = vmatprep.mubr.f32.mxu0 0.0
        %v3401 = vand.u32 %v3309, 4294901760
        %v3402 = vsub.f32 %v3309, %v3401
        %v3403 = vand.u32 %v3402, 4294901760
        %v3404 = vsub.f32 %v3402, %v3403
        %v3405 = vand.u32 %v3404, 4294901760
        %3406 = vmatmul.mubr.f32.gmra.mrb[0].mxu0 %v3405
        %v3407 = vpop.f32.mrb[0].mxu0
        %v3408 = vadd.f32 %v3293, %v3407
        %v3409 = vpop.f32.mrb[0].mxu0
        %v3410 = vadd.f32 %v3293, %v3409
        %3411 = vmatprep.mubr.f32.mxu0 0.0
        %v3412 = vand.u32 %v3312, 4294901760
        %v3413 = vsub.f32 %v3312, %v3412
        %v3414 = vand.u32 %v3413, 4294901760
        %v3415 = vsub.f32 %v3413, %v3414
        %v3416 = vand.u32 %v3415, 4294901760
        %3417 = vmatmul.mubr.f32.gmra.mrb[0].mxu0 %v3416
        %v3418 = vpop.f32.mrb[0].mxu0
        %v3419 = vadd.f32 %v3298, %v3418
        %v3420 = vpop.f32.mrb[0].mxu0
        %v3421 = vadd.f32 %v3298, %v3420
        %3422 = vmatprep.mubr.f32.mxu0 0.0
        %v3423 = vand.u32 %v3315, 4294901760
        %v3424 = vsub.f32 %v3315, %v3423
        %v3425 = vand.u32 %v3424, 4294901760
        %v3426 = vsub.f32 %v3424, %v3425
        %v3427 = vand.u32 %v3426, 4294901760
        %3428 = vmatmul.mubr.f32.gmra.mrb[0].mxu0 %v3427
        %v3429 = vpop.f32.mrb[0].mxu0
        %v3430 = vadd.f32 %v3303, %v3429
        %v3431 = vpop.f32.mrb[0].mxu0
        %v3432 = vadd.f32 %v3303, %v3431
        %3433 = vdwg.mxu0
        %v3434 = vand.u32 %v3270, 4294901760
        %v3435 = vsub.f32 %v3270, %v3434
        %v3436 = vand.u32 %v3435, 4294901760
        %v3437 = vsub.f32 %v3435, %v3436
        %v3438 = vand.u32 %v3437, 4294901760
        %3439 = vmatprep.subr.mxu0 %v3438
        %v3440 = vand.u32 %v3269, 4294901760
        %v3441 = vsub.f32 %v3269, %v3440
        %v3442 = vand.u32 %v3441, 4294901760
        %v3443 = vsub.f32 %v3441, %v3442
        %v3444 = vand.u32 %v3443, 4294901760
        %3445 = vmatpush1.msra.mxu0 %v3444
        %v3446 = vand.u32 %v3272, 4294901760
        %v3447 = vsub.f32 %v3272, %v3446
        %v3448 = vand.u32 %v3447, 4294901760
        %v3449 = vsub.f32 %v3447, %v3448
        %v3450 = vand.u32 %v3449, 4294901760
        %3451 = vmatprep.subr.mxu0 %v3450
        %v3452 = vand.u32 %v3271, 4294901760
        %v3453 = vsub.f32 %v3271, %v3452
        %v3454 = vand.u32 %v3453, 4294901760
        %v3455 = vsub.f32 %v3453, %v3454
        %v3456 = vand.u32 %v3455, 4294901760
        %3457 = vmatpush1.msra.mxu0 %v3456
        %v3458 = vand.u32 %v3274, 4294901760
        %v3459 = vsub.f32 %v3274, %v3458
        %v3460 = vand.u32 %v3459, 4294901760
        %v3461 = vsub.f32 %v3459, %v3460
        %v3462 = vand.u32 %v3461, 4294901760
        %3463 = vmatprep.subr.mxu0 %v3462
        %v3464 = vand.u32 %v3273, 4294901760
        %v3465 = vsub.f32 %v3273, %v3464
        %v3466 = vand.u32 %v3465, 4294901760
        %v3467 = vsub.f32 %v3465, %v3466
        %v3468 = vand.u32 %v3467, 4294901760
        %3469 = vmatpush1.msra.mxu0 %v3468
        %v3470 = vand.u32 %v3276, 4294901760
        %v3471 = vsub.f32 %v3276, %v3470
        %v3472 = vand.u32 %v3471, 4294901760
        %v3473 = vsub.f32 %v3471, %v3472
        %v3474 = vand.u32 %v3473, 4294901760
        %3475 = vmatprep.subr.mxu0 %v3474
        %v3476 = vand.u32 %v3275, 4294901760
        %v3477 = vsub.f32 %v3275, %v3476
        %v3478 = vand.u32 %v3477, 4294901760
        %v3479 = vsub.f32 %v3477, %v3478
        %v3480 = vand.u32 %v3479, 4294901760
        %3481 = vmatpush1.msra.mxu0 %v3480
        %3482 = vmatprep.subr.mxu0 0.0
        %3483 = vmatpush1.msra.mxu0 0.0
        %3484 = vmatprep.subr.mxu0 0.0
        %3485 = vmatpush1.msra.mxu0 0.0
        %3486 = vmatprep.subr.mxu0 0.0
        %3487 = vmatpush1.msra.mxu0 0.0
        %3488 = vmatprep.subr.mxu0 0.0
        %3489 = vmatpush1.msra.mxu0 0.0
        %3490 = vmatprep.subr.mxu0 0.0
        %3491 = vmatpush1.msra.mxu0 0.0
        %3492 = vmatprep.subr.mxu0 0.0
        %3493 = vmatpush1.msra.mxu0 0.0
        %3494 = vmatprep.subr.mxu0 0.0
        %3495 = vmatpush1.msra.mxu0 0.0
        %3496 = vmatprep.subr.mxu0 0.0
        %3497 = vmatpush1.msra.mxu0 0.0
        %3498 = vmatprep.subr.mxu0 0.0
        %3499 = vmatpush1.msra.mxu0 0.0
        %3500 = vmatprep.subr.mxu0 0.0
        %3501 = vmatpush1.msra.mxu0 0.0
        %3502 = vmatprep.subr.mxu0 0.0
        %3503 = vmatpush1.msra.mxu0 0.0
        %3504 = vmatprep.subr.mxu0 0.0
        %3505 = vmatpush1.msra.mxu0 0.0
        %3506 = vmatprep.subr.mxu0 0.0
        %3507 = vmatpush1.msra.mxu0 0.0
        %3508 = vmatprep.subr.mxu0 0.0
        %3509 = vmatpush1.msra.mxu0 0.0
        %3510 = vmatprep.subr.mxu0 0.0
        %3511 = vmatpush1.msra.mxu0 0.0
        %3512 = vmatprep.subr.mxu0 0.0
        %3513 = vmatpush1.msra.mxu0 0.0
        %3514 = vmatprep.subr.mxu0 0.0
        %3515 = vmatpush1.msra.mxu0 0.0
        %3516 = vmatprep.subr.mxu0 0.0
        %3517 = vmatpush1.msra.mxu0 0.0
        %3518 = vmatprep.subr.mxu0 0.0
        %3519 = vmatpush1.msra.mxu0 0.0
        %3520 = vmatprep.subr.mxu0 0.0
        %3521 = vmatpush1.msra.mxu0 0.0
        %3522 = vmatprep.subr.mxu0 0.0
        %3523 = vmatpush1.msra.mxu0 0.0
        %3524 = vmatprep.subr.mxu0 0.0
        %3525 = vmatpush1.msra.mxu0 0.0
        %3526 = vmatprep.subr.mxu0 0.0
        %3527 = vmatpush1.msra.mxu0 0.0
        %3528 = vmatprep.subr.mxu0 0.0
        %3529 = vmatpush1.msra.mxu0 0.0
        %3530 = vmatprep.subr.mxu0 0.0
        %3531 = vmatpush1.msra.mxu0 0.0
        %3532 = vmatprep.subr.mxu0 0.0
        %3533 = vmatpush1.msra.mxu0 0.0
        %3534 = vmatprep.subr.mxu0 0.0
        %3535 = vmatpush1.msra.mxu0 0.0
        %3536 = vmatprep.subr.mxu0 0.0
        %3537 = vmatpush1.msra.mxu0 0.0
        %3538 = vmatprep.mubr.f32.mxu0 0.0
        %v3539 = vand.u32 %v3306, 4294901760
        %3540 = vmatmul.mubr.f32.gmra.mrb[0].mxu0 %v3539
        %v3541 = vpop.f32.mrb[0].mxu0
        %v3542 = vadd.f32 %v3397, %v3541
        %v3543 = vpop.f32.mrb[0].mxu0
        %v3544 = vadd.f32 %v3399, %v3543
        %3545 = vmatprep.mubr.f32.mxu0 0.0
        %v3546 = vand.u32 %v3309, 4294901760
        %3547 = vmatmul.mubr.f32.gmra.mrb[0].mxu0 %v3546
        %v3548 = vpop.f32.mrb[0].mxu0
        %v3549 = vadd.f32 %v3408, %v3548
        %v3550 = vpop.f32.mrb[0].mxu0
        %v3551 = vadd.f32 %v3410, %v3550
        %3552 = vmatprep.mubr.f32.mxu0 0.0
        %v3553 = vand.u32 %v3312, 4294901760
        %3554 = vmatmul.mubr.f32.gmra.mrb[0].mxu0 %v3553
        %v3555 = vpop.f32.mrb[0].mxu0
        %v3556 = vadd.f32 %v3419, %v3555
        %v3557 = vpop.f32.mrb[0].mxu0
        %v3558 = vadd.f32 %v3421, %v3557
        %3559 = vmatprep.mubr.f32.mxu0 0.0
        %v3560 = vand.u32 %v3315, 4294901760
        %3561 = vmatmul.mubr.f32.gmra.mrb[0].mxu0 %v3560
        %v3562 = vpop.f32.mrb[0].mxu0
        %v3563 = vadd.f32 %v3430, %v3562
        %v3564 = vpop.f32.mrb[0].mxu0
        %v3565 = vadd.f32 %v3432, %v3564
        %3566 = vdwg.mxu0
        %v3567 = vand.u32 %v3270, 4294901760
        %v3568 = vsub.f32 %v3270, %v3567
        %3569 = vmatprep.subr.mxu0 %v3568
        %v3570 = vand.u32 %v3269, 4294901760
        %v3571 = vsub.f32 %v3269, %v3570
        %3572 = vmatpush1.msra.mxu0 %v3571
        %v3573 = vand.u32 %v3272, 4294901760
        %v3574 = vsub.f32 %v3272, %v3573
        %3575 = vmatprep.subr.mxu0 %v3574
        %v3576 = vand.u32 %v3271, 4294901760
        %v3577 = vsub.f32 %v3271, %v3576
        %3578 = vmatpush1.msra.mxu0 %v3577
        %v3579 = vand.u32 %v3274, 4294901760
        %v3580 = vsub.f32 %v3274, %v3579
        %3581 = vmatprep.subr.mxu0 %v3580
        %v3582 = vand.u32 %v3273, 4294901760
        %v3583 = vsub.f32 %v3273, %v3582
        %3584 = vmatpush1.msra.mxu0 %v3583
        %v3585 = vand.u32 %v3276, 4294901760
        %v3586 = vsub.f32 %v3276, %v3585
        %3587 = vmatprep.subr.mxu0 %v3586
        %v3588 = vand.u32 %v3275, 4294901760
        %v3589 = vsub.f32 %v3275, %v3588
        %3590 = vmatpush1.msra.mxu0 %v3589
        %3591 = vmatprep.subr.mxu0 0.0
        %3592 = vmatpush1.msra.mxu0 0.0
        %3593 = vmatprep.subr.mxu0 0.0
        %3594 = vmatpush1.msra.mxu0 0.0
        %3595 = vmatprep.subr.mxu0 0.0
        %3596 = vmatpush1.msra.mxu0 0.0
        %3597 = vmatprep.subr.mxu0 0.0
        %3598 = vmatpush1.msra.mxu0 0.0
        %3599 = vmatprep.subr.mxu0 0.0
        %3600 = vmatpush1.msra.mxu0 0.0
        %3601 = vmatprep.subr.mxu0 0.0
        %3602 = vmatpush1.msra.mxu0 0.0
        %3603 = vmatprep.subr.mxu0 0.0
        %3604 = vmatpush1.msra.mxu0 0.0
        %3605 = vmatprep.subr.mxu0 0.0
        %3606 = vmatpush1.msra.mxu0 0.0
        %3607 = vmatprep.subr.mxu0 0.0
        %3608 = vmatpush1.msra.mxu0 0.0
        %3609 = vmatprep.subr.mxu0 0.0
        %3610 = vmatpush1.msra.mxu0 0.0
        %3611 = vmatprep.subr.mxu0 0.0
        %3612 = vmatpush1.msra.mxu0 0.0
        %3613 = vmatprep.subr.mxu0 0.0
        %3614 = vmatpush1.msra.mxu0 0.0
        %3615 = vmatprep.subr.mxu0 0.0
        %3616 = vmatpush1.msra.mxu0 0.0
        %3617 = vmatprep.subr.mxu0 0.0
        %3618 = vmatpush1.msra.mxu0 0.0
        %3619 = vmatprep.subr.mxu0 0.0
        %3620 = vmatpush1.msra.mxu0 0.0
        %3621 = vmatprep.subr.mxu0 0.0
        %3622 = vmatpush1.msra.mxu0 0.0
        %3623 = vmatprep.subr.mxu0 0.0
        %3624 = vmatpush1.msra.mxu0 0.0
        %3625 = vmatprep.subr.mxu0 0.0
        %3626 = vmatpush1.msra.mxu0 0.0
        %3627 = vmatprep.subr.mxu0 0.0
        %3628 = vmatpush1.msra.mxu0 0.0
        %3629 = vmatprep.subr.mxu0 0.0
        %3630 = vmatpush1.msra.mxu0 0.0
        %3631 = vmatprep.subr.mxu0 0.0
        %3632 = vmatpush1.msra.mxu0 0.0
        %3633 = vmatprep.subr.mxu0 0.0
        %3634 = vmatpush1.msra.mxu0 0.0
        %3635 = vmatprep.subr.mxu0 0.0
        %3636 = vmatpush1.msra.mxu0 0.0
        %3637 = vmatprep.subr.mxu0 0.0
        %3638 = vmatpush1.msra.mxu0 0.0
        %3639 = vmatprep.subr.mxu0 0.0
        %3640 = vmatpush1.msra.mxu0 0.0
        %3641 = vmatprep.subr.mxu0 0.0
        %3642 = vmatpush1.msra.mxu0 0.0
        %3643 = vmatprep.subr.mxu0 0.0
        %3644 = vmatpush1.msra.mxu0 0.0
        %3645 = vmatprep.subr.mxu0 0.0
        %3646 = vmatpush1.msra.mxu0 0.0
        %3647 = vmatprep.mubr.f32.mxu0 0.0
        %v3648 = vand.u32 %v3306, 4294901760
        %v3649 = vsub.f32 %v3306, %v3648
        %3650 = vmatmul.mubr.f32.gmra.mrb[0].mxu0 %v3649
        %v3651 = vpop.f32.mrb[0].mxu0
        %v3652 = vadd.f32 %v3542, %v3651
        %v3653 = vpop.f32.mrb[0].mxu0
        %v3654 = vadd.f32 %v3544, %v3653
        %3655 = vmatprep.mubr.f32.mxu0 0.0
        %v3656 = vand.u32 %v3309, 4294901760
        %v3657 = vsub.f32 %v3309, %v3656
        %3658 = vmatmul.mubr.f32.gmra.mrb[0].mxu0 %v3657
        %v3659 = vpop.f32.mrb[0].mxu0
        %v3660 = vadd.f32 %v3549, %v3659
        %v3661 = vpop.f32.mrb[0].mxu0
        %v3662 = vadd.f32 %v3551, %v3661
        %3663 = vmatprep.mubr.f32.mxu0 0.0
        %v3664 = vand.u32 %v3312, 4294901760
        %v3665 = vsub.f32 %v3312, %v3664
        %3666 = vmatmul.mubr.f32.gmra.mrb[0].mxu0 %v3665
        %v3667 = vpop.f32.mrb[0].mxu0
        %v3668 = vadd.f32 %v3556, %v3667
        %v3669 = vpop.f32.mrb[0].mxu0
        %v3670 = vadd.f32 %v3558, %v3669
        %3671 = vmatprep.mubr.f32.mxu0 0.0
        %v3672 = vand.u32 %v3315, 4294901760
        %v3673 = vsub.f32 %v3315, %v3672
        %3674 = vmatmul.mubr.f32.gmra.mrb[0].mxu0 %v3673
        %v3675 = vpop.f32.mrb[0].mxu0
        %v3676 = vadd.f32 %v3563, %v3675
        %v3677 = vpop.f32.mrb[0].mxu0
        %v3678 = vadd.f32 %v3565, %v3677
        %3679 = vdwg.mxu0
        %v3680 = vand.u32 %v3270, 4294901760
        %3681 = vmatprep.subr.mxu0 %v3680
        %v3682 = vand.u32 %v3269, 4294901760
        %3683 = vmatpush1.msra.mxu0 %v3682
        %v3684 = vand.u32 %v3272, 4294901760
        %3685 = vmatprep.subr.mxu0 %v3684
        %v3686 = vand.u32 %v3271, 4294901760
        %3687 = vmatpush1.msra.mxu0 %v3686
        %v3688 = vand.u32 %v3274, 4294901760
        %3689 = vmatprep.subr.mxu0 %v3688
        %v3690 = vand.u32 %v3273, 4294901760
        %3691 = vmatpush1.msra.mxu0 %v3690
        %v3692 = vand.u32 %v3276, 4294901760
        %3693 = vmatprep.subr.mxu0 %v3692
        %v3694 = vand.u32 %v3275, 4294901760
        %3695 = vmatpush1.msra.mxu0 %v3694
        %3696 = vmatprep.subr.mxu0 0.0
        %3697 = vmatpush1.msra.mxu0 0.0
        %3698 = vmatprep.subr.mxu0 0.0
        %3699 = vmatpush1.msra.mxu0 0.0
        %3700 = vmatprep.subr.mxu0 0.0
        %3701 = vmatpush1.msra.mxu0 0.0
        %3702 = vmatprep.subr.mxu0 0.0
        %3703 = vmatpush1.msra.mxu0 0.0
        %3704 = vmatprep.subr.mxu0 0.0
        %3705 = vmatpush1.msra.mxu0 0.0
        %3706 = vmatprep.subr.mxu0 0.0
        %3707 = vmatpush1.msra.mxu0 0.0
        %3708 = vmatprep.subr.mxu0 0.0
        %3709 = vmatpush1.msra.mxu0 0.0
        %3710 = vmatprep.subr.mxu0 0.0
        %3711 = vmatpush1.msra.mxu0 0.0
        %3712 = vmatprep.subr.mxu0 0.0
        %3713 = vmatpush1.msra.mxu0 0.0
        %3714 = vmatprep.subr.mxu0 0.0
        %3715 = vmatpush1.msra.mxu0 0.0
        %3716 = vmatprep.subr.mxu0 0.0
        %3717 = vmatpush1.msra.mxu0 0.0
        %3718 = vmatprep.subr.mxu0 0.0
        %3719 = vmatpush1.msra.mxu0 0.0
        %3720 = vmatprep.subr.mxu0 0.0
        %3721 = vmatpush1.msra.mxu0 0.0
        %3722 = vmatprep.subr.mxu0 0.0
        %3723 = vmatpush1.msra.mxu0 0.0
        %3724 = vmatprep.subr.mxu0 0.0
        %3725 = vmatpush1.msra.mxu0 0.0
        %3726 = vmatprep.subr.mxu0 0.0
        %3727 = vmatpush1.msra.mxu0 0.0
        %3728 = vmatprep.subr.mxu0 0.0
        %3729 = vmatpush1.msra.mxu0 0.0
        %3730 = vmatprep.subr.mxu0 0.0
        %3731 = vmatpush1.msra.mxu0 0.0
        %3732 = vmatprep.subr.mxu0 0.0
        %3733 = vmatpush1.msra.mxu0 0.0
        %3734 = vmatprep.subr.mxu0 0.0
        %3735 = vmatpush1.msra.mxu0 0.0
        %3736 = vmatprep.subr.mxu0 0.0
        %3737 = vmatpush1.msra.mxu0 0.0
        %3738 = vmatprep.subr.mxu0 0.0
        %3739 = vmatpush1.msra.mxu0 0.0
        %3740 = vmatprep.subr.mxu0 0.0
        %3741 = vmatpush1.msra.mxu0 0.0
        %3742 = vmatprep.subr.mxu0 0.0
        %3743 = vmatpush1.msra.mxu0 0.0
        %3744 = vmatprep.subr.mxu0 0.0
        %3745 = vmatpush1.msra.mxu0 0.0
        %3746 = vmatprep.subr.mxu0 0.0
        %3747 = vmatpush1.msra.mxu0 0.0
        %3748 = vmatprep.subr.mxu0 0.0
        %3749 = vmatpush1.msra.mxu0 0.0
        %3750 = vmatprep.subr.mxu0 0.0
        %3751 = vmatpush1.msra.mxu0 0.0
        %3752 = vmatprep.mubr.f32.mxu0 0.0
        %v3753 = vand.u32 %v3306, 4294901760
        %v3754 = vsub.f32 %v3306, %v3753
        %v3755 = vand.u32 %v3754, 4294901760
        %3756 = vmatmul.mubr.f32.gmra.mrb[0].mxu0 %v3755
        %v3757 = vpop.f32.mrb[0].mxu0
        %v3758 = vadd.f32 %v3652, %v3757
        %v3759 = vpop.f32.mrb[0].mxu0
        %v3760 = vadd.f32 %v3654, %v3759
        %3761 = vmatprep.mubr.f32.mxu0 0.0
        %v3762 = vand.u32 %v3309, 4294901760
        %v3763 = vsub.f32 %v3309, %v3762
        %v3764 = vand.u32 %v3763, 4294901760
        %3765 = vmatmul.mubr.f32.gmra.mrb[0].mxu0 %v3764
        %v3766 = vpop.f32.mrb[0].mxu0
        %v3767 = vadd.f32 %v3660, %v3766
        %v3768 = vpop.f32.mrb[0].mxu0
        %v3769 = vadd.f32 %v3662, %v3768
        %3770 = vmatprep.mubr.f32.mxu0 0.0
        %v3771 = vand.u32 %v3312, 4294901760
        %v3772 = vsub.f32 %v3312, %v3771
        %v3773 = vand.u32 %v3772, 4294901760
        %3774 = vmatmul.mubr.f32.gmra.mrb[0].mxu0 %v3773
        %v3775 = vpop.f32.mrb[0].mxu0
        %v3776 = vadd.f32 %v3668, %v3775
        %v3777 = vpop.f32.mrb[0].mxu0
        %v3778 = vadd.f32 %v3670, %v3777
        %3779 = vmatprep.mubr.f32.mxu0 0.0
        %v3780 = vand.u32 %v3315, 4294901760
        %v3781 = vsub.f32 %v3315, %v3780
        %v3782 = vand.u32 %v3781, 4294901760
        %3783 = vmatmul.mubr.f32.gmra.mrb[0].mxu0 %v3782
        %v3784 = vpop.f32.mrb[0].mxu0
        %v3785 = vadd.f32 %v3676, %v3784
        %v3786 = vpop.f32.mrb[0].mxu0
        %v3787 = vadd.f32 %v3678, %v3786
        %3788 = vdwg.mxu0
        %v3789 = vand.u32 %v3270, 4294901760
        %v3790 = vsub.f32 %v3270, %v3789
        %v3791 = vand.u32 %v3790, 4294901760
        %3792 = vmatprep.subr.mxu0 %v3791
        %v3793 = vand.u32 %v3269, 4294901760
        %v3794 = vsub.f32 %v3269, %v3793
        %v3795 = vand.u32 %v3794, 4294901760
        %3796 = vmatpush1.msra.mxu0 %v3795
        %v3797 = vand.u32 %v3272, 4294901760
        %v3798 = vsub.f32 %v3272, %v3797
        %v3799 = vand.u32 %v3798, 4294901760
        %3800 = vmatprep.subr.mxu0 %v3799
        %v3801 = vand.u32 %v3271, 4294901760
        %v3802 = vsub.f32 %v3271, %v3801
        %v3803 = vand.u32 %v3802, 4294901760
        %3804 = vmatpush1.msra.mxu0 %v3803
        %v3805 = vand.u32 %v3274, 4294901760
        %v3806 = vsub.f32 %v3274, %v3805
        %v3807 = vand.u32 %v3806, 4294901760
        %3808 = vmatprep.subr.mxu0 %v3807
        %v3809 = vand.u32 %v3273, 4294901760
        %v3810 = vsub.f32 %v3273, %v3809
        %v3811 = vand.u32 %v3810, 4294901760
        %3812 = vmatpush1.msra.mxu0 %v3811
        %v3813 = vand.u32 %v3276, 4294901760
        %v3814 = vsub.f32 %v3276, %v3813
        %v3815 = vand.u32 %v3814, 4294901760
        %3816 = vmatprep.subr.mxu0 %v3815
        %v3817 = vand.u32 %v3275, 4294901760
        %v3818 = vsub.f32 %v3275, %v3817
        %v3819 = vand.u32 %v3818, 4294901760
        %3820 = vmatpush1.msra.mxu0 %v3819
        %3821 = vmatprep.subr.mxu0 0.0
        %3822 = vmatpush1.msra.mxu0 0.0
        %3823 = vmatprep.subr.mxu0 0.0
        %3824 = vmatpush1.msra.mxu0 0.0
        %3825 = vmatprep.subr.mxu0 0.0
        %3826 = vmatpush1.msra.mxu0 0.0
        %3827 = vmatprep.subr.mxu0 0.0
        %3828 = vmatpush1.msra.mxu0 0.0
        %3829 = vmatprep.subr.mxu0 0.0
        %3830 = vmatpush1.msra.mxu0 0.0
        %3831 = vmatprep.subr.mxu0 0.0
        %3832 = vmatpush1.msra.mxu0 0.0
        %3833 = vmatprep.subr.mxu0 0.0
        %3834 = vmatpush1.msra.mxu0 0.0
        %3835 = vmatprep.subr.mxu0 0.0
        %3836 = vmatpush1.msra.mxu0 0.0
        %3837 = vmatprep.subr.mxu0 0.0
        %3838 = vmatpush1.msra.mxu0 0.0
        %3839 = vmatprep.subr.mxu0 0.0
        %3840 = vmatpush1.msra.mxu0 0.0
        %3841 = vmatprep.subr.mxu0 0.0
        %3842 = vmatpush1.msra.mxu0 0.0
        %3843 = vmatprep.subr.mxu0 0.0
        %3844 = vmatpush1.msra.mxu0 0.0
        %3845 = vmatprep.subr.mxu0 0.0
        %3846 = vmatpush1.msra.mxu0 0.0
        %3847 = vmatprep.subr.mxu0 0.0
        %3848 = vmatpush1.msra.mxu0 0.0
        %3849 = vmatprep.subr.mxu0 0.0
        %3850 = vmatpush1.msra.mxu0 0.0
        %3851 = vmatprep.subr.mxu0 0.0
        %3852 = vmatpush1.msra.mxu0 0.0
        %3853 = vmatprep.subr.mxu0 0.0
        %3854 = vmatpush1.msra.mxu0 0.0
        %3855 = vmatprep.subr.mxu0 0.0
        %3856 = vmatpush1.msra.mxu0 0.0
        %3857 = vmatprep.subr.mxu0 0.0
        %3858 = vmatpush1.msra.mxu0 0.0
        %3859 = vmatprep.subr.mxu0 0.0
        %3860 = vmatpush1.msra.mxu0 0.0
        %3861 = vmatprep.subr.mxu0 0.0
        %3862 = vmatpush1.msra.mxu0 0.0
        %3863 = vmatprep.subr.mxu0 0.0
        %3864 = vmatpush1.msra.mxu0 0.0
        %3865 = vmatprep.subr.mxu0 0.0
        %3866 = vmatpush1.msra.mxu0 0.0
        %3867 = vmatprep.subr.mxu0 0.0
        %3868 = vmatpush1.msra.mxu0 0.0
        %3869 = vmatprep.subr.mxu0 0.0
        %3870 = vmatpush1.msra.mxu0 0.0
        %3871 = vmatprep.subr.mxu0 0.0
        %3872 = vmatpush1.msra.mxu0 0.0
        %3873 = vmatprep.subr.mxu0 0.0
        %3874 = vmatpush1.msra.mxu0 0.0
        %3875 = vmatprep.subr.mxu0 0.0
        %3876 = vmatpush1.msra.mxu0 0.0
        %3877 = vmatprep.mubr.f32.mxu0 0.0
        %v3878 = vand.u32 %v3306, 4294901760
        %3879 = vmatmul.mubr.f32.gmra.mrb[0].mxu0 %v3878
        %v3880 = vpop.f32.mrb[0].mxu0
        %v3881 = vadd.f32 %v3758, %v3880
        %v3882 = vpop.f32.mrb[0].mxu0
        %v3883 = vadd.f32 %v3760, %v3882
        %3884 = vmatprep.mubr.f32.mxu0 0.0
        %v3885 = vand.u32 %v3309, 4294901760
        %3886 = vmatmul.mubr.f32.gmra.mrb[0].mxu0 %v3885
        %v3887 = vpop.f32.mrb[0].mxu0
        %v3888 = vadd.f32 %v3767, %v3887
        %v3889 = vpop.f32.mrb[0].mxu0
        %v3890 = vadd.f32 %v3769, %v3889
        %3891 = vmatprep.mubr.f32.mxu0 0.0
        %v3892 = vand.u32 %v3312, 4294901760
        %3893 = vmatmul.mubr.f32.gmra.mrb[0].mxu0 %v3892
        %v3894 = vpop.f32.mrb[0].mxu0
        %v3895 = vadd.f32 %v3776, %v3894
        %v3896 = vpop.f32.mrb[0].mxu0
        %v3897 = vadd.f32 %v3778, %v3896
        %3898 = vmatprep.mubr.f32.mxu0 0.0
        %v3899 = vand.u32 %v3315, 4294901760
        %3900 = vmatmul.mubr.f32.gmra.mrb[0].mxu0 %v3899
        %v3901 = vpop.f32.mrb[0].mxu0
        %v3902 = vadd.f32 %v3785, %v3901
        %v3903 = vpop.f32.mrb[0].mxu0
        %v3904 = vadd.f32 %v3787, %v3903
        %3905 = vdwg.mxu0
        %v3906 = vand.u32 %v3270, 4294901760
        %3907 = vmatprep.subr.mxu0 %v3906
        %v3908 = vand.u32 %v3269, 4294901760
        %3909 = vmatpush1.msra.mxu0 %v3908
        %v3910 = vand.u32 %v3272, 4294901760
        %3911 = vmatprep.subr.mxu0 %v3910
        %v3912 = vand.u32 %v3271, 4294901760
        %3913 = vmatpush1.msra.mxu0 %v3912
        %v3914 = vand.u32 %v3274, 4294901760
        %3915 = vmatprep.subr.mxu0 %v3914
        %v3916 = vand.u32 %v3273, 4294901760
        %3917 = vmatpush1.msra.mxu0 %v3916
        %v3918 = vand.u32 %v3276, 4294901760
        %3919 = vmatprep.subr.mxu0 %v3918
        %v3920 = vand.u32 %v3275, 4294901760
        %3921 = vmatpush1.msra.mxu0 %v3920
        %3922 = vmatprep.subr.mxu0 0.0
        %3923 = vmatpush1.msra.mxu0 0.0
        %3924 = vmatprep.subr.mxu0 0.0
        %3925 = vmatpush1.msra.mxu0 0.0
        %3926 = vmatprep.subr.mxu0 0.0
        %3927 = vmatpush1.msra.mxu0 0.0
        %3928 = vmatprep.subr.mxu0 0.0
        %3929 = vmatpush1.msra.mxu0 0.0
        %3930 = vmatprep.subr.mxu0 0.0
        %3931 = vmatpush1.msra.mxu0 0.0
        %3932 = vmatprep.subr.mxu0 0.0
        %3933 = vmatpush1.msra.mxu0 0.0
        %3934 = vmatprep.subr.mxu0 0.0
        %3935 = vmatpush1.msra.mxu0 0.0
        %3936 = vmatprep.subr.mxu0 0.0
        %3937 = vmatpush1.msra.mxu0 0.0
        %3938 = vmatprep.subr.mxu0 0.0
        %3939 = vmatpush1.msra.mxu0 0.0
        %3940 = vmatprep.subr.mxu0 0.0
        %3941 = vmatpush1.msra.mxu0 0.0
        %3942 = vmatprep.subr.mxu0 0.0
        %3943 = vmatpush1.msra.mxu0 0.0
        %3944 = vmatprep.subr.mxu0 0.0
        %3945 = vmatpush1.msra.mxu0 0.0
        %3946 = vmatprep.subr.mxu0 0.0
        %3947 = vmatpush1.msra.mxu0 0.0
        %3948 = vmatprep.subr.mxu0 0.0
        %3949 = vmatpush1.msra.mxu0 0.0
        %3950 = vmatprep.subr.mxu0 0.0
        %3951 = vmatpush1.msra.mxu0 0.0
        %3952 = vmatprep.subr.mxu0 0.0
        %3953 = vmatpush1.msra.mxu0 0.0
        %3954 = vmatprep.subr.mxu0 0.0
        %3955 = vmatpush1.msra.mxu0 0.0
        %3956 = vmatprep.subr.mxu0 0.0
        %3957 = vmatpush1.msra.mxu0 0.0
        %3958 = vmatprep.subr.mxu0 0.0
        %3959 = vmatpush1.msra.mxu0 0.0
        %3960 = vmatprep.subr.mxu0 0.0
        %3961 = vmatpush1.msra.mxu0 0.0
        %3962 = vmatprep.subr.mxu0 0.0
        %3963 = vmatpush1.msra.mxu0 0.0
        %3964 = vmatprep.subr.mxu0 0.0
        %3965 = vmatpush1.msra.mxu0 0.0
        %3966 = vmatprep.subr.mxu0 0.0
        %3967 = vmatpush1.msra.mxu0 0.0
        %3968 = vmatprep.subr.mxu0 0.0
        %3969 = vmatpush1.msra.mxu0 0.0
        %3970 = vmatprep.subr.mxu0 0.0
        %3971 = vmatpush1.msra.mxu0 0.0
        %3972 = vmatprep.subr.mxu0 0.0
        %3973 = vmatpush1.msra.mxu0 0.0
        %3974 = vmatprep.subr.mxu0 0.0
        %3975 = vmatpush1.msra.mxu0 0.0
        %3976 = vmatprep.subr.mxu0 0.0
        %3977 = vmatpush1.msra.mxu0 0.0
        %3978 = vmatprep.mubr.f32.mxu0 0.0
        %v3979 = vand.u32 %v3306, 4294901760
        %3980 = vmatmul.mubr.f32.gmra.mrb[0].mxu0 %v3979
        %v3981 = vpop.f32.mrb[0].mxu0
        %v3982 = vadd.f32 %v3881, %v3981
        %v3983 = vpop.f32.mrb[0].mxu0
        %v3984 = vadd.f32 %v3883, %v3983
        %3985 = vmatprep.mubr.f32.mxu0 0.0
        %v3986 = vand.u32 %v3309, 4294901760
        %3987 = vmatmul.mubr.f32.gmra.mrb[0].mxu0 %v3986
        %v3988 = vpop.f32.mrb[0].mxu0
        %v3989 = vadd.f32 %v3888, %v3988
        %v3990 = vpop.f32.mrb[0].mxu0
        %v3991 = vadd.f32 %v3890, %v3990
        %3992 = vmatprep.mubr.f32.mxu0 0.0
        %v3993 = vand.u32 %v3312, 4294901760
        %3994 = vmatmul.mubr.f32.gmra.mrb[0].mxu0 %v3993
        %v3995 = vpop.f32.mrb[0].mxu0
        %v3996 = vadd.f32 %v3895, %v3995
        %v3997 = vpop.f32.mrb[0].mxu0
        %v3998 = vadd.f32 %v3897, %v3997
        %3999 = vmatprep.mubr.f32.mxu0 0.0
        %v4000 = vand.u32 %v3315, 4294901760
        %4001 = vmatmul.mubr.f32.gmra.mrb[0].mxu0 %v4000
        %v4002 = vpop.f32.mrb[0].mxu0
        %v4003 = vadd.f32 %v3902, %v4002
        %v4004 = vpop.f32.mrb[0].mxu0
        %v4005 = vadd.f32 %v3904, %v4004
        %4006 = vdwg.mxu0
        %v4007 = vld [vmem:[%s416] sm:$0xff]
        %v4008 = vld [vmem:[%s416 + $0x8] sm:$0xff]
        %v4009 = vld [vmem:[%s416 + $0x10] sm:$0xff]
        %v4010 = vld [vmem:[%s416 + $0x18] sm:$0xff]
        %v4011 = vld [vmem:[%s416 + $0x20] sm:$0xff]
        %v4012 = vld [vmem:[%s416 + $0x28] sm:$0xff]
        %v4013 = vld [vmem:[%s416 + $0x30] sm:$0xff]
        %v4014 = vld [vmem:[%s416 + $0x38] sm:$0xff]
        %v4015 = vadd.f32 %v3982, %v4007
        %v4016 = vadd.f32 %v3984, %v4008
        %v4017 = vadd.f32 %v3989, %v4009
        %v4018 = vadd.f32 %v3991, %v4010
        %v4019 = vadd.f32 %v3996, %v4011
        %v4020 = vadd.f32 %v3998, %v4012
        %v4021 = vadd.f32 %v4003, %v4013
        %v4022 = vadd.f32 %v4005, %v4014
        %4023 = vst [vmem:[%s411] sm:$0xff] %v4015
        %4024 = vst.msk [vmem:[%s411 + $0x8] sm:$0xff] %vm434, %v4016
        %4025 = vst [vmem:[%s411 + $0x10] sm:$0xff] %v4017
        %4026 = vst.msk [vmem:[%s411 + $0x18] sm:$0xff] %vm434, %v4018
        %4027 = vst [vmem:[%s411 + $0x20] sm:$0xff] %v4019
        %4028 = vst.msk [vmem:[%s411 + $0x28] sm:$0xff] %vm434, %v4020
        %4029 = vst [vmem:[%s411 + $0x30] sm:$0xff] %v4021
        %4030 = vst.msk [vmem:[%s411 + $0x38] sm:$0xff] %vm434, %v4022
        %s4031 = sand.u32 %s250, 1
        %s4032 = scalar_lea.sflag [#allocation6], %s4031
        %s4033 = sand.u32 %s250, 1
        %s4034 = smul.addr %s4033, 64
        %s4035 = scalar_lea.vmem [#allocation12], %s4034
        // Predicated region
        $region77: #{tpu_custom_call.1} parent=59 // pred_check
          %p4036 = pneg %p260
        $region78: #{tpu_custom_call.1} parent=59 // pred_check_branch
          %4038 = sbr.rel (%p4036) target = $region80
        $region79: #{tpu_custom_call.1} parent=59 // pred_region
          %s4040 = ssub.s32 1024, 1024
          %4041 = vsyncadd %s4032, %s4040
          %s4042 = smul.addr %s27, 8
          %s4043 = smul.addr %s4042, 128
          %s4044 = scalar_lea.hbm %s10, %s4043
          %s4045 = sshll.u32 %s4035, 4
          %s4046 = int_to_ptr.vmem [resolvable:$true] %s4045
          %4051 = dma.vmem_to_hbm [thread:$0]  %s4046, 1024, %s4044, %s4032, 256, 256, 16
        $region80: #{tpu_custom_call.1} parent=59 // pred_fallthru
          _
      $region60: #{tpu_custom_call.1} parent=5 // pred_fallthru
        _
      %p4052 = scmp.le.s32.totalorder 2, %s22
      // Predicated region
      $region81: #{tpu_custom_call.1} parent=5 // pred_check
        %p4053 = pneg %p4052
      $region82: #{tpu_custom_call.1} parent=5 // pred_check_branch
        %4055 = sbr.rel (%p4053) target = $region84
      $region83: #{tpu_custom_call.1} parent=5 // pred_region
        %s4056 = ssub.s32 %s22, 2
        // Predicated region
        $region85: #{tpu_custom_call.1} parent=83 // pred_check
          %p4057 = pneg %p266
        $region86: #{tpu_custom_call.1} parent=83 // pred_check_branch
          %4059 = sbr.rel (%p4057) target = $region88
        $region87: #{tpu_custom_call.1} parent=83 // pred_region
          %s4060 = sand.u32 %s251, 1
          %s4061 = scalar_lea.sflag [#allocation6], %s4060
          %s4062 = sand.u32 %s251, 1
          %s4063 = smul.addr %s4062, 64
          %s4064 = scalar_lea.vmem [#allocation12], %s4063
          %4065 = dma.done %s4061, 1024
        $region88: #{tpu_custom_call.1} parent=83 // pred_fallthru
          _
      $region84: #{tpu_custom_call.1} parent=5 // pred_fallthru
        _
    $region6: #{tpu_custom_call.1} parent=1 // loop_footer
      %s26 = sadd.s32 1, %s22
    $region7: #{tpu_custom_call.1} parent=1 // loop_footer_branch
      %21 = sbr.rel target = $region3
    $region8: #{tpu_custom_call.1} parent=1 // loop_exit
      _
    %4066 = vsyncpa [#allocation5], 1
    %s4067 = scalar_lea.sflag [#allocation5], 1
    %4068 = vsyncpa %s4067, 1
    %4069 = vsyncpa [#allocation8], 1
    %4070 = vsyncpa [#allocation11], 1
    %4071 = vsyncpa [#allocation6], 1
    %s4072 = scalar_lea.sflag [#allocation6], 1
    %4073 = vsyncpa %s4072, 1

</llo_original>
